<compile_context>
chip_gen: v7x
topology: tpu7x:2x2x1
jax: 0.10.0
libtpu: 0.0.40
codegen_flags: <defaults>
</compile_context>

<pallas_src>
import functools
import math

import jax
import jax.numpy as jnp
from jax import lax
from jax.experimental import pallas as pl
from jax.experimental.pallas import tpu as pltpu


NEG_INF = -1e30   # finite mask value (avoids latent inf-inf NaN paths)

PARAM_ORDER = (
    "ln1_w", "ln1_b",
    "wq", "bq", "wk", "bk", "wv", "bv", "wo", "bo",
    "ln2_w", "ln2_b",
    "w1", "b1", "w2", "b2",
)


# ----------------------------- in-kernel math --------------------------------


def _layernorm(z, w, b, eps=1e-5):
    mu = jnp.mean(z, axis=-1, keepdims=True)
    var = jnp.mean((z - mu) ** 2, axis=-1, keepdims=True)
    return (z - mu) * lax.rsqrt(var + eps) * w + b


def _transformer_block(x, p, *, batch, heads, causal):
    """One TransformerBlock on a (batch*seq, dim) float32 activation."""
    BS, D = x.shape
    B = batch
    S = BS // B
    dh = D // heads
    scale = D ** (-0.5)                 # full-dim scaling, as in the PyTorch module

    # --------------------------- attention ----------------------------------
    h = _layernorm(x, p["ln1_w"], p["ln1_b"])
    # Fold the softmax scale into q: touches B*S*D elements instead of B*H*S*S.
    q = (jnp.dot(h, p["wq"], preferred_element_type=jnp.float32) + p["bq"]) * scale
    k = jnp.dot(h, p["wk"], preferred_element_type=jnp.float32) + p["bk"]
    v = jnp.dot(h, p["wv"], preferred_element_type=jnp.float32) + p["bv"]

    causal_bias = None
    if causal:
        row = lax.broadcasted_iota(jnp.int32, (B, S, S), 1)
        col = lax.broadcasted_iota(jnp.int32, (B, S, S), 2)
        causal_bias = jnp.where(col > row, NEG_INF, 0.0).astype(jnp.float32)

    attn = jnp.zeros((BS, D), jnp.float32)
    for hh in range(heads):             # static unroll; heads is small
        lo = hh * dh
        qh = q[:, lo:lo + dh].reshape(B, S, dh)   # major-dim split: free reshape
        kh = k[:, lo:lo + dh].reshape(B, S, dh)
        vh = v[:, lo:lo + dh].reshape(B, S, dh)
        # Batched over B; k-transpose expressed via dimension numbers (no copy).
        dots = jnp.einsum("bid,bjd->bij", qh, kh,
                          preferred_element_type=jnp.float32)
        if causal:
            dots = dots + causal_bias
        m = jnp.max(dots, axis=-1, keepdims=True)
        e = jnp.exp(dots - m)
        denom = jnp.sum(e, axis=-1, keepdims=True)
        prob = e * pl.reciprocal(denom, approx=True)           # EUP reciprocal
        ho = jnp.einsum("bij,bjd->bid", prob, vh,
                        preferred_element_type=jnp.float32)    # (B, S, dh)
        # Accumulate per-head output projection == concat(heads) @ W_o.
        attn = attn + jnp.dot(ho.reshape(BS, dh), p["wo"][lo:lo + dh, :],
                              preferred_element_type=jnp.float32)
    x1 = x + attn + p["bo"]

    # --------------------------- feed-forward -------------------------------
    h2 = _layernorm(x1, p["ln2_w"], p["ln2_b"])
    a = jnp.dot(h2, p["w1"], preferred_element_type=jnp.float32) + p["b1"]
    # exact GELU (matches torch.nn.GELU() default)
    g = 0.5 * a * (1.0 + lax.erf(a * (1.0 / math.sqrt(2.0))))
    f = jnp.dot(g, p["w2"], preferred_element_type=jnp.float32) + p["b2"]
    return x1 + f


# ----------------------------- kernel ----------------------------------------


def encoder_kernel(x_ref, *refs, batch, heads, causal):
    """Grid axis 0 = layer index. Per-layer weights are delivered by BlockSpec;
    the running activation is resident in a VMEM scratch across grid steps."""
    n_params = len(PARAM_ORDER)
    param_refs = refs[:n_params]
    o_ref = refs[n_params]
    state_ref = refs[n_params + 1]

    @pl.when(pl.program_id(0) == 0)
    def _():
        state_ref[...] = x_ref[...]

    p = {name: r[...] for name, r in zip(PARAM_ORDER, param_refs)}
    new_x = _transformer_block(state_ref[...], p,
                               batch=batch, heads=heads, causal=causal)
    state_ref[...] = new_x
    # Constant output block index -> stays in VMEM; HBM writeback once, at end.
    o_ref[...] = new_x


# ----------------------------- wrapper ----------------------------------------


def encoder(x, layer_params, heads, causal=True):
    """Encoder forward: stack of TransformerBlocks. x: (batch, seq, dim) f32."""
    B, S, D = x.shape
    L = len(layer_params)
    x2d = x.reshape(B * S, D)           # fold batch into rows (free, wrapper-side)

    # Stack per-layer params along a leading layer axis -> streamed via BlockSpec.
    stacked = [jnp.stack([p[name] for p in layer_params]).astype(jnp.float32)
               for name in PARAM_ORDER]

    def param_spec(arr):
        _, a, b = arr.shape
        return pl.BlockSpec((None, a, b), lambda l: (l, 0, 0))

    grid_spec = pltpu.PrefetchScalarGridSpec(
        num_scalar_prefetch=0,
        grid=(L,),
        in_specs=[pl.BlockSpec((B * S, D), lambda l: (0, 0))]
                 + [param_spec(a) for a in stacked],
        out_specs=pl.BlockSpec((B * S, D), lambda l: (0, 0)),
        scratch_shapes=[pltpu.VMEM((B * S, D), jnp.float32)],
    )

    kernel = functools.partial(encoder_kernel, batch=B, heads=heads, causal=causal)
    out = pl.pallas_call(
        kernel,
        out_shape=jax.ShapeDtypeStruct((B * S, D), jnp.float32),
        grid_spec=grid_spec,
        compiler_params=pltpu.CompilerParams(
            dimension_semantics=("arbitrary",),      # sequential layer dependency
            vmem_limit_bytes=64 * 1024 * 1024),
    )(x2d, *stacked)
    return out.reshape(B, S, D)


# ----------------------------- param init ------------------------------------


def init_layer_params(key, dim):
    dh = 4 * dim
    keys = jax.random.split(key, 6)
    s = 0.02
    return {
        "ln1_w": jnp.ones((1, dim), jnp.float32),
        "ln1_b": jnp.zeros((1, dim), jnp.float32),
        "wq": s * jax.random.normal(keys[0], (dim, dim), jnp.float32),
        "bq": jnp.zeros((1, dim), jnp.float32),
        "wk": s * jax.random.normal(keys[1], (dim, dim), jnp.float32),
        "bk": jnp.zeros((1, dim), jnp.float32),
        "wv": s * jax.random.normal(keys[2], (dim, dim), jnp.float32),
        "bv": jnp.zeros((1, dim), jnp.float32),
        "wo": s * jax.random.normal(keys[3], (dim, dim), jnp.float32),
        "bo": jnp.zeros((1, dim), jnp.float32),
        "ln2_w": jnp.ones((1, dim), jnp.float32),
        "ln2_b": jnp.zeros((1, dim), jnp.float32),
        "w1": s * jax.random.normal(keys[4], (dim, dh), jnp.float32),
        "b1": jnp.zeros((1, dh), jnp.float32),
        "w2": s * jax.random.normal(keys[5], (dh, dim), jnp.float32),
        "b2": jnp.zeros((1, dim), jnp.float32),
    }


# ----------------------------- pure-JAX reference -----------------------------


def _ref_block(x, p, heads, causal=True):
    def ln(z, w, b):
        mu = jnp.mean(z, axis=-1, keepdims=True)
        var = jnp.mean((z - mu) ** 2, axis=-1, keepdims=True)
        return (z - mu) / jnp.sqrt(var + 1e-5) * w + b

    B, S, D = x.shape
    dh = D // heads
    h = ln(x, p["ln1_w"], p["ln1_b"])
    q = h @ p["wq"] + p["bq"]
    k = h @ p["wk"] + p["bk"]
    v = h @ p["wv"] + p["bv"]
    q = q.reshape(B, S, heads, dh).transpose(0, 2, 1, 3)
    k = k.reshape(B, S, heads, dh).transpose(0, 2, 1, 3)
    v = v.reshape(B, S, heads, dh).transpose(0, 2, 1, 3)
    dots = jnp.einsum("bhid,bhjd->bhij", q, k) * (D ** -0.5)
    if causal:
        mask = jnp.triu(jnp.ones((S, S), bool), k=1)
        dots = jnp.where(mask, -jnp.inf, dots)
    attn = jax.nn.softmax(dots, axis=-1)
    summed = jnp.einsum("bhij,bhjd->bhid", attn, v)
    concat = summed.transpose(0, 2, 1, 3).reshape(B, S, D)
    x1 = x + concat @ p["wo"] + p["bo"]
    h2 = ln(x1, p["ln2_w"], p["ln2_b"])
    a = h2 @ p["w1"] + p["b1"]
    g = 0.5 * a * (1.0 + lax.erf(a / jnp.sqrt(2.0)))
    return x1 + g @ p["w2"] + p["b2"]


def _ref_encoder(x, layer_params, heads, causal=True):
    for p in layer_params:
        x = _ref_block(x, p, heads, causal)
    return x


# ----------------------------- main ------------------------------------------

if __name__ == "__main__":
    n_layers = 2
    batch, seq, dim, heads = 2, 8, 32, 4

    key = jax.random.PRNGKey(0)
    key, xk = jax.random.split(key)
    x = jax.random.normal(xk, (batch, seq, dim), jnp.float32)

    layer_keys = jax.random.split(key, n_layers)
    layer_params = [init_layer_params(k, dim) for k in layer_keys]

    out = jax.block_until_ready(encoder(x, layer_params, heads))

    ref = _ref_encoder(x, layer_params, heads)
    assert out.shape == (batch, seq, dim)
    # Only intended deviation from the f32 reference: the EUP approximate
    # reciprocal in the softmax normalization (~2^-12 relative).
    max_err = float(jnp.max(jnp.abs(out - ref)))
    assert jnp.allclose(out, ref, atol=5e-4, rtol=5e-4), (
        f"mismatch vs reference: max abs err = {max_err}")

    print("KERNEL_OK")
</pallas_src>

<mosaic_0001>
module attributes {stable_mosaic.version = 11 : i64} {
  func.func @encoder_kernel(%arg0: i32, %arg1: memref<16x32xf32, #tpu.memory_space<vmem>>, %arg2: memref<1x1x32xf32, #tpu.memory_space<vmem>>, %arg3: memref<1x1x32xf32, #tpu.memory_space<vmem>>, %arg4: memref<1x32x32xf32, #tpu.memory_space<vmem>>, %arg5: memref<1x1x32xf32, #tpu.memory_space<vmem>>, %arg6: memref<1x32x32xf32, #tpu.memory_space<vmem>>, %arg7: memref<1x1x32xf32, #tpu.memory_space<vmem>>, %arg8: memref<1x32x32xf32, #tpu.memory_space<vmem>>, %arg9: memref<1x1x32xf32, #tpu.memory_space<vmem>>, %arg10: memref<1x32x32xf32, #tpu.memory_space<vmem>>, %arg11: memref<1x1x32xf32, #tpu.memory_space<vmem>>, %arg12: memref<1x1x32xf32, #tpu.memory_space<vmem>>, %arg13: memref<1x1x32xf32, #tpu.memory_space<vmem>>, %arg14: memref<1x32x128xf32, #tpu.memory_space<vmem>>, %arg15: memref<1x1x128xf32, #tpu.memory_space<vmem>>, %arg16: memref<1x128x32xf32, #tpu.memory_space<vmem>>, %arg17: memref<1x1x32xf32, #tpu.memory_space<vmem>>, %arg18: memref<16x32xf32, #tpu.memory_space<vmem>>, %arg19: memref<16x32xf32, #tpu.memory_space<vmem>>) attributes {dimension_semantics = [#tpu.dimension_semantics<arbitrary>], iteration_bounds = array<i64: 2>, scalar_prefetch = 0 : i64, scratch_operands = 1 : i64, tpu.core_type = #tpu.core_type<tc>, window_params = [{pipeline_mode = #tpu.pipeline_mode<synchronous>, transform_indices = @transform_0, window_bounds = array<i64: 16, 32>}, {transform_indices = @transform_1, window_bounds = array<i64: 1, 1, 32>}, {transform_indices = @transform_2, window_bounds = array<i64: 1, 1, 32>}, {transform_indices = @transform_3, window_bounds = array<i64: 1, 32, 32>}, {transform_indices = @transform_4, window_bounds = array<i64: 1, 1, 32>}, {transform_indices = @transform_5, window_bounds = array<i64: 1, 32, 32>}, {transform_indices = @transform_6, window_bounds = array<i64: 1, 1, 32>}, {transform_indices = @transform_7, window_bounds = array<i64: 1, 32, 32>}, {transform_indices = @transform_8, window_bounds = array<i64: 1, 1, 32>}, {transform_indices = @transform_9, window_bounds = array<i64: 1, 32, 32>}, {transform_indices = @transform_10, window_bounds = array<i64: 1, 1, 32>}, {transform_indices = @transform_11, window_bounds = array<i64: 1, 1, 32>}, {transform_indices = @transform_12, window_bounds = array<i64: 1, 1, 32>}, {transform_indices = @transform_13, window_bounds = array<i64: 1, 32, 128>}, {transform_indices = @transform_14, window_bounds = array<i64: 1, 1, 128>}, {transform_indices = @transform_15, window_bounds = array<i64: 1, 128, 32>}, {transform_indices = @transform_16, window_bounds = array<i64: 1, 1, 32>}, {pipeline_mode = #tpu.pipeline_mode<synchronous>, transform_indices = @transform_17, window_bounds = array<i64: 16, 32>}]} {
    %c0_i32 = arith.constant 0 : i32
    %0 = arith.cmpi eq, %arg0, %c0_i32 : i32
    %1 = arith.extui %0 : i1 to i32
    %c0_i32_0 = arith.constant 0 : i32
    %2 = arith.cmpi ne, %1, %c0_i32_0 : i32
    scf.if %2 {
      %c0_95 = arith.constant 0 : index
      %c0_96 = arith.constant 0 : index
      %210 = vector.load %arg1[%c0_95, %c0_96] : memref<16x32xf32, #tpu.memory_space<vmem>>, vector<16x32xf32>
      %c0_97 = arith.constant 0 : index
      %c0_98 = arith.constant 0 : index
      %211 = vector.load %arg19[%c0_97, %c0_98] : memref<16x32xf32, #tpu.memory_space<vmem>>, vector<16x32xf32>
      tpu.vector_store %arg19[%c0_97, %c0_98], %210 {strides = array<i32>} : memref<16x32xf32, #tpu.memory_space<vmem>>, vector<16x32xf32>,
    } else {
    }
    %c0 = arith.constant 0 : index
    %c0_1 = arith.constant 0 : index
    %c0_2 = arith.constant 0 : index
    %3 = vector.load %arg2[%c0, %c0_1, %c0_2] : memref<1x1x32xf32, #tpu.memory_space<vmem>>, vector<1x1x32xf32>
    %4 = vector.shape_cast %3 : vector<1x1x32xf32> to vector<1x32xf32>
    %c0_3 = arith.constant 0 : index
    %c0_4 = arith.constant 0 : index
    %c0_5 = arith.constant 0 : index
    %5 = vector.load %arg3[%c0_3, %c0_4, %c0_5] : memref<1x1x32xf32, #tpu.memory_space<vmem>>, vector<1x1x32xf32>
    %6 = vector.shape_cast %5 : vector<1x1x32xf32> to vector<1x32xf32>
    %c0_6 = arith.constant 0 : index
    %c0_7 = arith.constant 0 : index
    %c0_8 = arith.constant 0 : index
    %7 = vector.load %arg4[%c0_6, %c0_7, %c0_8] : memref<1x32x32xf32, #tpu.memory_space<vmem>>, vector<1x32x32xf32>
    %8 = vector.shape_cast %7 : vector<1x32x32xf32> to vector<32x32xf32>
    %c0_9 = arith.constant 0 : index
    %c0_10 = arith.constant 0 : index
    %c0_11 = arith.constant 0 : index
    %9 = vector.load %arg5[%c0_9, %c0_10, %c0_11] : memref<1x1x32xf32, #tpu.memory_space<vmem>>, vector<1x1x32xf32>
    %10 = vector.shape_cast %9 : vector<1x1x32xf32> to vector<1x32xf32>
    %c0_12 = arith.constant 0 : index
    %c0_13 = arith.constant 0 : index
    %c0_14 = arith.constant 0 : index
    %11 = vector.load %arg6[%c0_12, %c0_13, %c0_14] : memref<1x32x32xf32, #tpu.memory_space<vmem>>, vector<1x32x32xf32>
    %12 = vector.shape_cast %11 : vector<1x32x32xf32> to vector<32x32xf32>
    %c0_15 = arith.constant 0 : index
    %c0_16 = arith.constant 0 : index
    %c0_17 = arith.constant 0 : index
    %13 = vector.load %arg7[%c0_15, %c0_16, %c0_17] : memref<1x1x32xf32, #tpu.memory_space<vmem>>, vector<1x1x32xf32>
    %14 = vector.shape_cast %13 : vector<1x1x32xf32> to vector<1x32xf32>
    %c0_18 = arith.constant 0 : index
    %c0_19 = arith.constant 0 : index
    %c0_20 = arith.constant 0 : index
    %15 = vector.load %arg8[%c0_18, %c0_19, %c0_20] : memref<1x32x32xf32, #tpu.memory_space<vmem>>, vector<1x32x32xf32>
    %16 = vector.shape_cast %15 : vector<1x32x32xf32> to vector<32x32xf32>
    %c0_21 = arith.constant 0 : index
    %c0_22 = arith.constant 0 : index
    %c0_23 = arith.constant 0 : index
    %17 = vector.load %arg9[%c0_21, %c0_22, %c0_23] : memref<1x1x32xf32, #tpu.memory_space<vmem>>, vector<1x1x32xf32>
    %18 = vector.shape_cast %17 : vector<1x1x32xf32> to vector<1x32xf32>
    %c0_24 = arith.constant 0 : index
    %c0_25 = arith.constant 0 : index
    %c0_26 = arith.constant 0 : index
    %19 = vector.load %arg10[%c0_24, %c0_25, %c0_26] : memref<1x32x32xf32, #tpu.memory_space<vmem>>, vector<1x32x32xf32>
    %20 = vector.shape_cast %19 : vector<1x32x32xf32> to vector<32x32xf32>
    %c0_27 = arith.constant 0 : index
    %c0_28 = arith.constant 0 : index
    %c0_29 = arith.constant 0 : index
    %21 = vector.load %arg11[%c0_27, %c0_28, %c0_29] : memref<1x1x32xf32, #tpu.memory_space<vmem>>, vector<1x1x32xf32>
    %22 = vector.shape_cast %21 : vector<1x1x32xf32> to vector<1x32xf32>
    %c0_30 = arith.constant 0 : index
    %c0_31 = arith.constant 0 : index
    %c0_32 = arith.constant 0 : index
    %23 = vector.load %arg12[%c0_30, %c0_31, %c0_32] : memref<1x1x32xf32, #tpu.memory_space<vmem>>, vector<1x1x32xf32>
    %24 = vector.shape_cast %23 : vector<1x1x32xf32> to vector<1x32xf32>
    %c0_33 = arith.constant 0 : index
    %c0_34 = arith.constant 0 : index
    %c0_35 = arith.constant 0 : index
    %25 = vector.load %arg13[%c0_33, %c0_34, %c0_35] : memref<1x1x32xf32, #tpu.memory_space<vmem>>, vector<1x1x32xf32>
    %26 = vector.shape_cast %25 : vector<1x1x32xf32> to vector<1x32xf32>
    %c0_36 = arith.constant 0 : index
    %c0_37 = arith.constant 0 : index
    %c0_38 = arith.constant 0 : index
    %27 = vector.load %arg14[%c0_36, %c0_37, %c0_38] : memref<1x32x128xf32, #tpu.memory_space<vmem>>, vector<1x32x128xf32>
    %28 = vector.shape_cast %27 : vector<1x32x128xf32> to vector<32x128xf32>
    %c0_39 = arith.constant 0 : index
    %c0_40 = arith.constant 0 : index
    %c0_41 = arith.constant 0 : index
    %29 = vector.load %arg15[%c0_39, %c0_40, %c0_41] : memref<1x1x128xf32, #tpu.memory_space<vmem>>, vector<1x1x128xf32>
    %30 = vector.shape_cast %29 : vector<1x1x128xf32> to vector<1x128xf32>
    %c0_42 = arith.constant 0 : index
    %c0_43 = arith.constant 0 : index
    %c0_44 = arith.constant 0 : index
    %31 = vector.load %arg16[%c0_42, %c0_43, %c0_44] : memref<1x128x32xf32, #tpu.memory_space<vmem>>, vector<1x128x32xf32>
    %32 = vector.shape_cast %31 : vector<1x128x32xf32> to vector<128x32xf32>
    %c0_45 = arith.constant 0 : index
    %c0_46 = arith.constant 0 : index
    %c0_47 = arith.constant 0 : index
    %33 = vector.load %arg17[%c0_45, %c0_46, %c0_47] : memref<1x1x32xf32, #tpu.memory_space<vmem>>, vector<1x1x32xf32>
    %34 = vector.shape_cast %33 : vector<1x1x32xf32> to vector<1x32xf32>
    %c0_48 = arith.constant 0 : index
    %c0_49 = arith.constant 0 : index
    %35 = vector.load %arg19[%c0_48, %c0_49] : memref<16x32xf32, #tpu.memory_space<vmem>>, vector<16x32xf32>
    %cst = arith.constant dense<0.000000e+00> : vector<16xf32>
    %36 = vector.multi_reduction <add>, %35, %cst [1] : vector<16x32xf32> to vector<16xf32>
    %37 = vector.shape_cast %36 : vector<16xf32> to vector<16x1xf32>
    %cst_50 = arith.constant 3.200000e+01 : f32
    %38 = vector.broadcast %cst_50 : f32 to vector<16x1xf32>
    %39 = arith.divf %37, %38 : vector<16x1xf32>
    %40 = vector.broadcast %39 : vector<16x1xf32> to vector<16x32xf32>
    %41 = arith.subf %35, %40 : vector<16x32xf32>
    %42 = arith.mulf %41, %41 : vector<16x32xf32>
    %cst_51 = arith.constant dense<0.000000e+00> : vector<16xf32>
    %43 = vector.multi_reduction <add>, %42, %cst_51 [1] : vector<16x32xf32> to vector<16xf32>
    %44 = vector.shape_cast %43 : vector<16xf32> to vector<16x1xf32>
    %cst_52 = arith.constant 3.200000e+01 : f32
    %45 = vector.broadcast %cst_52 : f32 to vector<16x1xf32>
    %46 = arith.divf %44, %45 : vector<16x1xf32>
    %47 = vector.broadcast %39 : vector<16x1xf32> to vector<16x32xf32>
    %48 = arith.subf %35, %47 : vector<16x32xf32>
    %cst_53 = arith.constant 9.99999974E-6 : f32
    %49 = vector.broadcast %cst_53 : f32 to vector<16x1xf32>
    %50 = arith.addf %46, %49 : vector<16x1xf32>
    %51 = math.rsqrt %50 : vector<16x1xf32>
    %52 = vector.broadcast %51 : vector<16x1xf32> to vector<16x32xf32>
    %53 = arith.mulf %48, %52 : vector<16x32xf32>
    %54 = vector.broadcast %4 : vector<1x32xf32> to vector<16x32xf32>
    %55 = arith.mulf %53, %54 : vector<16x32xf32>
    %56 = vector.broadcast %6 : vector<1x32xf32> to vector<16x32xf32>
    %57 = arith.addf %55, %56 : vector<16x32xf32>
    %cst_54 = arith.constant dense<0.000000e+00> : vector<16x32xf32>
    %58 = tpu.matmul %57, %8, %cst_54 {dimension_numbers = #tpu.dot_dimension_numbers<[1], [0], [0], [1], [0, 0, 1, 1], [], []>} : vector<16x32xf32>, vector<32x32xf32>, vector<16x32xf32> -> vector<16x32xf32>
    %59 = vector.broadcast %10 : vector<1x32xf32> to vector<16x32xf32>
    %60 = arith.addf %58, %59 : vector<16x32xf32>
    %cst_55 = arith.constant 0.176776692 : f32
    %61 = vector.broadcast %cst_55 : f32 to vector<16x32xf32>
    %62 = arith.mulf %60, %61 : vector<16x32xf32>
    %cst_56 = arith.constant dense<0.000000e+00> : vector<16x32xf32>
    %63 = tpu.matmul %57, %12, %cst_56 {dimension_numbers = #tpu.dot_dimension_numbers<[1], [0], [0], [1], [0, 0, 1, 1], [], []>} : vector<16x32xf32>, vector<32x32xf32>, vector<16x32xf32> -> vector<16x32xf32>
    %64 = vector.broadcast %14 : vector<1x32xf32> to vector<16x32xf32>
    %65 = arith.addf %63, %64 : vector<16x32xf32>
    %cst_57 = arith.constant dense<0.000000e+00> : vector<16x32xf32>
    %66 = tpu.matmul %57, %16, %cst_57 {dimension_numbers = #tpu.dot_dimension_numbers<[1], [0], [0], [1], [0, 0, 1, 1], [], []>} : vector<16x32xf32>, vector<32x32xf32>, vector<16x32xf32> -> vector<16x32xf32>
    %67 = vector.broadcast %18 : vector<1x32xf32> to vector<16x32xf32>
    %68 = arith.addf %66, %67 : vector<16x32xf32>
    %69 = tpu.iota {dimensions = array<i32: 1>} : vector<2x8x8xi32>
    %70 = tpu.iota {dimensions = array<i32: 2>} : vector<2x8x8xi32>
    %71 = arith.cmpi sgt, %70, %69 : vector<2x8x8xi32>
    %cst_58 = arith.constant -1.000000e+30 : f32
    %cst_59 = arith.constant 0.000000e+00 : f32
    %72 = vector.broadcast %cst_58 : f32 to vector<2x8x8xf32>
    %73 = vector.broadcast %cst_59 : f32 to vector<2x8x8xf32>
    %74 = arith.select %71, %72, %73 : vector<2x8x8xi1>, vector<2x8x8xf32>
    %cst_60 = arith.constant 0.000000e+00 : f32
    %75 = vector.broadcast %cst_60 : f32 to vector<16x32xf32>
    %76 = vector.extract_strided_slice %62 {offsets = [0, 0], sizes = [16, 8], strides = [1, 1]} : vector<16x32xf32> to vector<16x8xf32>
    %77 = vector.shape_cast %76 : vector<16x8xf32> to vector<2x8x8xf32>
    %78 = vector.extract_strided_slice %65 {offsets = [0, 0], sizes = [16, 8], strides = [1, 1]} : vector<16x32xf32> to vector<16x8xf32>
    %79 = vector.shape_cast %78 : vector<16x8xf32> to vector<2x8x8xf32>
    %80 = vector.extract_strided_slice %68 {offsets = [0, 0], sizes = [16, 8], strides = [1, 1]} : vector<16x32xf32> to vector<16x8xf32>
    %81 = vector.shape_cast %80 : vector<16x8xf32> to vector<2x8x8xf32>
    "tpu.trace_start"() <{level = 10 : i32, message = "bid,bjd->bij"}> : () -> ()
    %cst_61 = arith.constant dense<0.000000e+00> : vector<2x8x8xf32>
    %82 = tpu.matmul %77, %79, %cst_61 {dimension_numbers = #tpu.dot_dimension_numbers<[2], [2], [1], [1], [0, 0, 0, 1, 1, 1], [0], [0]>} : vector<2x8x8xf32>, vector<2x8x8xf32>, vector<2x8x8xf32> -> vector<2x8x8xf32>
    "tpu.trace_stop"() : () -> ()
    %83 = arith.addf %82, %74 : vector<2x8x8xf32>
    %cst_62 = arith.constant dense<0xFF800000> : vector<2x8xf32>
    %84 = vector.multi_reduction <maximumf>, %83, %cst_62 [2] : vector<2x8x8xf32> to vector<2x8xf32>
    %85 = vector.shape_cast %84 : vector<2x8xf32> to vector<2x8x1xf32>
    %86 = vector.broadcast %85 : vector<2x8x1xf32> to vector<2x8x8xf32>
    %87 = arith.subf %83, %86 : vector<2x8x8xf32>
    %88 = math.exp %87 : vector<2x8x8xf32>
    %cst_63 = arith.constant dense<0.000000e+00> : vector<2x8xf32>
    %89 = vector.multi_reduction <add>, %88, %cst_63 [2] : vector<2x8x8xf32> to vector<2x8xf32>
    %90 = vector.shape_cast %89 : vector<2x8xf32> to vector<2x8x1xf32>
    %91 = tpu.reciprocal %90 {approx = true} : vector<2x8x1xf32> -> vector<2x8x1xf32>
    %92 = vector.broadcast %91 : vector<2x8x1xf32> to vector<2x8x8xf32>
    %93 = arith.mulf %88, %92 : vector<2x8x8xf32>
    "tpu.trace_start"() <{level = 10 : i32, message = "bij,bjd->bid"}> : () -> ()
    %cst_64 = arith.constant dense<0.000000e+00> : vector<2x8x8xf32>
    %94 = tpu.matmul %93, %81, %cst_64 {dimension_numbers = #tpu.dot_dimension_numbers<[2], [1], [1], [2], [0, 0, 0, 1, 1, 2], [0], [0]>} : vector<2x8x8xf32>, vector<2x8x8xf32>, vector<2x8x8xf32> -> vector<2x8x8xf32>
    "tpu.trace_stop"() : () -> ()
    %95 = vector.shape_cast %94 : vector<2x8x8xf32> to vector<16x8xf32>
    %96 = vector.extract_strided_slice %20 {offsets = [0, 0], sizes = [8, 32], strides = [1, 1]} : vector<32x32xf32> to vector<8x32xf32>
    %cst_65 = arith.constant dense<0.000000e+00> : vector<16x32xf32>
    %97 = tpu.matmul %95, %96, %cst_65 {dimension_numbers = #tpu.dot_dimension_numbers<[1], [0], [0], [1], [0, 0, 1, 1], [], []>} : vector<16x8xf32>, vector<8x32xf32>, vector<16x32xf32> -> vector<16x32xf32>
    %98 = arith.addf %75, %97 : vector<16x32xf32>
    %99 = vector.extract_strided_slice %62 {offsets = [0, 8], sizes = [16, 8], strides = [1, 1]} : vector<16x32xf32> to vector<16x8xf32>
    %100 = vector.shape_cast %99 : vector<16x8xf32> to vector<2x8x8xf32>
    %101 = vector.extract_strided_slice %65 {offsets = [0, 8], sizes = [16, 8], strides = [1, 1]} : vector<16x32xf32> to vector<16x8xf32>
    %102 = vector.shape_cast %101 : vector<16x8xf32> to vector<2x8x8xf32>
    %103 = vector.extract_strided_slice %68 {offsets = [0, 8], sizes = [16, 8], strides = [1, 1]} : vector<16x32xf32> to vector<16x8xf32>
    %104 = vector.shape_cast %103 : vector<16x8xf32> to vector<2x8x8xf32>
    "tpu.trace_start"() <{level = 10 : i32, message = "bid,bjd->bij"}> : () -> ()
    %cst_66 = arith.constant dense<0.000000e+00> : vector<2x8x8xf32>
    %105 = tpu.matmul %100, %102, %cst_66 {dimension_numbers = #tpu.dot_dimension_numbers<[2], [2], [1], [1], [0, 0, 0, 1, 1, 1], [0], [0]>} : vector<2x8x8xf32>, vector<2x8x8xf32>, vector<2x8x8xf32> -> vector<2x8x8xf32>
    "tpu.trace_stop"() : () -> ()
    %106 = arith.addf %105, %74 : vector<2x8x8xf32>
    %cst_67 = arith.constant dense<0xFF800000> : vector<2x8xf32>
    %107 = vector.multi_reduction <maximumf>, %106, %cst_67 [2] : vector<2x8x8xf32> to vector<2x8xf32>
    %108 = vector.shape_cast %107 : vector<2x8xf32> to vector<2x8x1xf32>
    %109 = vector.broadcast %108 : vector<2x8x1xf32> to vector<2x8x8xf32>
    %110 = arith.subf %106, %109 : vector<2x8x8xf32>
    %111 = math.exp %110 : vector<2x8x8xf32>
    %cst_68 = arith.constant dense<0.000000e+00> : vector<2x8xf32>
    %112 = vector.multi_reduction <add>, %111, %cst_68 [2] : vector<2x8x8xf32> to vector<2x8xf32>
    %113 = vector.shape_cast %112 : vector<2x8xf32> to vector<2x8x1xf32>
    %114 = tpu.reciprocal %113 {approx = true} : vector<2x8x1xf32> -> vector<2x8x1xf32>
    %115 = vector.broadcast %114 : vector<2x8x1xf32> to vector<2x8x8xf32>
    %116 = arith.mulf %111, %115 : vector<2x8x8xf32>
    "tpu.trace_start"() <{level = 10 : i32, message = "bij,bjd->bid"}> : () -> ()
    %cst_69 = arith.constant dense<0.000000e+00> : vector<2x8x8xf32>
    %117 = tpu.matmul %116, %104, %cst_69 {dimension_numbers = #tpu.dot_dimension_numbers<[2], [1], [1], [2], [0, 0, 0, 1, 1, 2], [0], [0]>} : vector<2x8x8xf32>, vector<2x8x8xf32>, vector<2x8x8xf32> -> vector<2x8x8xf32>
    "tpu.trace_stop"() : () -> ()
    %118 = vector.shape_cast %117 : vector<2x8x8xf32> to vector<16x8xf32>
    %119 = vector.extract_strided_slice %20 {offsets = [8, 0], sizes = [8, 32], strides = [1, 1]} : vector<32x32xf32> to vector<8x32xf32>
    %cst_70 = arith.constant dense<0.000000e+00> : vector<16x32xf32>
    %120 = tpu.matmul %118, %119, %cst_70 {dimension_numbers = #tpu.dot_dimension_numbers<[1], [0], [0], [1], [0, 0, 1, 1], [], []>} : vector<16x8xf32>, vector<8x32xf32>, vector<16x32xf32> -> vector<16x32xf32>
    %121 = arith.addf %98, %120 : vector<16x32xf32>
    %122 = vector.extract_strided_slice %62 {offsets = [0, 16], sizes = [16, 8], strides = [1, 1]} : vector<16x32xf32> to vector<16x8xf32>
    %123 = vector.shape_cast %122 : vector<16x8xf32> to vector<2x8x8xf32>
    %124 = vector.extract_strided_slice %65 {offsets = [0, 16], sizes = [16, 8], strides = [1, 1]} : vector<16x32xf32> to vector<16x8xf32>
    %125 = vector.shape_cast %124 : vector<16x8xf32> to vector<2x8x8xf32>
    %126 = vector.extract_strided_slice %68 {offsets = [0, 16], sizes = [16, 8], strides = [1, 1]} : vector<16x32xf32> to vector<16x8xf32>
    %127 = vector.shape_cast %126 : vector<16x8xf32> to vector<2x8x8xf32>
    "tpu.trace_start"() <{level = 10 : i32, message = "bid,bjd->bij"}> : () -> ()
    %cst_71 = arith.constant dense<0.000000e+00> : vector<2x8x8xf32>
    %128 = tpu.matmul %123, %125, %cst_71 {dimension_numbers = #tpu.dot_dimension_numbers<[2], [2], [1], [1], [0, 0, 0, 1, 1, 1], [0], [0]>} : vector<2x8x8xf32>, vector<2x8x8xf32>, vector<2x8x8xf32> -> vector<2x8x8xf32>
    "tpu.trace_stop"() : () -> ()
    %129 = arith.addf %128, %74 : vector<2x8x8xf32>
    %cst_72 = arith.constant dense<0xFF800000> : vector<2x8xf32>
    %130 = vector.multi_reduction <maximumf>, %129, %cst_72 [2] : vector<2x8x8xf32> to vector<2x8xf32>
    %131 = vector.shape_cast %130 : vector<2x8xf32> to vector<2x8x1xf32>
    %132 = vector.broadcast %131 : vector<2x8x1xf32> to vector<2x8x8xf32>
    %133 = arith.subf %129, %132 : vector<2x8x8xf32>
    %134 = math.exp %133 : vector<2x8x8xf32>
    %cst_73 = arith.constant dense<0.000000e+00> : vector<2x8xf32>
    %135 = vector.multi_reduction <add>, %134, %cst_73 [2] : vector<2x8x8xf32> to vector<2x8xf32>
    %136 = vector.shape_cast %135 : vector<2x8xf32> to vector<2x8x1xf32>
    %137 = tpu.reciprocal %136 {approx = true} : vector<2x8x1xf32> -> vector<2x8x1xf32>
    %138 = vector.broadcast %137 : vector<2x8x1xf32> to vector<2x8x8xf32>
    %139 = arith.mulf %134, %138 : vector<2x8x8xf32>
    "tpu.trace_start"() <{level = 10 : i32, message = "bij,bjd->bid"}> : () -> ()
    %cst_74 = arith.constant dense<0.000000e+00> : vector<2x8x8xf32>
    %140 = tpu.matmul %139, %127, %cst_74 {dimension_numbers = #tpu.dot_dimension_numbers<[2], [1], [1], [2], [0, 0, 0, 1, 1, 2], [0], [0]>} : vector<2x8x8xf32>, vector<2x8x8xf32>, vector<2x8x8xf32> -> vector<2x8x8xf32>
    "tpu.trace_stop"() : () -> ()
    %141 = vector.shape_cast %140 : vector<2x8x8xf32> to vector<16x8xf32>
    %142 = vector.extract_strided_slice %20 {offsets = [16, 0], sizes = [8, 32], strides = [1, 1]} : vector<32x32xf32> to vector<8x32xf32>
    %cst_75 = arith.constant dense<0.000000e+00> : vector<16x32xf32>
    %143 = tpu.matmul %141, %142, %cst_75 {dimension_numbers = #tpu.dot_dimension_numbers<[1], [0], [0], [1], [0, 0, 1, 1], [], []>} : vector<16x8xf32>, vector<8x32xf32>, vector<16x32xf32> -> vector<16x32xf32>
    %144 = arith.addf %121, %143 : vector<16x32xf32>
    %145 = vector.extract_strided_slice %62 {offsets = [0, 24], sizes = [16, 8], strides = [1, 1]} : vector<16x32xf32> to vector<16x8xf32>
    %146 = vector.shape_cast %145 : vector<16x8xf32> to vector<2x8x8xf32>
    %147 = vector.extract_strided_slice %65 {offsets = [0, 24], sizes = [16, 8], strides = [1, 1]} : vector<16x32xf32> to vector<16x8xf32>
    %148 = vector.shape_cast %147 : vector<16x8xf32> to vector<2x8x8xf32>
    %149 = vector.extract_strided_slice %68 {offsets = [0, 24], sizes = [16, 8], strides = [1, 1]} : vector<16x32xf32> to vector<16x8xf32>
    %150 = vector.shape_cast %149 : vector<16x8xf32> to vector<2x8x8xf32>
    "tpu.trace_start"() <{level = 10 : i32, message = "bid,bjd->bij"}> : () -> ()
    %cst_76 = arith.constant dense<0.000000e+00> : vector<2x8x8xf32>
    %151 = tpu.matmul %146, %148, %cst_76 {dimension_numbers = #tpu.dot_dimension_numbers<[2], [2], [1], [1], [0, 0, 0, 1, 1, 1], [0], [0]>} : vector<2x8x8xf32>, vector<2x8x8xf32>, vector<2x8x8xf32> -> vector<2x8x8xf32>
    "tpu.trace_stop"() : () -> ()
    %152 = arith.addf %151, %74 : vector<2x8x8xf32>
    %cst_77 = arith.constant dense<0xFF800000> : vector<2x8xf32>
    %153 = vector.multi_reduction <maximumf>, %152, %cst_77 [2] : vector<2x8x8xf32> to vector<2x8xf32>
    %154 = vector.shape_cast %153 : vector<2x8xf32> to vector<2x8x1xf32>
    %155 = vector.broadcast %154 : vector<2x8x1xf32> to vector<2x8x8xf32>
    %156 = arith.subf %152, %155 : vector<2x8x8xf32>
    %157 = math.exp %156 : vector<2x8x8xf32>
    %cst_78 = arith.constant dense<0.000000e+00> : vector<2x8xf32>
    %158 = vector.multi_reduction <add>, %157, %cst_78 [2] : vector<2x8x8xf32> to vector<2x8xf32>
    %159 = vector.shape_cast %158 : vector<2x8xf32> to vector<2x8x1xf32>
    %160 = tpu.reciprocal %159 {approx = true} : vector<2x8x1xf32> -> vector<2x8x1xf32>
    %161 = vector.broadcast %160 : vector<2x8x1xf32> to vector<2x8x8xf32>
    %162 = arith.mulf %157, %161 : vector<2x8x8xf32>
    "tpu.trace_start"() <{level = 10 : i32, message = "bij,bjd->bid"}> : () -> ()
    %cst_79 = arith.constant dense<0.000000e+00> : vector<2x8x8xf32>
    %163 = tpu.matmul %162, %150, %cst_79 {dimension_numbers = #tpu.dot_dimension_numbers<[2], [1], [1], [2], [0, 0, 0, 1, 1, 2], [0], [0]>} : vector<2x8x8xf32>, vector<2x8x8xf32>, vector<2x8x8xf32> -> vector<2x8x8xf32>
    "tpu.trace_stop"() : () -> ()
    %164 = vector.shape_cast %163 : vector<2x8x8xf32> to vector<16x8xf32>
    %165 = vector.extract_strided_slice %20 {offsets = [24, 0], sizes = [8, 32], strides = [1, 1]} : vector<32x32xf32> to vector<8x32xf32>
    %cst_80 = arith.constant dense<0.000000e+00> : vector<16x32xf32>
    %166 = tpu.matmul %164, %165, %cst_80 {dimension_numbers = #tpu.dot_dimension_numbers<[1], [0], [0], [1], [0, 0, 1, 1], [], []>} : vector<16x8xf32>, vector<8x32xf32>, vector<16x32xf32> -> vector<16x32xf32>
    %167 = arith.addf %144, %166 : vector<16x32xf32>
    %168 = arith.addf %35, %167 : vector<16x32xf32>
    %169 = vector.broadcast %22 : vector<1x32xf32> to vector<16x32xf32>
    %170 = arith.addf %168, %169 : vector<16x32xf32>
    %cst_81 = arith.constant dense<0.000000e+00> : vector<16xf32>
    %171 = vector.multi_reduction <add>, %170, %cst_81 [1] : vector<16x32xf32> to vector<16xf32>
    %172 = vector.shape_cast %171 : vector<16xf32> to vector<16x1xf32>
    %cst_82 = arith.constant 3.200000e+01 : f32
    %173 = vector.broadcast %cst_82 : f32 to vector<16x1xf32>
    %174 = arith.divf %172, %173 : vector<16x1xf32>
    %175 = vector.broadcast %174 : vector<16x1xf32> to vector<16x32xf32>
    %176 = arith.subf %170, %175 : vector<16x32xf32>
    %177 = arith.mulf %176, %176 : vector<16x32xf32>
    %cst_83 = arith.constant dense<0.000000e+00> : vector<16xf32>
    %178 = vector.multi_reduction <add>, %177, %cst_83 [1] : vector<16x32xf32> to vector<16xf32>
    %179 = vector.shape_cast %178 : vector<16xf32> to vector<16x1xf32>
    %cst_84 = arith.constant 3.200000e+01 : f32
    %180 = vector.broadcast %cst_84 : f32 to vector<16x1xf32>
    %181 = arith.divf %179, %180 : vector<16x1xf32>
    %182 = vector.broadcast %174 : vector<16x1xf32> to vector<16x32xf32>
    %183 = arith.subf %170, %182 : vector<16x32xf32>
    %cst_85 = arith.constant 9.99999974E-6 : f32
    %184 = vector.broadcast %cst_85 : f32 to vector<16x1xf32>
    %185 = arith.addf %181, %184 : vector<16x1xf32>
    %186 = math.rsqrt %185 : vector<16x1xf32>
    %187 = vector.broadcast %186 : vector<16x1xf32> to vector<16x32xf32>
    %188 = arith.mulf %183, %187 : vector<16x32xf32>
    %189 = vector.broadcast %24 : vector<1x32xf32> to vector<16x32xf32>
    %190 = arith.mulf %188, %189 : vector<16x32xf32>
    %191 = vector.broadcast %26 : vector<1x32xf32> to vector<16x32xf32>
    %192 = arith.addf %190, %191 : vector<16x32xf32>
    %cst_86 = arith.constant dense<0.000000e+00> : vector<16x128xf32>
    %193 = tpu.matmul %192, %28, %cst_86 {dimension_numbers = #tpu.dot_dimension_numbers<[1], [0], [0], [1], [0, 0, 1, 1], [], []>} : vector<16x32xf32>, vector<32x128xf32>, vector<16x128xf32> -> vector<16x128xf32>
    %194 = vector.broadcast %30 : vector<1x128xf32> to vector<16x128xf32>
    %195 = arith.addf %193, %194 : vector<16x128xf32>
    %cst_87 = arith.constant 5.000000e-01 : f32
    %196 = vector.broadcast %cst_87 : f32 to vector<16x128xf32>
    %197 = arith.mulf %196, %195 : vector<16x128xf32>
    %cst_88 = arith.constant 0.707106769 : f32
    %198 = vector.broadcast %cst_88 : f32 to vector<16x128xf32>
    %199 = arith.mulf %195, %198 : vector<16x128xf32>
    %200 = math.erf %199 : vector<16x128xf32>
    %cst_89 = arith.constant 1.000000e+00 : f32
    %201 = vector.broadcast %cst_89 : f32 to vector<16x128xf32>
    %202 = arith.addf %201, %200 : vector<16x128xf32>
    %203 = arith.mulf %197, %202 : vector<16x128xf32>
    %cst_90 = arith.constant dense<0.000000e+00> : vector<16x32xf32>
    %204 = tpu.matmul %203, %32, %cst_90 {dimension_numbers = #tpu.dot_dimension_numbers<[1], [0], [0], [1], [0, 0, 1, 1], [], []>} : vector<16x128xf32>, vector<128x32xf32>, vector<16x32xf32> -> vector<16x32xf32>
    %205 = vector.broadcast %34 : vector<1x32xf32> to vector<16x32xf32>
    %206 = arith.addf %204, %205 : vector<16x32xf32>
    %207 = arith.addf %170, %206 : vector<16x32xf32>
    %c0_91 = arith.constant 0 : index
    %c0_92 = arith.constant 0 : index
    %208 = vector.load %arg19[%c0_91, %c0_92] : memref<16x32xf32, #tpu.memory_space<vmem>>, vector<16x32xf32>
    tpu.vector_store %arg19[%c0_91, %c0_92], %207 {strides = array<i32>} : memref<16x32xf32, #tpu.memory_space<vmem>>, vector<16x32xf32>,
    %c0_93 = arith.constant 0 : index
    %c0_94 = arith.constant 0 : index
    %209 = vector.load %arg18[%c0_93, %c0_94] : memref<16x32xf32, #tpu.memory_space<vmem>>, vector<16x32xf32>
    tpu.vector_store %arg18[%c0_93, %c0_94], %207 {strides = array<i32>} : memref<16x32xf32, #tpu.memory_space<vmem>>, vector<16x32xf32>,
    return
  }
  func.func @transform_0(%arg0: i32) -> (i32, i32) {
    %c0_i32 = arith.constant 0 : i32
    %c0_i32_0 = arith.constant 0 : i32
    %c0_i32_1 = arith.constant 0 : i32
    return %c0_i32, %c0_i32_0 : i32, i32
  }
  func.func @transform_1(%arg0: i32) -> (i32, i32, i32) {
    %c0_i32 = arith.constant 0 : i32
    %c0_i32_0 = arith.constant 0 : i32
    %c0_i32_1 = arith.constant 0 : i32
    return %arg0, %c0_i32, %c0_i32_0 : i32, i32, i32
  }
  func.func @transform_2(%arg0: i32) -> (i32, i32, i32) {
    %c0_i32 = arith.constant 0 : i32
    %c0_i32_0 = arith.constant 0 : i32
    %c0_i32_1 = arith.constant 0 : i32
    return %arg0, %c0_i32, %c0_i32_0 : i32, i32, i32
  }
  func.func @transform_3(%arg0: i32) -> (i32, i32, i32) {
    %c0_i32 = arith.constant 0 : i32
    %c0_i32_0 = arith.constant 0 : i32
    %c0_i32_1 = arith.constant 0 : i32
    return %arg0, %c0_i32, %c0_i32_0 : i32, i32, i32
  }
  func.func @transform_4(%arg0: i32) -> (i32, i32, i32) {
    %c0_i32 = arith.constant 0 : i32
    %c0_i32_0 = arith.constant 0 : i32
    %c0_i32_1 = arith.constant 0 : i32
    return %arg0, %c0_i32, %c0_i32_0 : i32, i32, i32
  }
  func.func @transform_5(%arg0: i32) -> (i32, i32, i32) {
    %c0_i32 = arith.constant 0 : i32
    %c0_i32_0 = arith.constant 0 : i32
    %c0_i32_1 = arith.constant 0 : i32
    return %arg0, %c0_i32, %c0_i32_0 : i32, i32, i32
  }
  func.func @transform_6(%arg0: i32) -> (i32, i32, i32) {
    %c0_i32 = arith.constant 0 : i32
    %c0_i32_0 = arith.constant 0 : i32
    %c0_i32_1 = arith.constant 0 : i32
    return %arg0, %c0_i32, %c0_i32_0 : i32, i32, i32
  }
  func.func @transform_7(%arg0: i32) -> (i32, i32, i32) {
    %c0_i32 = arith.constant 0 : i32
    %c0_i32_0 = arith.constant 0 : i32
    %c0_i32_1 = arith.constant 0 : i32
    return %arg0, %c0_i32, %c0_i32_0 : i32, i32, i32
  }
  func.func @transform_8(%arg0: i32) -> (i32, i32, i32) {
    %c0_i32 = arith.constant 0 : i32
    %c0_i32_0 = arith.constant 0 : i32
    %c0_i32_1 = arith.constant 0 : i32
    return %arg0, %c0_i32, %c0_i32_0 : i32, i32, i32
  }
  func.func @transform_9(%arg0: i32) -> (i32, i32, i32) {
    %c0_i32 = arith.constant 0 : i32
    %c0_i32_0 = arith.constant 0 : i32
    %c0_i32_1 = arith.constant 0 : i32
    return %arg0, %c0_i32, %c0_i32_0 : i32, i32, i32
  }
  func.func @transform_10(%arg0: i32) -> (i32, i32, i32) {
    %c0_i32 = arith.constant 0 : i32
    %c0_i32_0 = arith.constant 0 : i32
    %c0_i32_1 = arith.constant 0 : i32
    return %arg0, %c0_i32, %c0_i32_0 : i32, i32, i32
  }
  func.func @transform_11(%arg0: i32) -> (i32, i32, i32) {
    %c0_i32 = arith.constant 0 : i32
    %c0_i32_0 = arith.constant 0 : i32
    %c0_i32_1 = arith.constant 0 : i32
    return %arg0, %c0_i32, %c0_i32_0 : i32, i32, i32
  }
  func.func @transform_12(%arg0: i32) -> (i32, i32, i32) {
    %c0_i32 = arith.constant 0 : i32
    %c0_i32_0 = arith.constant 0 : i32
    %c0_i32_1 = arith.constant 0 : i32
    return %arg0, %c0_i32, %c0_i32_0 : i32, i32, i32
  }
  func.func @transform_13(%arg0: i32) -> (i32, i32, i32) {
    %c0_i32 = arith.constant 0 : i32
    %c0_i32_0 = arith.constant 0 : i32
    %c0_i32_1 = arith.constant 0 : i32
    return %arg0, %c0_i32, %c0_i32_0 : i32, i32, i32
  }
  func.func @transform_14(%arg0: i32) -> (i32, i32, i32) {
    %c0_i32 = arith.constant 0 : i32
    %c0_i32_0 = arith.constant 0 : i32
    %c0_i32_1 = arith.constant 0 : i32
    return %arg0, %c0_i32, %c0_i32_0 : i32, i32, i32
  }
  func.func @transform_15(%arg0: i32) -> (i32, i32, i32) {
    %c0_i32 = arith.constant 0 : i32
    %c0_i32_0 = arith.constant 0 : i32
    %c0_i32_1 = arith.constant 0 : i32
    return %arg0, %c0_i32, %c0_i32_0 : i32, i32, i32
  }
  func.func @transform_16(%arg0: i32) -> (i32, i32, i32) {
    %c0_i32 = arith.constant 0 : i32
    %c0_i32_0 = arith.constant 0 : i32
    %c0_i32_1 = arith.constant 0 : i32
    return %arg0, %c0_i32, %c0_i32_0 : i32, i32, i32
  }
  func.func @transform_17(%arg0: i32) -> (i32, i32) {
    %c0_i32 = arith.constant 0 : i32
    %c0_i32_0 = arith.constant 0 : i32
    %c0_i32_1 = arith.constant 0 : i32
    return %c0_i32, %c0_i32_0 : i32, i32
  }
}

</mosaic_0001>

<llo_original>
// kernel: tpu_custom_call.1
$region0: #{tpu_custom_call.1}
  #allocation0 [shape = 'u32[]', space=smem, size = 0x4, offset = 0x4, fixed_abs, tag = 'smem constant byte address 0x4 - core index']
  #allocation1 [shape = 'u32[144,128]{1,0:T(1,128)}', space=vmem, size = 0x12000, scoped, tag = 'internal scratch']
  #allocation2 [shape = 'f32[16,32]{1,0:T(8,128)}', space=vmem, size = 0x2000, scoped, tag = 'scratch operand']
  %s0 = inlined_call_operand.hbm [shape: f32[16,32], index: 0, kind: input, shape index: {}]
  %s1 = inlined_call_operand.hbm [shape: f32[2,1,32], index: 1, kind: input, shape index: {}]
  %s2 = inlined_call_operand.hbm [shape: f32[2,1,32], index: 2, kind: input, shape index: {}]
  %s3 = inlined_call_operand.hbm [shape: f32[2,32,32], index: 3, kind: input, shape index: {}]
  %s4 = inlined_call_operand.hbm [shape: f32[2,1,32], index: 4, kind: input, shape index: {}]
  %s5 = inlined_call_operand.hbm [shape: f32[2,32,32], index: 5, kind: input, shape index: {}]
  %s6 = inlined_call_operand.hbm [shape: f32[2,1,32], index: 6, kind: input, shape index: {}]
  %s7 = inlined_call_operand.hbm [shape: f32[2,32,32], index: 7, kind: input, shape index: {}]
  %s8 = inlined_call_operand.hbm [shape: f32[2,1,32], index: 8, kind: input, shape index: {}]
  %s9 = inlined_call_operand.hbm [shape: f32[2,32,32], index: 9, kind: input, shape index: {}]
  %s10 = inlined_call_operand.hbm [shape: f32[2,1,32], index: 10, kind: input, shape index: {}]
  %s11 = inlined_call_operand.hbm [shape: f32[2,1,32], index: 11, kind: input, shape index: {}]
  %s12 = inlined_call_operand.hbm [shape: f32[2,1,32], index: 12, kind: input, shape index: {}]
  %s13 = inlined_call_operand.hbm [shape: f32[2,32,128], index: 13, kind: input, shape index: {}]
  %s14 = inlined_call_operand.hbm [shape: f32[2,1,128], index: 14, kind: input, shape index: {}]
  %s15 = inlined_call_operand.hbm [shape: f32[2,128,32], index: 15, kind: input, shape index: {}]
  %s16 = inlined_call_operand.hbm [shape: f32[2,1,32], index: 16, kind: input, shape index: {}]
  %s17 = inlined_call_operand.hbm [shape: f32[16,32], index: 17, kind: output, shape index: {}]
  %s18 = sld [smem:[#allocation0]]
  $region173: #{tpu_custom_call.1} parent=0
    _
  %s20 = ssub.s32 1, %s18
  %s21 = scalar_select 0, %s20, %s18
  $region1: #{tpu_custom_call.1} parent=0
    #allocation3 [shape = 'u8[8192]{0}', space=vmem, size = 0x2000, scoped, tag = 'input window, operand 0, single buffered']
    #allocation4 [shape = 's32[2]{0}', space=sflag, size = 0x8, scoped, tag = 'scoped memory for tpu_custom_call.1']
    #allocation5 [shape = 's32[2]{0}', space=sflag, size = 0x8, scoped, tag = 'scoped memory for tpu_custom_call.1']
    #allocation6 [shape = 'u8[1024]{0}', space=vmem, size = 0x400, scoped, tag = 'input window, operand 1']
    #allocation7 [shape = 's32[2]{0}', space=sflag, size = 0x8, scoped, tag = 'scoped memory for tpu_custom_call.1']
    #allocation8 [shape = 'u8[1024]{0}', space=vmem, size = 0x400, scoped, tag = 'input window, operand 2']
    #allocation9 [shape = 'u8[32768]{0}', space=vmem, size = 0x8000, scoped, tag = 'input window, operand 3']
    #allocation10 [shape = 's32[2]{0}', space=sflag, size = 0x8, scoped, tag = 'scoped memory for tpu_custom_call.1']
    #allocation11 [shape = 'u8[1024]{0}', space=vmem, size = 0x400, scoped, tag = 'input window, operand 4']
    #allocation12 [shape = 'u8[32768]{0}', space=vmem, size = 0x8000, scoped, tag = 'input window, operand 5']
    #allocation13 [shape = 's32[2]{0}', space=sflag, size = 0x8, scoped, tag = 'scoped memory for tpu_custom_call.1']
    #allocation14 [shape = 'u8[1024]{0}', space=vmem, size = 0x400, scoped, tag = 'input window, operand 6']
    #allocation15 [shape = 'u8[32768]{0}', space=vmem, size = 0x8000, scoped, tag = 'input window, operand 7']
    #allocation16 [shape = 's32[2]{0}', space=sflag, size = 0x8, scoped, tag = 'scoped memory for tpu_custom_call.1']
    #allocation17 [shape = 'u8[1024]{0}', space=vmem, size = 0x400, scoped, tag = 'input window, operand 8']
    #allocation18 [shape = 'u8[32768]{0}', space=vmem, size = 0x8000, scoped, tag = 'input window, operand 9']
    #allocation19 [shape = 's32[2]{0}', space=sflag, size = 0x8, scoped, tag = 'scoped memory for tpu_custom_call.1']
    #allocation20 [shape = 'u8[1024]{0}', space=vmem, size = 0x400, scoped, tag = 'input window, operand 10']
    #allocation21 [shape = 'u8[1024]{0}', space=vmem, size = 0x400, scoped, tag = 'input window, operand 11']
    #allocation22 [shape = 's32[2]{0}', space=sflag, size = 0x8, scoped, tag = 'scoped memory for tpu_custom_call.1']
    #allocation23 [shape = 'u8[1024]{0}', space=vmem, size = 0x400, scoped, tag = 'input window, operand 12']
    #allocation24 [shape = 'u8[32768]{0}', space=vmem, size = 0x8000, scoped, tag = 'input window, operand 13']
    #allocation25 [shape = 's32[2]{0}', space=sflag, size = 0x8, scoped, tag = 'scoped memory for tpu_custom_call.1']
    #allocation26 [shape = 'u8[1024]{0}', space=vmem, size = 0x400, scoped, tag = 'input window, operand 14']
    #allocation27 [shape = 'u8[131072]{0}', space=vmem, size = 0x20000, scoped, tag = 'input window, operand 15']
    #allocation28 [shape = 's32[2]{0}', space=sflag, size = 0x8, scoped, tag = 'scoped memory for tpu_custom_call.1']
    #allocation29 [shape = 'u8[1024]{0}', space=vmem, size = 0x400, scoped, tag = 'input window, operand 16']
    #allocation30 [shape = 'u8[8192]{0}', space=vmem, size = 0x2000, scoped, tag = 'output window, operand 0, single buffered']
    %22 = vsyncpa [#allocation4], 0
    %23 = vsyncpa [#allocation7], 0
    %s24 = scalar_lea.sflag [#allocation7], 1
    %25 = vsyncpa %s24, 0
    %26 = vsyncpa [#allocation10], 0
    %s27 = scalar_lea.sflag [#allocation10], 1
    %28 = vsyncpa %s27, 0
    %29 = vsyncpa [#allocation13], 0
    %s30 = scalar_lea.sflag [#allocation13], 1
    %31 = vsyncpa %s30, 0
    %32 = vsyncpa [#allocation16], 0
    %s33 = scalar_lea.sflag [#allocation16], 1
    %34 = vsyncpa %s33, 0
    %35 = vsyncpa [#allocation19], 0
    %s36 = scalar_lea.sflag [#allocation19], 1
    %37 = vsyncpa %s36, 0
    %38 = vsyncpa [#allocation22], 0
    %s39 = scalar_lea.sflag [#allocation22], 1
    %40 = vsyncpa %s39, 0
    %41 = vsyncpa [#allocation25], 0
    %s42 = scalar_lea.sflag [#allocation25], 1
    %43 = vsyncpa %s42, 0
    %44 = vsyncpa [#allocation28], 0
    %s45 = scalar_lea.sflag [#allocation28], 1
    %46 = vsyncpa %s45, 0
    %47 = vsyncpa [#allocation5], 0
    loop: start=0, step=1, limit=4
    $region2: #{tpu_custom_call.1} parent=1 // loop_pre_header
      _
    $region3: #{tpu_custom_call.1} parent=1 // loop_header
      %s49 = sphi 0, %s53
      %p50 = scmp.ge.s32.totalorder %s49, 4
      %s57 = sphi 0, %s57
      %s59 = sphi 0, %s57
      %s60 = sphi 0, %s59
      %s74 = sphi 0, %s60
      %s80 = sphi 0, %s82
      %s83 = sphi 0, %s80
      %s84 = sphi 0, %s83
      %s100 = sphi 0, %s84
      %s106 = sphi 0, %s108
      %s109 = sphi 0, %s106
      %s110 = sphi 0, %s109
      %s126 = sphi 0, %s110
      %s132 = sphi 0, %s134
      %s135 = sphi 0, %s132
      %s136 = sphi 0, %s135
      %s152 = sphi 0, %s136
      %s158 = sphi 0, %s160
      %s161 = sphi 0, %s158
      %s162 = sphi 0, %s161
      %s178 = sphi 0, %s162
      %s184 = sphi 0, %s186
      %s187 = sphi 0, %s184
      %s188 = sphi 0, %s187
      %s204 = sphi 0, %s188
      %s210 = sphi 0, %s212
      %s213 = sphi 0, %s210
      %s214 = sphi 0, %s213
      %s230 = sphi 0, %s214
      %s236 = sphi 0, %s238
      %s239 = sphi 0, %s236
      %s240 = sphi 0, %s239
      %s256 = sphi 0, %s240
      %s262 = sphi 0, %s264
      %s265 = sphi 0, %s262
      %s266 = sphi 0, %s265
      %s282 = sphi 0, %s266
      %s288 = sphi 0, %s290
      %s291 = sphi 0, %s288
      %s292 = sphi 0, %s291
      %s308 = sphi 0, %s292
      %s314 = sphi 0, %s316
      %s317 = sphi 0, %s314
      %s318 = sphi 0, %s317
      %s334 = sphi 0, %s318
      %s340 = sphi 0, %s342
      %s343 = sphi 0, %s340
      %s344 = sphi 0, %s343
      %s360 = sphi 0, %s344
      %s366 = sphi 0, %s368
      %s369 = sphi 0, %s366
      %s370 = sphi 0, %s369
      %s386 = sphi 0, %s370
      %s392 = sphi 0, %s394
      %s395 = sphi 0, %s392
      %s396 = sphi 0, %s395
      %s412 = sphi 0, %s396
      %s418 = sphi 0, %s420
      %s421 = sphi 0, %s418
      %s422 = sphi 0, %s421
      %s438 = sphi 0, %s422
      %s444 = sphi 0, %s446
      %s447 = sphi 0, %s444
      %s448 = sphi 0, %s447
      %s464 = sphi 0, %s448
      %s470 = sphi 0, %s472
      %s473 = sphi 0, %s470
      %s474 = sphi 0, %s473
      %s490 = sphi 0, %s474
      %s494 = sphi 0, %s494
      %s496 = sphi 0, %s494
      %s497 = sphi 0, %s496
      %s511 = sphi 0, %s497
    $region4: #{tpu_custom_call.1} parent=1 // loop_header_branch
      %52 = sbr.rel (%p50) target = $region8
    $region5: #{tpu_custom_call.1} parent=1 // loop_body
      %s54 = ssub.s32 %s49, 1
      %s55 = ssub.s32 %s49, 2
      %s56 = sadd.s32 %s49, 1
      %s58 = sadd.s32 %s57, 1
      %p61 = scmp.eq.s32.totalorder %s49, 1
      %p62 = scmp.ne.s32.totalorder %s57, %s59
      %p63 = scmp.eq.s32.totalorder %s49, 0
      %p64 = por %p62, %p63
      %p65 = scmp.ne.s32.totalorder %s57, %s59
      %p66 = scmp.eq.s32.totalorder %s54, 1
      %p67 = por %p65, %p66
      %p68 = scmp.ne.s32.totalorder %s59, %s60
      %p69 = scmp.eq.s32.totalorder %s54, 0
      %p70 = por %p68, %p69
      %p71 = scmp.ne.s32.totalorder %s59, %s60
      %p72 = scmp.eq.s32.totalorder %s55, 1
      %p73 = por %p71, %p72
      %p75 = scmp.ne.s32.totalorder %s60, %s74
      %p76 = scmp.eq.s32.totalorder %s55, 0
      %p77 = por %p75, %p76
      %s78 = ssub.s32 %s49, %s56
      %p79 = scmp.eq.s32.totalorder %s78, 0
      %s81 = sadd.s32 %s80, 1
      %s82 = scalar_select %p79, %s80, %s81
      %p85 = pneg %p79
      %p86 = scmp.eq.s32.totalorder %s49, 1
      %p87 = por %p85, %p86
      %p88 = scmp.ne.s32.totalorder %s80, %s83
      %p89 = scmp.eq.s32.totalorder %s49, 0
      %p90 = por %p88, %p89
      %p91 = scmp.ne.s32.totalorder %s80, %s83
      %p92 = scmp.eq.s32.totalorder %s54, 1
      %p93 = por %p91, %p92
      %p94 = scmp.ne.s32.totalorder %s83, %s84
      %p95 = scmp.eq.s32.totalorder %s54, 0
      %p96 = por %p94, %p95
      %p97 = scmp.ne.s32.totalorder %s83, %s84
      %p98 = scmp.eq.s32.totalorder %s55, 1
      %p99 = por %p97, %p98
      %p101 = scmp.ne.s32.totalorder %s84, %s100
      %p102 = scmp.eq.s32.totalorder %s55, 0
      %p103 = por %p101, %p102
      %s104 = ssub.s32 %s49, %s56
      %p105 = scmp.eq.s32.totalorder %s104, 0
      %s107 = sadd.s32 %s106, 1
      %s108 = scalar_select %p105, %s106, %s107
      %p111 = pneg %p105
      %p112 = scmp.eq.s32.totalorder %s49, 1
      %p113 = por %p111, %p112
      %p114 = scmp.ne.s32.totalorder %s106, %s109
      %p115 = scmp.eq.s32.totalorder %s49, 0
      %p116 = por %p114, %p115
      %p117 = scmp.ne.s32.totalorder %s106, %s109
      %p118 = scmp.eq.s32.totalorder %s54, 1
      %p119 = por %p117, %p118
      %p120 = scmp.ne.s32.totalorder %s109, %s110
      %p121 = scmp.eq.s32.totalorder %s54, 0
      %p122 = por %p120, %p121
      %p123 = scmp.ne.s32.totalorder %s109, %s110
      %p124 = scmp.eq.s32.totalorder %s55, 1
      %p125 = por %p123, %p124
      %p127 = scmp.ne.s32.totalorder %s110, %s126
      %p128 = scmp.eq.s32.totalorder %s55, 0
      %p129 = por %p127, %p128
      %s130 = ssub.s32 %s49, %s56
      %p131 = scmp.eq.s32.totalorder %s130, 0
      %s133 = sadd.s32 %s132, 1
      %s134 = scalar_select %p131, %s132, %s133
      %p137 = pneg %p131
      %p138 = scmp.eq.s32.totalorder %s49, 1
      %p139 = por %p137, %p138
      %p140 = scmp.ne.s32.totalorder %s132, %s135
      %p141 = scmp.eq.s32.totalorder %s49, 0
      %p142 = por %p140, %p141
      %p143 = scmp.ne.s32.totalorder %s132, %s135
      %p144 = scmp.eq.s32.totalorder %s54, 1
      %p145 = por %p143, %p144
      %p146 = scmp.ne.s32.totalorder %s135, %s136
      %p147 = scmp.eq.s32.totalorder %s54, 0
      %p148 = por %p146, %p147
      %p149 = scmp.ne.s32.totalorder %s135, %s136
      %p150 = scmp.eq.s32.totalorder %s55, 1
      %p151 = por %p149, %p150
      %p153 = scmp.ne.s32.totalorder %s136, %s152
      %p154 = scmp.eq.s32.totalorder %s55, 0
      %p155 = por %p153, %p154
      %s156 = ssub.s32 %s49, %s56
      %p157 = scmp.eq.s32.totalorder %s156, 0
      %s159 = sadd.s32 %s158, 1
      %s160 = scalar_select %p157, %s158, %s159
      %p163 = pneg %p157
      %p164 = scmp.eq.s32.totalorder %s49, 1
      %p165 = por %p163, %p164
      %p166 = scmp.ne.s32.totalorder %s158, %s161
      %p167 = scmp.eq.s32.totalorder %s49, 0
      %p168 = por %p166, %p167
      %p169 = scmp.ne.s32.totalorder %s158, %s161
      %p170 = scmp.eq.s32.totalorder %s54, 1
      %p171 = por %p169, %p170
      %p172 = scmp.ne.s32.totalorder %s161, %s162
      %p173 = scmp.eq.s32.totalorder %s54, 0
      %p174 = por %p172, %p173
      %p175 = scmp.ne.s32.totalorder %s161, %s162
      %p176 = scmp.eq.s32.totalorder %s55, 1
      %p177 = por %p175, %p176
      %p179 = scmp.ne.s32.totalorder %s162, %s178
      %p180 = scmp.eq.s32.totalorder %s55, 0
      %p181 = por %p179, %p180
      %s182 = ssub.s32 %s49, %s56
      %p183 = scmp.eq.s32.totalorder %s182, 0
      %s185 = sadd.s32 %s184, 1
      %s186 = scalar_select %p183, %s184, %s185
      %p189 = pneg %p183
      %p190 = scmp.eq.s32.totalorder %s49, 1
      %p191 = por %p189, %p190
      %p192 = scmp.ne.s32.totalorder %s184, %s187
      %p193 = scmp.eq.s32.totalorder %s49, 0
      %p194 = por %p192, %p193
      %p195 = scmp.ne.s32.totalorder %s184, %s187
      %p196 = scmp.eq.s32.totalorder %s54, 1
      %p197 = por %p195, %p196
      %p198 = scmp.ne.s32.totalorder %s187, %s188
      %p199 = scmp.eq.s32.totalorder %s54, 0
      %p200 = por %p198, %p199
      %p201 = scmp.ne.s32.totalorder %s187, %s188
      %p202 = scmp.eq.s32.totalorder %s55, 1
      %p203 = por %p201, %p202
      %p205 = scmp.ne.s32.totalorder %s188, %s204
      %p206 = scmp.eq.s32.totalorder %s55, 0
      %p207 = por %p205, %p206
      %s208 = ssub.s32 %s49, %s56
      %p209 = scmp.eq.s32.totalorder %s208, 0
      %s211 = sadd.s32 %s210, 1
      %s212 = scalar_select %p209, %s210, %s211
      %p215 = pneg %p209
      %p216 = scmp.eq.s32.totalorder %s49, 1
      %p217 = por %p215, %p216
      %p218 = scmp.ne.s32.totalorder %s210, %s213
      %p219 = scmp.eq.s32.totalorder %s49, 0
      %p220 = por %p218, %p219
      %p221 = scmp.ne.s32.totalorder %s210, %s213
      %p222 = scmp.eq.s32.totalorder %s54, 1
      %p223 = por %p221, %p222
      %p224 = scmp.ne.s32.totalorder %s213, %s214
      %p225 = scmp.eq.s32.totalorder %s54, 0
      %p226 = por %p224, %p225
      %p227 = scmp.ne.s32.totalorder %s213, %s214
      %p228 = scmp.eq.s32.totalorder %s55, 1
      %p229 = por %p227, %p228
      %p231 = scmp.ne.s32.totalorder %s214, %s230
      %p232 = scmp.eq.s32.totalorder %s55, 0
      %p233 = por %p231, %p232
      %s234 = ssub.s32 %s49, %s56
      %p235 = scmp.eq.s32.totalorder %s234, 0
      %s237 = sadd.s32 %s236, 1
      %s238 = scalar_select %p235, %s236, %s237
      %p241 = pneg %p235
      %p242 = scmp.eq.s32.totalorder %s49, 1
      %p243 = por %p241, %p242
      %p244 = scmp.ne.s32.totalorder %s236, %s239
      %p245 = scmp.eq.s32.totalorder %s49, 0
      %p246 = por %p244, %p245
      %p247 = scmp.ne.s32.totalorder %s236, %s239
      %p248 = scmp.eq.s32.totalorder %s54, 1
      %p249 = por %p247, %p248
      %p250 = scmp.ne.s32.totalorder %s239, %s240
      %p251 = scmp.eq.s32.totalorder %s54, 0
      %p252 = por %p250, %p251
      %p253 = scmp.ne.s32.totalorder %s239, %s240
      %p254 = scmp.eq.s32.totalorder %s55, 1
      %p255 = por %p253, %p254
      %p257 = scmp.ne.s32.totalorder %s240, %s256
      %p258 = scmp.eq.s32.totalorder %s55, 0
      %p259 = por %p257, %p258
      %s260 = ssub.s32 %s49, %s56
      %p261 = scmp.eq.s32.totalorder %s260, 0
      %s263 = sadd.s32 %s262, 1
      %s264 = scalar_select %p261, %s262, %s263
      %p267 = pneg %p261
      %p268 = scmp.eq.s32.totalorder %s49, 1
      %p269 = por %p267, %p268
      %p270 = scmp.ne.s32.totalorder %s262, %s265
      %p271 = scmp.eq.s32.totalorder %s49, 0
      %p272 = por %p270, %p271
      %p273 = scmp.ne.s32.totalorder %s262, %s265
      %p274 = scmp.eq.s32.totalorder %s54, 1
      %p275 = por %p273, %p274
      %p276 = scmp.ne.s32.totalorder %s265, %s266
      %p277 = scmp.eq.s32.totalorder %s54, 0
      %p278 = por %p276, %p277
      %p279 = scmp.ne.s32.totalorder %s265, %s266
      %p280 = scmp.eq.s32.totalorder %s55, 1
      %p281 = por %p279, %p280
      %p283 = scmp.ne.s32.totalorder %s266, %s282
      %p284 = scmp.eq.s32.totalorder %s55, 0
      %p285 = por %p283, %p284
      %s286 = ssub.s32 %s49, %s56
      %p287 = scmp.eq.s32.totalorder %s286, 0
      %s289 = sadd.s32 %s288, 1
      %s290 = scalar_select %p287, %s288, %s289
      %p293 = pneg %p287
      %p294 = scmp.eq.s32.totalorder %s49, 1
      %p295 = por %p293, %p294
      %p296 = scmp.ne.s32.totalorder %s288, %s291
      %p297 = scmp.eq.s32.totalorder %s49, 0
      %p298 = por %p296, %p297
      %p299 = scmp.ne.s32.totalorder %s288, %s291
      %p300 = scmp.eq.s32.totalorder %s54, 1
      %p301 = por %p299, %p300
      %p302 = scmp.ne.s32.totalorder %s291, %s292
      %p303 = scmp.eq.s32.totalorder %s54, 0
      %p304 = por %p302, %p303
      %p305 = scmp.ne.s32.totalorder %s291, %s292
      %p306 = scmp.eq.s32.totalorder %s55, 1
      %p307 = por %p305, %p306
      %p309 = scmp.ne.s32.totalorder %s292, %s308
      %p310 = scmp.eq.s32.totalorder %s55, 0
      %p311 = por %p309, %p310
      %s312 = ssub.s32 %s49, %s56
      %p313 = scmp.eq.s32.totalorder %s312, 0
      %s315 = sadd.s32 %s314, 1
      %s316 = scalar_select %p313, %s314, %s315
      %p319 = pneg %p313
      %p320 = scmp.eq.s32.totalorder %s49, 1
      %p321 = por %p319, %p320
      %p322 = scmp.ne.s32.totalorder %s314, %s317
      %p323 = scmp.eq.s32.totalorder %s49, 0
      %p324 = por %p322, %p323
      %p325 = scmp.ne.s32.totalorder %s314, %s317
      %p326 = scmp.eq.s32.totalorder %s54, 1
      %p327 = por %p325, %p326
      %p328 = scmp.ne.s32.totalorder %s317, %s318
      %p329 = scmp.eq.s32.totalorder %s54, 0
      %p330 = por %p328, %p329
      %p331 = scmp.ne.s32.totalorder %s317, %s318
      %p332 = scmp.eq.s32.totalorder %s55, 1
      %p333 = por %p331, %p332
      %p335 = scmp.ne.s32.totalorder %s318, %s334
      %p336 = scmp.eq.s32.totalorder %s55, 0
      %p337 = por %p335, %p336
      %s338 = ssub.s32 %s49, %s56
      %p339 = scmp.eq.s32.totalorder %s338, 0
      %s341 = sadd.s32 %s340, 1
      %s342 = scalar_select %p339, %s340, %s341
      %p345 = pneg %p339
      %p346 = scmp.eq.s32.totalorder %s49, 1
      %p347 = por %p345, %p346
      %p348 = scmp.ne.s32.totalorder %s340, %s343
      %p349 = scmp.eq.s32.totalorder %s49, 0
      %p350 = por %p348, %p349
      %p351 = scmp.ne.s32.totalorder %s340, %s343
      %p352 = scmp.eq.s32.totalorder %s54, 1
      %p353 = por %p351, %p352
      %p354 = scmp.ne.s32.totalorder %s343, %s344
      %p355 = scmp.eq.s32.totalorder %s54, 0
      %p356 = por %p354, %p355
      %p357 = scmp.ne.s32.totalorder %s343, %s344
      %p358 = scmp.eq.s32.totalorder %s55, 1
      %p359 = por %p357, %p358
      %p361 = scmp.ne.s32.totalorder %s344, %s360
      %p362 = scmp.eq.s32.totalorder %s55, 0
      %p363 = por %p361, %p362
      %s364 = ssub.s32 %s49, %s56
      %p365 = scmp.eq.s32.totalorder %s364, 0
      %s367 = sadd.s32 %s366, 1
      %s368 = scalar_select %p365, %s366, %s367
      %p371 = pneg %p365
      %p372 = scmp.eq.s32.totalorder %s49, 1
      %p373 = por %p371, %p372
      %p374 = scmp.ne.s32.totalorder %s366, %s369
      %p375 = scmp.eq.s32.totalorder %s49, 0
      %p376 = por %p374, %p375
      %p377 = scmp.ne.s32.totalorder %s366, %s369
      %p378 = scmp.eq.s32.totalorder %s54, 1
      %p379 = por %p377, %p378
      %p380 = scmp.ne.s32.totalorder %s369, %s370
      %p381 = scmp.eq.s32.totalorder %s54, 0
      %p382 = por %p380, %p381
      %p383 = scmp.ne.s32.totalorder %s369, %s370
      %p384 = scmp.eq.s32.totalorder %s55, 1
      %p385 = por %p383, %p384
      %p387 = scmp.ne.s32.totalorder %s370, %s386
      %p388 = scmp.eq.s32.totalorder %s55, 0
      %p389 = por %p387, %p388
      %s390 = ssub.s32 %s49, %s56
      %p391 = scmp.eq.s32.totalorder %s390, 0
      %s393 = sadd.s32 %s392, 1
      %s394 = scalar_select %p391, %s392, %s393
      %p397 = pneg %p391
      %p398 = scmp.eq.s32.totalorder %s49, 1
      %p399 = por %p397, %p398
      %p400 = scmp.ne.s32.totalorder %s392, %s395
      %p401 = scmp.eq.s32.totalorder %s49, 0
      %p402 = por %p400, %p401
      %p403 = scmp.ne.s32.totalorder %s392, %s395
      %p404 = scmp.eq.s32.totalorder %s54, 1
      %p405 = por %p403, %p404
      %p406 = scmp.ne.s32.totalorder %s395, %s396
      %p407 = scmp.eq.s32.totalorder %s54, 0
      %p408 = por %p406, %p407
      %p409 = scmp.ne.s32.totalorder %s395, %s396
      %p410 = scmp.eq.s32.totalorder %s55, 1
      %p411 = por %p409, %p410
      %p413 = scmp.ne.s32.totalorder %s396, %s412
      %p414 = scmp.eq.s32.totalorder %s55, 0
      %p415 = por %p413, %p414
      %s416 = ssub.s32 %s49, %s56
      %p417 = scmp.eq.s32.totalorder %s416, 0
      %s419 = sadd.s32 %s418, 1
      %s420 = scalar_select %p417, %s418, %s419
      %p423 = pneg %p417
      %p424 = scmp.eq.s32.totalorder %s49, 1
      %p425 = por %p423, %p424
      %p426 = scmp.ne.s32.totalorder %s418, %s421
      %p427 = scmp.eq.s32.totalorder %s49, 0
      %p428 = por %p426, %p427
      %p429 = scmp.ne.s32.totalorder %s418, %s421
      %p430 = scmp.eq.s32.totalorder %s54, 1
      %p431 = por %p429, %p430
      %p432 = scmp.ne.s32.totalorder %s421, %s422
      %p433 = scmp.eq.s32.totalorder %s54, 0
      %p434 = por %p432, %p433
      %p435 = scmp.ne.s32.totalorder %s421, %s422
      %p436 = scmp.eq.s32.totalorder %s55, 1
      %p437 = por %p435, %p436
      %p439 = scmp.ne.s32.totalorder %s422, %s438
      %p440 = scmp.eq.s32.totalorder %s55, 0
      %p441 = por %p439, %p440
      %s442 = ssub.s32 %s49, %s56
      %p443 = scmp.eq.s32.totalorder %s442, 0
      %s445 = sadd.s32 %s444, 1
      %s446 = scalar_select %p443, %s444, %s445
      %p449 = pneg %p443
      %p450 = scmp.eq.s32.totalorder %s49, 1
      %p451 = por %p449, %p450
      %p452 = scmp.ne.s32.totalorder %s444, %s447
      %p453 = scmp.eq.s32.totalorder %s49, 0
      %p454 = por %p452, %p453
      %p455 = scmp.ne.s32.totalorder %s444, %s447
      %p456 = scmp.eq.s32.totalorder %s54, 1
      %p457 = por %p455, %p456
      %p458 = scmp.ne.s32.totalorder %s447, %s448
      %p459 = scmp.eq.s32.totalorder %s54, 0
      %p460 = por %p458, %p459
      %p461 = scmp.ne.s32.totalorder %s447, %s448
      %p462 = scmp.eq.s32.totalorder %s55, 1
      %p463 = por %p461, %p462
      %p465 = scmp.ne.s32.totalorder %s448, %s464
      %p466 = scmp.eq.s32.totalorder %s55, 0
      %p467 = por %p465, %p466
      %s468 = ssub.s32 %s49, %s56
      %p469 = scmp.eq.s32.totalorder %s468, 0
      %s471 = sadd.s32 %s470, 1
      %s472 = scalar_select %p469, %s470, %s471
      %p475 = pneg %p469
      %p476 = scmp.eq.s32.totalorder %s49, 1
      %p477 = por %p475, %p476
      %p478 = scmp.ne.s32.totalorder %s470, %s473
      %p479 = scmp.eq.s32.totalorder %s49, 0
      %p480 = por %p478, %p479
      %p481 = scmp.ne.s32.totalorder %s470, %s473
      %p482 = scmp.eq.s32.totalorder %s54, 1
      %p483 = por %p481, %p482
      %p484 = scmp.ne.s32.totalorder %s473, %s474
      %p485 = scmp.eq.s32.totalorder %s54, 0
      %p486 = por %p484, %p485
      %p487 = scmp.ne.s32.totalorder %s473, %s474
      %p488 = scmp.eq.s32.totalorder %s55, 1
      %p489 = por %p487, %p488
      %p491 = scmp.ne.s32.totalorder %s474, %s490
      %p492 = scmp.eq.s32.totalorder %s55, 0
      %p493 = por %p491, %p492
      %s495 = sadd.s32 %s494, 1
      %p498 = scmp.eq.s32.totalorder %s49, 1
      %p499 = scmp.ne.s32.totalorder %s494, %s496
      %p500 = scmp.eq.s32.totalorder %s49, 0
      %p501 = por %p499, %p500
      %p502 = scmp.ne.s32.totalorder %s494, %s496
      %p503 = scmp.eq.s32.totalorder %s54, 1
      %p504 = por %p502, %p503
      %p505 = scmp.ne.s32.totalorder %s496, %s497
      %p506 = scmp.eq.s32.totalorder %s54, 0
      %p507 = por %p505, %p506
      %p508 = scmp.ne.s32.totalorder %s496, %s497
      %p509 = scmp.eq.s32.totalorder %s55, 1
      %p510 = por %p508, %p509
      %p512 = scmp.ne.s32.totalorder %s497, %s511
      %p513 = scmp.eq.s32.totalorder %s55, 0
      %p514 = por %p512, %p513
      %p515 = scmp.le.s32.totalorder 1, %s49
      %p516 = scmp.lt.s32.totalorder %s49, 3
      %p517 = pnand %p515, %p516
      %p518 = pneg %p517
      // Predicated region
      $region9: #{tpu_custom_call.1} parent=5 // pred_check
        _
      $region10: #{tpu_custom_call.1} parent=5 // pred_check_branch
        %520 = sbr.rel (%p517) target = $region12
      $region11: #{tpu_custom_call.1} parent=5 // pred_region
        %s521 = ssub.s32 %s49, 1
        // Predicated region
        $region13: #{tpu_custom_call.1} parent=11 // pred_check
          %p522 = pneg %p70
        $region14: #{tpu_custom_call.1} parent=11 // pred_check_branch
          %524 = sbr.rel (%p522) target = $region16
        $region15: #{tpu_custom_call.1} parent=11 // pred_region
          %s526 = ssub.s32 256, 256
          %527 = vsyncadd [#allocation4], %s526
          %s528 = sshll.u32 [#allocation3], 4
          %s529 = int_to_ptr.vmem [resolvable:$true] %s528
          %534 = dma.hbm_to_vmem [thread:$0]  %s0, 256, %s529, [#allocation4], 128, 128, 8
        $region16: #{tpu_custom_call.1} parent=11 // pred_fallthru
          _
      $region12: #{tpu_custom_call.1} parent=5 // pred_fallthru
        _
      %p535 = scmp.lt.s32.totalorder %s49, 2
      // Predicated region
      $region17: #{tpu_custom_call.1} parent=5 // pred_check
        %p536 = pneg %p535
      $region18: #{tpu_custom_call.1} parent=5 // pred_check_branch
        %538 = sbr.rel (%p536) target = $region20
      $region19: #{tpu_custom_call.1} parent=5 // pred_region
        // Predicated region
        $region21: #{tpu_custom_call.1} parent=19 // pred_check
          %p539 = pneg %p90
        $region22: #{tpu_custom_call.1} parent=19 // pred_check_branch
          %541 = sbr.rel (%p539) target = $region24
        $region23: #{tpu_custom_call.1} parent=19 // pred_region
          %s542 = sand.u32 %s49, 1
          %s543 = scalar_lea.sflag [#allocation7], %s542
          %s544 = sand.u32 %s80, 1
          %s545 = scalar_lea.vmem [#allocation6], %s544
          %s547 = ssub.s32 16, 16
          %548 = vsyncadd %s543, %s547
          %s549 = smul.addr %s49, 16
          %s550 = scalar_lea.hbm %s1, %s549
          %s552 = sshll.u32 %s545, 4
          %s553 = int_to_ptr.vmem [resolvable:$true] %s552
          %555 = dma.hbm_to_vmem [thread:$0]  %s550, 16, %s553, %s543
        $region24: #{tpu_custom_call.1} parent=19 // pred_fallthru
          _
        // Predicated region
        $region25: #{tpu_custom_call.1} parent=19 // pred_check
          %p556 = pneg %p116
        $region26: #{tpu_custom_call.1} parent=19 // pred_check_branch
          %558 = sbr.rel (%p556) target = $region28
        $region27: #{tpu_custom_call.1} parent=19 // pred_region
          %s559 = sand.u32 %s49, 1
          %s560 = scalar_lea.sflag [#allocation7], %s559
          %s561 = sand.u32 %s106, 1
          %s562 = scalar_lea.vmem [#allocation8], %s561
          %s564 = ssub.s32 16, 16
          %565 = vsyncadd %s560, %s564
          %s566 = smul.addr %s49, 16
          %s567 = scalar_lea.hbm %s2, %s566
          %s569 = sshll.u32 %s562, 4
          %s570 = int_to_ptr.vmem [resolvable:$true] %s569
          %572 = dma.hbm_to_vmem [thread:$0]  %s567, 16, %s570, %s560
        $region28: #{tpu_custom_call.1} parent=19 // pred_fallthru
          _
        // Predicated region
        $region29: #{tpu_custom_call.1} parent=19 // pred_check
          %p573 = pneg %p142
        $region30: #{tpu_custom_call.1} parent=19 // pred_check_branch
          %575 = sbr.rel (%p573) target = $region32
        $region31: #{tpu_custom_call.1} parent=19 // pred_region
          %s576 = sand.u32 %s49, 1
          %s577 = scalar_lea.sflag [#allocation10], %s576
          %s578 = sand.u32 %s132, 1
          %s579 = smul.addr %s578, 32
          %s580 = scalar_lea.vmem [#allocation9], %s579
          %s582 = ssub.s32 512, 512
          %583 = vsyncadd %s577, %s582
          %s584 = smul.addr %s49, 4
          %s585 = smul.addr %s584, 128
          %s586 = scalar_lea.hbm %s3, %s585
          %s587 = sshll.u32 %s580, 4
          %s588 = int_to_ptr.vmem [resolvable:$true] %s587
          %593 = dma.hbm_to_vmem [thread:$0]  %s586, 512, %s588, %s577, 128, 128, 8
        $region32: #{tpu_custom_call.1} parent=19 // pred_fallthru
          _
        // Predicated region
        $region33: #{tpu_custom_call.1} parent=19 // pred_check
          %p594 = pneg %p168
        $region34: #{tpu_custom_call.1} parent=19 // pred_check_branch
          %596 = sbr.rel (%p594) target = $region36
        $region35: #{tpu_custom_call.1} parent=19 // pred_region
          %s597 = sand.u32 %s49, 1
          %s598 = scalar_lea.sflag [#allocation10], %s597
          %s599 = sand.u32 %s158, 1
          %s600 = scalar_lea.vmem [#allocation11], %s599
          %s602 = ssub.s32 16, 16
          %603 = vsyncadd %s598, %s602
          %s604 = smul.addr %s49, 16
          %s605 = scalar_lea.hbm %s4, %s604
          %s607 = sshll.u32 %s600, 4
          %s608 = int_to_ptr.vmem [resolvable:$true] %s607
          %610 = dma.hbm_to_vmem [thread:$0]  %s605, 16, %s608, %s598
        $region36: #{tpu_custom_call.1} parent=19 // pred_fallthru
          _
        // Predicated region
        $region37: #{tpu_custom_call.1} parent=19 // pred_check
          %p611 = pneg %p194
        $region38: #{tpu_custom_call.1} parent=19 // pred_check_branch
          %613 = sbr.rel (%p611) target = $region40
        $region39: #{tpu_custom_call.1} parent=19 // pred_region
          %s614 = sand.u32 %s49, 1
          %s615 = scalar_lea.sflag [#allocation13], %s614
          %s616 = sand.u32 %s184, 1
          %s617 = smul.addr %s616, 32
          %s618 = scalar_lea.vmem [#allocation12], %s617
          %s620 = ssub.s32 512, 512
          %621 = vsyncadd %s615, %s620
          %s622 = smul.addr %s49, 4
          %s623 = smul.addr %s622, 128
          %s624 = scalar_lea.hbm %s5, %s623
          %s625 = sshll.u32 %s618, 4
          %s626 = int_to_ptr.vmem [resolvable:$true] %s625
          %631 = dma.hbm_to_vmem [thread:$0]  %s624, 512, %s626, %s615, 128, 128, 8
        $region40: #{tpu_custom_call.1} parent=19 // pred_fallthru
          _
        // Predicated region
        $region41: #{tpu_custom_call.1} parent=19 // pred_check
          %p632 = pneg %p220
        $region42: #{tpu_custom_call.1} parent=19 // pred_check_branch
          %634 = sbr.rel (%p632) target = $region44
        $region43: #{tpu_custom_call.1} parent=19 // pred_region
          %s635 = sand.u32 %s49, 1
          %s636 = scalar_lea.sflag [#allocation13], %s635
          %s637 = sand.u32 %s210, 1
          %s638 = scalar_lea.vmem [#allocation14], %s637
          %s640 = ssub.s32 16, 16
          %641 = vsyncadd %s636, %s640
          %s642 = smul.addr %s49, 16
          %s643 = scalar_lea.hbm %s6, %s642
          %s645 = sshll.u32 %s638, 4
          %s646 = int_to_ptr.vmem [resolvable:$true] %s645
          %648 = dma.hbm_to_vmem [thread:$0]  %s643, 16, %s646, %s636
        $region44: #{tpu_custom_call.1} parent=19 // pred_fallthru
          _
        // Predicated region
        $region45: #{tpu_custom_call.1} parent=19 // pred_check
          %p649 = pneg %p246
        $region46: #{tpu_custom_call.1} parent=19 // pred_check_branch
          %651 = sbr.rel (%p649) target = $region48
        $region47: #{tpu_custom_call.1} parent=19 // pred_region
          %s652 = sand.u32 %s49, 1
          %s653 = scalar_lea.sflag [#allocation16], %s652
          %s654 = sand.u32 %s236, 1
          %s655 = smul.addr %s654, 32
          %s656 = scalar_lea.vmem [#allocation15], %s655
          %s658 = ssub.s32 512, 512
          %659 = vsyncadd %s653, %s658
          %s660 = smul.addr %s49, 4
          %s661 = smul.addr %s660, 128
          %s662 = scalar_lea.hbm %s7, %s661
          %s663 = sshll.u32 %s656, 4
          %s664 = int_to_ptr.vmem [resolvable:$true] %s663
          %669 = dma.hbm_to_vmem [thread:$0]  %s662, 512, %s664, %s653, 128, 128, 8
        $region48: #{tpu_custom_call.1} parent=19 // pred_fallthru
          _
        // Predicated region
        $region49: #{tpu_custom_call.1} parent=19 // pred_check
          %p670 = pneg %p272
        $region50: #{tpu_custom_call.1} parent=19 // pred_check_branch
          %672 = sbr.rel (%p670) target = $region52
        $region51: #{tpu_custom_call.1} parent=19 // pred_region
          %s673 = sand.u32 %s49, 1
          %s674 = scalar_lea.sflag [#allocation16], %s673
          %s675 = sand.u32 %s262, 1
          %s676 = scalar_lea.vmem [#allocation17], %s675
          %s678 = ssub.s32 16, 16
          %679 = vsyncadd %s674, %s678
          %s680 = smul.addr %s49, 16
          %s681 = scalar_lea.hbm %s8, %s680
          %s683 = sshll.u32 %s676, 4
          %s684 = int_to_ptr.vmem [resolvable:$true] %s683
          %686 = dma.hbm_to_vmem [thread:$0]  %s681, 16, %s684, %s674
        $region52: #{tpu_custom_call.1} parent=19 // pred_fallthru
          _
        // Predicated region
        $region53: #{tpu_custom_call.1} parent=19 // pred_check
          %p687 = pneg %p298
        $region54: #{tpu_custom_call.1} parent=19 // pred_check_branch
          %689 = sbr.rel (%p687) target = $region56
        $region55: #{tpu_custom_call.1} parent=19 // pred_region
          %s690 = sand.u32 %s49, 1
          %s691 = scalar_lea.sflag [#allocation19], %s690
          %s692 = sand.u32 %s288, 1
          %s693 = smul.addr %s692, 32
          %s694 = scalar_lea.vmem [#allocation18], %s693
          %s696 = ssub.s32 512, 512
          %697 = vsyncadd %s691, %s696
          %s698 = smul.addr %s49, 4
          %s699 = smul.addr %s698, 128
          %s700 = scalar_lea.hbm %s9, %s699
          %s701 = sshll.u32 %s694, 4
          %s702 = int_to_ptr.vmem [resolvable:$true] %s701
          %707 = dma.hbm_to_vmem [thread:$0]  %s700, 512, %s702, %s691, 128, 128, 8
        $region56: #{tpu_custom_call.1} parent=19 // pred_fallthru
          _
        // Predicated region
        $region57: #{tpu_custom_call.1} parent=19 // pred_check
          %p708 = pneg %p324
        $region58: #{tpu_custom_call.1} parent=19 // pred_check_branch
          %710 = sbr.rel (%p708) target = $region60
        $region59: #{tpu_custom_call.1} parent=19 // pred_region
          %s711 = sand.u32 %s49, 1
          %s712 = scalar_lea.sflag [#allocation19], %s711
          %s713 = sand.u32 %s314, 1
          %s714 = scalar_lea.vmem [#allocation20], %s713
          %s716 = ssub.s32 16, 16
          %717 = vsyncadd %s712, %s716
          %s718 = smul.addr %s49, 16
          %s719 = scalar_lea.hbm %s10, %s718
          %s721 = sshll.u32 %s714, 4
          %s722 = int_to_ptr.vmem [resolvable:$true] %s721
          %724 = dma.hbm_to_vmem [thread:$0]  %s719, 16, %s722, %s712
        $region60: #{tpu_custom_call.1} parent=19 // pred_fallthru
          _
        // Predicated region
        $region61: #{tpu_custom_call.1} parent=19 // pred_check
          %p725 = pneg %p350
        $region62: #{tpu_custom_call.1} parent=19 // pred_check_branch
          %727 = sbr.rel (%p725) target = $region64
        $region63: #{tpu_custom_call.1} parent=19 // pred_region
          %s728 = sand.u32 %s49, 1
          %s729 = scalar_lea.sflag [#allocation22], %s728
          %s730 = sand.u32 %s340, 1
          %s731 = scalar_lea.vmem [#allocation21], %s730
          %s733 = ssub.s32 16, 16
          %734 = vsyncadd %s729, %s733
          %s735 = smul.addr %s49, 16
          %s736 = scalar_lea.hbm %s11, %s735
          %s738 = sshll.u32 %s731, 4
          %s739 = int_to_ptr.vmem [resolvable:$true] %s738
          %741 = dma.hbm_to_vmem [thread:$0]  %s736, 16, %s739, %s729
        $region64: #{tpu_custom_call.1} parent=19 // pred_fallthru
          _
        // Predicated region
        $region65: #{tpu_custom_call.1} parent=19 // pred_check
          %p742 = pneg %p376
        $region66: #{tpu_custom_call.1} parent=19 // pred_check_branch
          %744 = sbr.rel (%p742) target = $region68
        $region67: #{tpu_custom_call.1} parent=19 // pred_region
          %s745 = sand.u32 %s49, 1
          %s746 = scalar_lea.sflag [#allocation22], %s745
          %s747 = sand.u32 %s366, 1
          %s748 = scalar_lea.vmem [#allocation23], %s747
          %s750 = ssub.s32 16, 16
          %751 = vsyncadd %s746, %s750
          %s752 = smul.addr %s49, 16
          %s753 = scalar_lea.hbm %s12, %s752
          %s755 = sshll.u32 %s748, 4
          %s756 = int_to_ptr.vmem [resolvable:$true] %s755
          %758 = dma.hbm_to_vmem [thread:$0]  %s753, 16, %s756, %s746
        $region68: #{tpu_custom_call.1} parent=19 // pred_fallthru
          _
        // Predicated region
        $region69: #{tpu_custom_call.1} parent=19 // pred_check
          %p759 = pneg %p402
        $region70: #{tpu_custom_call.1} parent=19 // pred_check_branch
          %761 = sbr.rel (%p759) target = $region72
        $region71: #{tpu_custom_call.1} parent=19 // pred_region
          %s762 = sand.u32 %s49, 1
          %s763 = scalar_lea.sflag [#allocation25], %s762
          %s764 = sand.u32 %s392, 1
          %s765 = smul.addr %s764, 32
          %s766 = scalar_lea.vmem [#allocation24], %s765
          %s768 = ssub.s32 512, 512
          %769 = vsyncadd %s763, %s768
          %s770 = smul.addr %s49, 4
          %s771 = smul.addr %s770, 128
          %s772 = scalar_lea.hbm %s13, %s771
          %s773 = sshll.u32 %s766, 4
          %s774 = int_to_ptr.vmem [resolvable:$true] %s773
          %779 = dma.hbm_to_vmem [thread:$0]  %s772, 512, %s774, %s763, 128, 128, 8
        $region72: #{tpu_custom_call.1} parent=19 // pred_fallthru
          _
        // Predicated region
        $region73: #{tpu_custom_call.1} parent=19 // pred_check
          %p780 = pneg %p428
        $region74: #{tpu_custom_call.1} parent=19 // pred_check_branch
          %782 = sbr.rel (%p780) target = $region76
        $region75: #{tpu_custom_call.1} parent=19 // pred_region
          %s783 = sand.u32 %s49, 1
          %s784 = scalar_lea.sflag [#allocation25], %s783
          %s785 = sand.u32 %s418, 1
          %s786 = scalar_lea.vmem [#allocation26], %s785
          %s788 = ssub.s32 16, 16
          %789 = vsyncadd %s784, %s788
          %s790 = smul.addr %s49, 16
          %s791 = scalar_lea.hbm %s14, %s790
          %s793 = sshll.u32 %s786, 4
          %s794 = int_to_ptr.vmem [resolvable:$true] %s793
          %796 = dma.hbm_to_vmem [thread:$0]  %s791, 16, %s794, %s784
        $region76: #{tpu_custom_call.1} parent=19 // pred_fallthru
          _
        // Predicated region
        $region77: #{tpu_custom_call.1} parent=19 // pred_check
          %p797 = pneg %p454
        $region78: #{tpu_custom_call.1} parent=19 // pred_check_branch
          %799 = sbr.rel (%p797) target = $region80
        $region79: #{tpu_custom_call.1} parent=19 // pred_region
          %s800 = sand.u32 %s49, 1
          %s801 = scalar_lea.sflag [#allocation28], %s800
          %s802 = sand.u32 %s444, 1
          %s803 = smul.addr %s802, 128
          %s804 = scalar_lea.vmem [#allocation27], %s803
          %s806 = ssub.s32 2048, 2048
          %807 = vsyncadd %s801, %s806
          %s808 = smul.addr %s49, 16
          %s809 = smul.addr %s808, 128
          %s810 = scalar_lea.hbm %s15, %s809
          %s811 = sshll.u32 %s804, 4
          %s812 = int_to_ptr.vmem [resolvable:$true] %s811
          %817 = dma.hbm_to_vmem [thread:$0]  %s810, 2048, %s812, %s801, 128, 128, 8
        $region80: #{tpu_custom_call.1} parent=19 // pred_fallthru
          _
        // Predicated region
        $region81: #{tpu_custom_call.1} parent=19 // pred_check
          %p818 = pneg %p480
        $region82: #{tpu_custom_call.1} parent=19 // pred_check_branch
          %820 = sbr.rel (%p818) target = $region84
        $region83: #{tpu_custom_call.1} parent=19 // pred_region
          %s821 = sand.u32 %s49, 1
          %s822 = scalar_lea.sflag [#allocation28], %s821
          %s823 = sand.u32 %s470, 1
          %s824 = scalar_lea.vmem [#allocation29], %s823
          %s826 = ssub.s32 16, 16
          %827 = vsyncadd %s822, %s826
          %s828 = smul.addr %s49, 16
          %s829 = scalar_lea.hbm %s16, %s828
          %s831 = sshll.u32 %s824, 4
          %s832 = int_to_ptr.vmem [resolvable:$true] %s831
          %834 = dma.hbm_to_vmem [thread:$0]  %s829, 16, %s832, %s822
        $region84: #{tpu_custom_call.1} parent=19 // pred_fallthru
          _
      $region20: #{tpu_custom_call.1} parent=5 // pred_fallthru
        _
      %p835 = scmp.le.s32.totalorder 1, %s49
      %p836 = scmp.lt.s32.totalorder %s49, 3
      %p837 = pnand %p835, %p836
      %p838 = pneg %p837
      // Predicated region
      $region85: #{tpu_custom_call.1} parent=5 // pred_check
        _
      $region86: #{tpu_custom_call.1} parent=5 // pred_check_branch
        %840 = sbr.rel (%p837) target = $region88
      $region87: #{tpu_custom_call.1} parent=5 // pred_region
        %s841 = ssub.s32 %s49, 1
        // Predicated region
        $region89: #{tpu_custom_call.1} parent=87 // pred_check
          %p842 = pneg %p70
        $region90: #{tpu_custom_call.1} parent=87 // pred_check_branch
          %844 = sbr.rel (%p842) target = $region92
        $region91: #{tpu_custom_call.1} parent=87 // pred_region
          %845 = dma.done [#allocation4], 256
        $region92: #{tpu_custom_call.1} parent=87 // pred_fallthru
          _
        %s846 = sand.u32 %s54, 1
        %s847 = scalar_lea.sflag [#allocation7], %s846
        %s848 = sand.u32 %s83, 1
        %s849 = scalar_lea.vmem [#allocation6], %s848
        // Predicated region
        $region93: #{tpu_custom_call.1} parent=87 // pred_check
          %p850 = pneg %p96
        $region94: #{tpu_custom_call.1} parent=87 // pred_check_branch
          %852 = sbr.rel (%p850) target = $region96
        $region95: #{tpu_custom_call.1} parent=87 // pred_region
          %853 = dma.done %s847, 16
        $region96: #{tpu_custom_call.1} parent=87 // pred_fallthru
          _
        %s854 = sand.u32 %s54, 1
        %s855 = scalar_lea.sflag [#allocation7], %s854
        %s856 = sand.u32 %s109, 1
        %s857 = scalar_lea.vmem [#allocation8], %s856
        // Predicated region
        $region97: #{tpu_custom_call.1} parent=87 // pred_check
          %p858 = pneg %p122
        $region98: #{tpu_custom_call.1} parent=87 // pred_check_branch
          %860 = sbr.rel (%p858) target = $region100
        $region99: #{tpu_custom_call.1} parent=87 // pred_region
          %861 = dma.done %s855, 16
        $region100: #{tpu_custom_call.1} parent=87 // pred_fallthru
          _
        %s862 = sand.u32 %s54, 1
        %s863 = scalar_lea.sflag [#allocation10], %s862
        %s864 = sand.u32 %s135, 1
        %s865 = smul.addr %s864, 32
        %s866 = scalar_lea.vmem [#allocation9], %s865
        // Predicated region
        $region101: #{tpu_custom_call.1} parent=87 // pred_check
          %p867 = pneg %p148
        $region102: #{tpu_custom_call.1} parent=87 // pred_check_branch
          %869 = sbr.rel (%p867) target = $region104
        $region103: #{tpu_custom_call.1} parent=87 // pred_region
          %870 = dma.done %s863, 512
        $region104: #{tpu_custom_call.1} parent=87 // pred_fallthru
          _
        %s871 = sand.u32 %s54, 1
        %s872 = scalar_lea.sflag [#allocation10], %s871
        %s873 = sand.u32 %s161, 1
        %s874 = scalar_lea.vmem [#allocation11], %s873
        // Predicated region
        $region105: #{tpu_custom_call.1} parent=87 // pred_check
          %p875 = pneg %p174
        $region106: #{tpu_custom_call.1} parent=87 // pred_check_branch
          %877 = sbr.rel (%p875) target = $region108
        $region107: #{tpu_custom_call.1} parent=87 // pred_region
          %878 = dma.done %s872, 16
        $region108: #{tpu_custom_call.1} parent=87 // pred_fallthru
          _
        %s879 = sand.u32 %s54, 1
        %s880 = scalar_lea.sflag [#allocation13], %s879
        %s881 = sand.u32 %s187, 1
        %s882 = smul.addr %s881, 32
        %s883 = scalar_lea.vmem [#allocation12], %s882
        // Predicated region
        $region109: #{tpu_custom_call.1} parent=87 // pred_check
          %p884 = pneg %p200
        $region110: #{tpu_custom_call.1} parent=87 // pred_check_branch
          %886 = sbr.rel (%p884) target = $region112
        $region111: #{tpu_custom_call.1} parent=87 // pred_region
          %887 = dma.done %s880, 512
        $region112: #{tpu_custom_call.1} parent=87 // pred_fallthru
          _
        %s888 = sand.u32 %s54, 1
        %s889 = scalar_lea.sflag [#allocation13], %s888
        %s890 = sand.u32 %s213, 1
        %s891 = scalar_lea.vmem [#allocation14], %s890
        // Predicated region
        $region113: #{tpu_custom_call.1} parent=87 // pred_check
          %p892 = pneg %p226
        $region114: #{tpu_custom_call.1} parent=87 // pred_check_branch
          %894 = sbr.rel (%p892) target = $region116
        $region115: #{tpu_custom_call.1} parent=87 // pred_region
          %895 = dma.done %s889, 16
        $region116: #{tpu_custom_call.1} parent=87 // pred_fallthru
          _
        %s896 = sand.u32 %s54, 1
        %s897 = scalar_lea.sflag [#allocation16], %s896
        %s898 = sand.u32 %s239, 1
        %s899 = smul.addr %s898, 32
        %s900 = scalar_lea.vmem [#allocation15], %s899
        // Predicated region
        $region117: #{tpu_custom_call.1} parent=87 // pred_check
          %p901 = pneg %p252
        $region118: #{tpu_custom_call.1} parent=87 // pred_check_branch
          %903 = sbr.rel (%p901) target = $region120
        $region119: #{tpu_custom_call.1} parent=87 // pred_region
          %904 = dma.done %s897, 512
        $region120: #{tpu_custom_call.1} parent=87 // pred_fallthru
          _
        %s905 = sand.u32 %s54, 1
        %s906 = scalar_lea.sflag [#allocation16], %s905
        %s907 = sand.u32 %s265, 1
        %s908 = scalar_lea.vmem [#allocation17], %s907
        // Predicated region
        $region121: #{tpu_custom_call.1} parent=87 // pred_check
          %p909 = pneg %p278
        $region122: #{tpu_custom_call.1} parent=87 // pred_check_branch
          %911 = sbr.rel (%p909) target = $region124
        $region123: #{tpu_custom_call.1} parent=87 // pred_region
          %912 = dma.done %s906, 16
        $region124: #{tpu_custom_call.1} parent=87 // pred_fallthru
          _
        %s913 = sand.u32 %s54, 1
        %s914 = scalar_lea.sflag [#allocation19], %s913
        %s915 = sand.u32 %s291, 1
        %s916 = smul.addr %s915, 32
        %s917 = scalar_lea.vmem [#allocation18], %s916
        // Predicated region
        $region125: #{tpu_custom_call.1} parent=87 // pred_check
          %p918 = pneg %p304
        $region126: #{tpu_custom_call.1} parent=87 // pred_check_branch
          %920 = sbr.rel (%p918) target = $region128
        $region127: #{tpu_custom_call.1} parent=87 // pred_region
          %921 = dma.done %s914, 512
        $region128: #{tpu_custom_call.1} parent=87 // pred_fallthru
          _
        %s922 = sand.u32 %s54, 1
        %s923 = scalar_lea.sflag [#allocation19], %s922
        %s924 = sand.u32 %s317, 1
        %s925 = scalar_lea.vmem [#allocation20], %s924
        // Predicated region
        $region129: #{tpu_custom_call.1} parent=87 // pred_check
          %p926 = pneg %p330
        $region130: #{tpu_custom_call.1} parent=87 // pred_check_branch
          %928 = sbr.rel (%p926) target = $region132
        $region131: #{tpu_custom_call.1} parent=87 // pred_region
          %929 = dma.done %s923, 16
        $region132: #{tpu_custom_call.1} parent=87 // pred_fallthru
          _
        %s930 = sand.u32 %s54, 1
        %s931 = scalar_lea.sflag [#allocation22], %s930
        %s932 = sand.u32 %s343, 1
        %s933 = scalar_lea.vmem [#allocation21], %s932
        // Predicated region
        $region133: #{tpu_custom_call.1} parent=87 // pred_check
          %p934 = pneg %p356
        $region134: #{tpu_custom_call.1} parent=87 // pred_check_branch
          %936 = sbr.rel (%p934) target = $region136
        $region135: #{tpu_custom_call.1} parent=87 // pred_region
          %937 = dma.done %s931, 16
        $region136: #{tpu_custom_call.1} parent=87 // pred_fallthru
          _
        %s938 = sand.u32 %s54, 1
        %s939 = scalar_lea.sflag [#allocation22], %s938
        %s940 = sand.u32 %s369, 1
        %s941 = scalar_lea.vmem [#allocation23], %s940
        // Predicated region
        $region137: #{tpu_custom_call.1} parent=87 // pred_check
          %p942 = pneg %p382
        $region138: #{tpu_custom_call.1} parent=87 // pred_check_branch
          %944 = sbr.rel (%p942) target = $region140
        $region139: #{tpu_custom_call.1} parent=87 // pred_region
          %945 = dma.done %s939, 16
        $region140: #{tpu_custom_call.1} parent=87 // pred_fallthru
          _
        %s946 = sand.u32 %s54, 1
        %s947 = scalar_lea.sflag [#allocation25], %s946
        %s948 = sand.u32 %s395, 1
        %s949 = smul.addr %s948, 32
        %s950 = scalar_lea.vmem [#allocation24], %s949
        // Predicated region
        $region141: #{tpu_custom_call.1} parent=87 // pred_check
          %p951 = pneg %p408
        $region142: #{tpu_custom_call.1} parent=87 // pred_check_branch
          %953 = sbr.rel (%p951) target = $region144
        $region143: #{tpu_custom_call.1} parent=87 // pred_region
          %954 = dma.done %s947, 512
        $region144: #{tpu_custom_call.1} parent=87 // pred_fallthru
          _
        %s955 = sand.u32 %s54, 1
        %s956 = scalar_lea.sflag [#allocation25], %s955
        %s957 = sand.u32 %s421, 1
        %s958 = scalar_lea.vmem [#allocation26], %s957
        // Predicated region
        $region145: #{tpu_custom_call.1} parent=87 // pred_check
          %p959 = pneg %p434
        $region146: #{tpu_custom_call.1} parent=87 // pred_check_branch
          %961 = sbr.rel (%p959) target = $region148
        $region147: #{tpu_custom_call.1} parent=87 // pred_region
          %962 = dma.done %s956, 16
        $region148: #{tpu_custom_call.1} parent=87 // pred_fallthru
          _
        %s963 = sand.u32 %s54, 1
        %s964 = scalar_lea.sflag [#allocation28], %s963
        %s965 = sand.u32 %s447, 1
        %s966 = smul.addr %s965, 128
        %s967 = scalar_lea.vmem [#allocation27], %s966
        // Predicated region
        $region149: #{tpu_custom_call.1} parent=87 // pred_check
          %p968 = pneg %p460
        $region150: #{tpu_custom_call.1} parent=87 // pred_check_branch
          %970 = sbr.rel (%p968) target = $region152
        $region151: #{tpu_custom_call.1} parent=87 // pred_region
          %971 = dma.done %s964, 2048
        $region152: #{tpu_custom_call.1} parent=87 // pred_fallthru
          _
        %s972 = sand.u32 %s54, 1
        %s973 = scalar_lea.sflag [#allocation28], %s972
        %s974 = sand.u32 %s473, 1
        %s975 = scalar_lea.vmem [#allocation29], %s974
        // Predicated region
        $region153: #{tpu_custom_call.1} parent=87 // pred_check
          %p976 = pneg %p486
        $region154: #{tpu_custom_call.1} parent=87 // pred_check_branch
          %978 = sbr.rel (%p976) target = $region156
        $region155: #{tpu_custom_call.1} parent=87 // pred_region
          %979 = dma.done %s973, 16
        $region156: #{tpu_custom_call.1} parent=87 // pred_fallthru
          _
        %p980 = pneg %p70
        %p981 = pneg %p67
        %s982 = sand.u32 %s54, 1
        %s983 = scalar_lea.sflag [#allocation7], %s982
        %s984 = sand.u32 %s83, 1
        %s985 = scalar_lea.vmem [#allocation6], %s984
        %p986 = pneg %p96
        %p987 = pneg %p93
        %s988 = sand.u32 %s54, 1
        %s989 = scalar_lea.sflag [#allocation7], %s988
        %s990 = sand.u32 %s109, 1
        %s991 = scalar_lea.vmem [#allocation8], %s990
        %p992 = pneg %p122
        %p993 = pneg %p119
        %s994 = sand.u32 %s54, 1
        %s995 = scalar_lea.sflag [#allocation10], %s994
        %s996 = sand.u32 %s135, 1
        %s997 = smul.addr %s996, 32
        %s998 = scalar_lea.vmem [#allocation9], %s997
        %p999 = pneg %p148
        %p1000 = pneg %p145
        %s1001 = sand.u32 %s54, 1
        %s1002 = scalar_lea.sflag [#allocation10], %s1001
        %s1003 = sand.u32 %s161, 1
        %s1004 = scalar_lea.vmem [#allocation11], %s1003
        %p1005 = pneg %p174
        %p1006 = pneg %p171
        %s1007 = sand.u32 %s54, 1
        %s1008 = scalar_lea.sflag [#allocation13], %s1007
        %s1009 = sand.u32 %s187, 1
        %s1010 = smul.addr %s1009, 32
        %s1011 = scalar_lea.vmem [#allocation12], %s1010
        %p1012 = pneg %p200
        %p1013 = pneg %p197
        %s1014 = sand.u32 %s54, 1
        %s1015 = scalar_lea.sflag [#allocation13], %s1014
        %s1016 = sand.u32 %s213, 1
        %s1017 = scalar_lea.vmem [#allocation14], %s1016
        %p1018 = pneg %p226
        %p1019 = pneg %p223
        %s1020 = sand.u32 %s54, 1
        %s1021 = scalar_lea.sflag [#allocation16], %s1020
        %s1022 = sand.u32 %s239, 1
        %s1023 = smul.addr %s1022, 32
        %s1024 = scalar_lea.vmem [#allocation15], %s1023
        %p1025 = pneg %p252
        %p1026 = pneg %p249
        %s1027 = sand.u32 %s54, 1
        %s1028 = scalar_lea.sflag [#allocation16], %s1027
        %s1029 = sand.u32 %s265, 1
        %s1030 = scalar_lea.vmem [#allocation17], %s1029
        %p1031 = pneg %p278
        %p1032 = pneg %p275
        %s1033 = sand.u32 %s54, 1
        %s1034 = scalar_lea.sflag [#allocation19], %s1033
        %s1035 = sand.u32 %s291, 1
        %s1036 = smul.addr %s1035, 32
        %s1037 = scalar_lea.vmem [#allocation18], %s1036
        %p1038 = pneg %p304
        %p1039 = pneg %p301
        %s1040 = sand.u32 %s54, 1
        %s1041 = scalar_lea.sflag [#allocation19], %s1040
        %s1042 = sand.u32 %s317, 1
        %s1043 = scalar_lea.vmem [#allocation20], %s1042
        %p1044 = pneg %p330
        %p1045 = pneg %p327
        %s1046 = sand.u32 %s54, 1
        %s1047 = scalar_lea.sflag [#allocation22], %s1046
        %s1048 = sand.u32 %s343, 1
        %s1049 = scalar_lea.vmem [#allocation21], %s1048
        %p1050 = pneg %p356
        %p1051 = pneg %p353
        %s1052 = sand.u32 %s54, 1
        %s1053 = scalar_lea.sflag [#allocation22], %s1052
        %s1054 = sand.u32 %s369, 1
        %s1055 = scalar_lea.vmem [#allocation23], %s1054
        %p1056 = pneg %p382
        %p1057 = pneg %p379
        %s1058 = sand.u32 %s54, 1
        %s1059 = scalar_lea.sflag [#allocation25], %s1058
        %s1060 = sand.u32 %s395, 1
        %s1061 = smul.addr %s1060, 32
        %s1062 = scalar_lea.vmem [#allocation24], %s1061
        %p1063 = pneg %p408
        %p1064 = pneg %p405
        %s1065 = sand.u32 %s54, 1
        %s1066 = scalar_lea.sflag [#allocation25], %s1065
        %s1067 = sand.u32 %s421, 1
        %s1068 = scalar_lea.vmem [#allocation26], %s1067
        %p1069 = pneg %p434
        %p1070 = pneg %p431
        %s1071 = sand.u32 %s54, 1
        %s1072 = scalar_lea.sflag [#allocation28], %s1071
        %s1073 = sand.u32 %s447, 1
        %s1074 = smul.addr %s1073, 128
        %s1075 = scalar_lea.vmem [#allocation27], %s1074
        %p1076 = pneg %p460
        %p1077 = pneg %p457
        %s1078 = sand.u32 %s54, 1
        %s1079 = scalar_lea.sflag [#allocation28], %s1078
        %s1080 = sand.u32 %s473, 1
        %s1081 = scalar_lea.vmem [#allocation29], %s1080
        %p1082 = pneg %p486
        %p1083 = pneg %p483
        %p1084 = pneg %p507
        %p1085 = pneg %p504
        %p1086 = scmp.eq.s32.totalorder %s54, 0
        // Predicated region
        $region157: #{tpu_custom_call.1} parent=87 // pred_check
          %p1087 = pneg %p1086
        $region158: #{tpu_custom_call.1} parent=87 // pred_check_branch
          %1089 = sbr.rel (%p1087) target = $region160
        $region159: #{tpu_custom_call.1} parent=87 // pred_region
          %v1090 = vld [vmem:[#allocation3] sm:$0xff]
          %v1091 = vld [vmem:[#allocation3 + $0x8] sm:$0xff]
          %vm1092 = vcmask 261120
          %1093 = vst.msk [vmem:[#allocation2] sm:$0xff] %vm1092, %v1090
          %1094 = vst.msk [vmem:[#allocation2 + $0x8] sm:$0xff] %vm1092, %v1091
        $region160: #{tpu_custom_call.1} parent=87 // pred_fallthru
          _
        %v1095 = vld [vmem:[%s849] sm:$0x1]
        %v1096 = vld [vmem:[%s857] sm:$0x1]
        %v1097 = vld [vmem:[%s866] sm:$0xff]
        %v1098 = vld [vmem:[%s866 + $0x8] sm:$0xff]
        %v1099 = vld [vmem:[%s866 + $0x10] sm:$0xff]
        %v1100 = vld [vmem:[%s866 + $0x18] sm:$0xff]
        %v1101 = vld [vmem:[%s874] sm:$0x1]
        %v1102 = vld [vmem:[%s883] sm:$0xff]
        %v1103 = vld [vmem:[%s883 + $0x8] sm:$0xff]
        %v1104 = vld [vmem:[%s883 + $0x10] sm:$0xff]
        %v1105 = vld [vmem:[%s883 + $0x18] sm:$0xff]
        %v1106 = vld [vmem:[%s891] sm:$0x1]
        %v1107 = vld [vmem:[%s900] sm:$0xff]
        %v1108 = vld [vmem:[%s900 + $0x8] sm:$0xff]
        %v1109 = vld [vmem:[%s900 + $0x10] sm:$0xff]
        %v1110 = vld [vmem:[%s900 + $0x18] sm:$0xff]
        %v1111 = vld [vmem:[%s908] sm:$0x1]
        %v1112 = vld [vmem:[%s917] sm:$0xff]
        %v1113 = vld [vmem:[%s917 + $0x8] sm:$0xff]
        %v1114 = vld [vmem:[%s917 + $0x10] sm:$0xff]
        %v1115 = vld [vmem:[%s917 + $0x18] sm:$0xff]
        %v1116 = vld [vmem:[%s925] sm:$0x1]
        %v1117 = vld [vmem:[%s933] sm:$0x1]
        %v1118 = vld [vmem:[%s941] sm:$0x1]
        %v1119 = vld [vmem:[%s950] sm:$0xff]
        %v1120 = vld [vmem:[%s950 + $0x8] sm:$0xff]
        %v1121 = vld [vmem:[%s950 + $0x10] sm:$0xff]
        %v1122 = vld [vmem:[%s950 + $0x18] sm:$0xff]
        %v1123 = vld [vmem:[%s958] sm:$0x1]
        %v1124 = vld [vmem:[%s967] sm:$0xff]
        %v1125 = vld [vmem:[%s967 + $0x8] sm:$0xff]
        %v1126 = vld [vmem:[%s967 + $0x10] sm:$0xff]
        %v1127 = vld [vmem:[%s967 + $0x18] sm:$0xff]
        %v1128 = vld [vmem:[%s967 + $0x20] sm:$0xff]
        %v1129 = vld [vmem:[%s967 + $0x28] sm:$0xff]
        %v1130 = vld [vmem:[%s967 + $0x30] sm:$0xff]
        %v1131 = vld [vmem:[%s967 + $0x38] sm:$0xff]
        %v1132 = vld [vmem:[%s967 + $0x40] sm:$0xff]
        %v1133 = vld [vmem:[%s967 + $0x48] sm:$0xff]
        %v1134 = vld [vmem:[%s967 + $0x50] sm:$0xff]
        %v1135 = vld [vmem:[%s967 + $0x58] sm:$0xff]
        %v1136 = vld [vmem:[%s967 + $0x60] sm:$0xff]
        %v1137 = vld [vmem:[%s967 + $0x68] sm:$0xff]
        %v1138 = vld [vmem:[%s967 + $0x70] sm:$0xff]
        %v1139 = vld [vmem:[%s967 + $0x78] sm:$0xff]
        %v1140 = vld [vmem:[%s975] sm:$0x1]
        %v1141 = vld [vmem:[#allocation2] sm:$0xff]
        %v1142 = vld [vmem:[#allocation2 + $0x8] sm:$0xff]
        %vm1143 = vcmask 261120
        %v1144 = vsel %vm1143, %v1141, 0.0
        %1145 = vadd.xlane.f32.xlu0 %v1144
        %v1146 = vpop.xlane.xlu0 %1145
        %v1147 = vsel %vm1143, %v1142, 0.0
        %1148 = vadd.xlane.f32.xlu0 %v1147
        %v1149 = vpop.xlane.xlu0 %1148
        %v1150 = vrcp.pop 32.0
        %v1151 = vmul.f32 %v1146, %v1150
        %v1152 = vmul.f32 %v1149, %v1150
        %v1153 = vsub.f32 %v1141, %v1151
        %v1154 = vsub.f32 %v1142, %v1152
        %v1155 = vmul.f32 %v1153, %v1153
        %v1156 = vmul.f32 %v1154, %v1154
        %v1157 = vsel %vm1143, %v1155, 0.0
        %1158 = vadd.xlane.f32.xlu0 %v1157
        %v1159 = vpop.xlane.xlu0 %1158
        %v1160 = vsel %vm1143, %v1156, 0.0
        %1161 = vadd.xlane.f32.xlu0 %v1160
        %v1162 = vpop.xlane.xlu0 %1161
        %v1163 = vmul.f32 %v1159, %v1150
        %v1164 = vmul.f32 %v1162, %v1150
        %v1165 = vadd.f32 %v1163, 1e-05
        %v1166 = vadd.f32 %v1164, 1e-05
        %v1167 = vrsqrt.pop %v1165
        %v1168 = vrsqrt.pop %v1166
        %v1169 = vmul.f32 %v1153, %v1167
        %v1170 = vmul.f32 %v1154, %v1168
        %v1172 = vlaneseq
        %v1173 = vshrl.u32 %v1172, 7
        %v1174 = vsub.s32 0, %v1173
        %v1175 = vrot.slane %v1095, %v1174
        %v1177 = vmul.f32 %v1169, %v1175
        %v1178 = vmul.f32 %v1170, %v1175
        %v1180 = vlaneseq
        %v1181 = vshrl.u32 %v1180, 7
        %v1182 = vsub.s32 0, %v1181
        %v1183 = vrot.slane %v1096, %v1182
        %v1185 = vadd.f32 %v1177, %v1183
        %v1186 = vadd.f32 %v1178, %v1183
        %v1188 = vlaneseq
        %v1189 = vshrl.u32 %v1188, 7
        %v1190 = vsub.s32 0, %v1189
        %v1191 = vrot.slane %v1101, %v1190
        %v1194 = vsel %vm1143, %v1185, 0
        %v1197 = vsel %vm1143, %v1186, 0
        %1199 = vmatprep.subr.mxu0 0.0
        %1200 = vmatpush1.msra.mxu0 %v1097
        %1201 = vmatprep.subr.mxu0 0.0
        %1202 = vmatpush1.msra.mxu0 %v1098
        %1203 = vmatprep.subr.mxu0 0.0
        %1204 = vmatpush1.msra.mxu0 %v1099
        %1205 = vmatprep.subr.mxu0 0.0
        %1206 = vmatpush1.msra.mxu0 %v1100
        %1207 = vmatprep.subr.mxu0 0.0
        %1208 = vmatpush1.msra.mxu0 0.0
        %1209 = vmatprep.subr.mxu0 0.0
        %1210 = vmatpush1.msra.mxu0 0.0
        %1211 = vmatprep.subr.mxu0 0.0
        %1212 = vmatpush1.msra.mxu0 0.0
        %1213 = vmatprep.subr.mxu0 0.0
        %1214 = vmatpush1.msra.mxu0 0.0
        %1215 = vmatprep.subr.mxu0 0.0
        %1216 = vmatpush1.msra.mxu0 0.0
        %1217 = vmatprep.subr.mxu0 0.0
        %1218 = vmatpush1.msra.mxu0 0.0
        %1219 = vmatprep.subr.mxu0 0.0
        %1220 = vmatpush1.msra.mxu0 0.0
        %1221 = vmatprep.subr.mxu0 0.0
        %1222 = vmatpush1.msra.mxu0 0.0
        %1223 = vmatprep.subr.mxu0 0.0
        %1224 = vmatpush1.msra.mxu0 0.0
        %1225 = vmatprep.subr.mxu0 0.0
        %1226 = vmatpush1.msra.mxu0 0.0
        %1227 = vmatprep.subr.mxu0 0.0
        %1228 = vmatpush1.msra.mxu0 0.0
        %1229 = vmatprep.subr.mxu0 0.0
        %1230 = vmatpush1.msra.mxu0 0.0
        %1231 = vmatprep.subr.mxu0 0.0
        %1232 = vmatpush1.msra.mxu0 0.0
        %1233 = vmatprep.subr.mxu0 0.0
        %1234 = vmatpush1.msra.mxu0 0.0
        %1235 = vmatprep.subr.mxu0 0.0
        %1236 = vmatpush1.msra.mxu0 0.0
        %1237 = vmatprep.subr.mxu0 0.0
        %1238 = vmatpush1.msra.mxu0 0.0
        %1239 = vmatprep.subr.mxu0 0.0
        %1240 = vmatpush1.msra.mxu0 0.0
        %1241 = vmatprep.subr.mxu0 0.0
        %1242 = vmatpush1.msra.mxu0 0.0
        %1243 = vmatprep.subr.mxu0 0.0
        %1244 = vmatpush1.msra.mxu0 0.0
        %1245 = vmatprep.subr.mxu0 0.0
        %1246 = vmatpush1.msra.mxu0 0.0
        %1247 = vmatprep.subr.mxu0 0.0
        %1248 = vmatpush1.msra.mxu0 0.0
        %1249 = vmatprep.subr.mxu0 0.0
        %1250 = vmatpush1.msra.mxu0 0.0
        %1251 = vmatprep.subr.mxu0 0.0
        %1252 = vmatpush1.msra.mxu0 0.0
        %1253 = vmatprep.subr.mxu0 0.0
        %1254 = vmatpush1.msra.mxu0 0.0
        %1255 = vmatprep.subr.mxu0 0.0
        %1256 = vmatpush1.msra.mxu0 0.0
        %1257 = vmatprep.subr.mxu0 0.0
        %1258 = vmatpush1.msra.mxu0 0.0
        %1259 = vmatprep.subr.mxu0 0.0
        %1260 = vmatpush1.msra.mxu0 0.0
        %1261 = vmatprep.subr.mxu0 0.0
        %1262 = vmatpush1.msra.mxu0 0.0
        %1263 = vmatprep.mubr.f32.mxu0 0.0
        %1264 = vmatmul.mubr.f32.gmra.mrb[0].mxu0 %v1194
        %v1265 = vpop.f32.mrb[0].mxu0
        %v1266 = vadd.f32 %v1191, %v1265
        %v1267 = vpop.f32.mrb[0].mxu0
        %1268 = vmatprep.mubr.f32.mxu0 0.0
        %1269 = vmatmul.mubr.f32.gmra.mrb[0].mxu0 %v1197
        %v1270 = vpop.f32.mrb[0].mxu0
        %v1271 = vadd.f32 %v1191, %v1270
        %v1272 = vpop.f32.mrb[0].mxu0
        %1273 = vdwg.mxu0
        %v1274 = vmul.f32 %v1266, 0.17677669
        %v1275 = vmul.f32 %v1271, 0.17677669
        %v1277 = vlaneseq
        %v1278 = vshrl.u32 %v1277, 7
        %v1279 = vsub.s32 0, %v1278
        %v1280 = vrot.slane %v1106, %v1279
        %1282 = vmatprep.subr.mxu0 0.0
        %1283 = vmatpush1.msra.mxu0 %v1102
        %1284 = vmatprep.subr.mxu0 0.0
        %1285 = vmatpush1.msra.mxu0 %v1103
        %1286 = vmatprep.subr.mxu0 0.0
        %1287 = vmatpush1.msra.mxu0 %v1104
        %1288 = vmatprep.subr.mxu0 0.0
        %1289 = vmatpush1.msra.mxu0 %v1105
        %1290 = vmatprep.subr.mxu0 0.0
        %1291 = vmatpush1.msra.mxu0 0.0
        %1292 = vmatprep.subr.mxu0 0.0
        %1293 = vmatpush1.msra.mxu0 0.0
        %1294 = vmatprep.subr.mxu0 0.0
        %1295 = vmatpush1.msra.mxu0 0.0
        %1296 = vmatprep.subr.mxu0 0.0
        %1297 = vmatpush1.msra.mxu0 0.0
        %1298 = vmatprep.subr.mxu0 0.0
        %1299 = vmatpush1.msra.mxu0 0.0
        %1300 = vmatprep.subr.mxu0 0.0
        %1301 = vmatpush1.msra.mxu0 0.0
        %1302 = vmatprep.subr.mxu0 0.0
        %1303 = vmatpush1.msra.mxu0 0.0
        %1304 = vmatprep.subr.mxu0 0.0
        %1305 = vmatpush1.msra.mxu0 0.0
        %1306 = vmatprep.subr.mxu0 0.0
        %1307 = vmatpush1.msra.mxu0 0.0
        %1308 = vmatprep.subr.mxu0 0.0
        %1309 = vmatpush1.msra.mxu0 0.0
        %1310 = vmatprep.subr.mxu0 0.0
        %1311 = vmatpush1.msra.mxu0 0.0
        %1312 = vmatprep.subr.mxu0 0.0
        %1313 = vmatpush1.msra.mxu0 0.0
        %1314 = vmatprep.subr.mxu0 0.0
        %1315 = vmatpush1.msra.mxu0 0.0
        %1316 = vmatprep.subr.mxu0 0.0
        %1317 = vmatpush1.msra.mxu0 0.0
        %1318 = vmatprep.subr.mxu0 0.0
        %1319 = vmatpush1.msra.mxu0 0.0
        %1320 = vmatprep.subr.mxu0 0.0
        %1321 = vmatpush1.msra.mxu0 0.0
        %1322 = vmatprep.subr.mxu0 0.0
        %1323 = vmatpush1.msra.mxu0 0.0
        %1324 = vmatprep.subr.mxu0 0.0
        %1325 = vmatpush1.msra.mxu0 0.0
        %1326 = vmatprep.subr.mxu0 0.0
        %1327 = vmatpush1.msra.mxu0 0.0
        %1328 = vmatprep.subr.mxu0 0.0
        %1329 = vmatpush1.msra.mxu0 0.0
        %1330 = vmatprep.subr.mxu0 0.0
        %1331 = vmatpush1.msra.mxu0 0.0
        %1332 = vmatprep.subr.mxu0 0.0
        %1333 = vmatpush1.msra.mxu0 0.0
        %1334 = vmatprep.subr.mxu0 0.0
        %1335 = vmatpush1.msra.mxu0 0.0
        %1336 = vmatprep.subr.mxu0 0.0
        %1337 = vmatpush1.msra.mxu0 0.0
        %1338 = vmatprep.subr.mxu0 0.0
        %1339 = vmatpush1.msra.mxu0 0.0
        %1340 = vmatprep.subr.mxu0 0.0
        %1341 = vmatpush1.msra.mxu0 0.0
        %1342 = vmatprep.subr.mxu0 0.0
        %1343 = vmatpush1.msra.mxu0 0.0
        %1344 = vmatprep.subr.mxu0 0.0
        %1345 = vmatpush1.msra.mxu0 0.0
        %1346 = vmatprep.mubr.f32.mxu0 0.0
        %1347 = vmatmul.mubr.f32.gmra.mrb[0].mxu0 %v1194
        %v1348 = vpop.f32.mrb[0].mxu0
        %v1349 = vadd.f32 %v1280, %v1348
        %v1350 = vpop.f32.mrb[0].mxu0
        %1351 = vmatprep.mubr.f32.mxu0 0.0
        %1352 = vmatmul.mubr.f32.gmra.mrb[0].mxu0 %v1197
        %v1353 = vpop.f32.mrb[0].mxu0
        %v1354 = vadd.f32 %v1280, %v1353
        %v1355 = vpop.f32.mrb[0].mxu0
        %1356 = vdwg.mxu0
        %v1358 = vlaneseq
        %v1359 = vshrl.u32 %v1358, 7
        %v1360 = vsub.s32 0, %v1359
        %v1361 = vrot.slane %v1111, %v1360
        %1363 = vmatprep.subr.mxu0 0.0
        %1364 = vmatpush1.msra.mxu0 %v1107
        %1365 = vmatprep.subr.mxu0 0.0
        %1366 = vmatpush1.msra.mxu0 %v1108
        %1367 = vmatprep.subr.mxu0 0.0
        %1368 = vmatpush1.msra.mxu0 %v1109
        %1369 = vmatprep.subr.mxu0 0.0
        %1370 = vmatpush1.msra.mxu0 %v1110
        %1371 = vmatprep.subr.mxu0 0.0
        %1372 = vmatpush1.msra.mxu0 0.0
        %1373 = vmatprep.subr.mxu0 0.0
        %1374 = vmatpush1.msra.mxu0 0.0
        %1375 = vmatprep.subr.mxu0 0.0
        %1376 = vmatpush1.msra.mxu0 0.0
        %1377 = vmatprep.subr.mxu0 0.0
        %1378 = vmatpush1.msra.mxu0 0.0
        %1379 = vmatprep.subr.mxu0 0.0
        %1380 = vmatpush1.msra.mxu0 0.0
        %1381 = vmatprep.subr.mxu0 0.0
        %1382 = vmatpush1.msra.mxu0 0.0
        %1383 = vmatprep.subr.mxu0 0.0
        %1384 = vmatpush1.msra.mxu0 0.0
        %1385 = vmatprep.subr.mxu0 0.0
        %1386 = vmatpush1.msra.mxu0 0.0
        %1387 = vmatprep.subr.mxu0 0.0
        %1388 = vmatpush1.msra.mxu0 0.0
        %1389 = vmatprep.subr.mxu0 0.0
        %1390 = vmatpush1.msra.mxu0 0.0
        %1391 = vmatprep.subr.mxu0 0.0
        %1392 = vmatpush1.msra.mxu0 0.0
        %1393 = vmatprep.subr.mxu0 0.0
        %1394 = vmatpush1.msra.mxu0 0.0
        %1395 = vmatprep.subr.mxu0 0.0
        %1396 = vmatpush1.msra.mxu0 0.0
        %1397 = vmatprep.subr.mxu0 0.0
        %1398 = vmatpush1.msra.mxu0 0.0
        %1399 = vmatprep.subr.mxu0 0.0
        %1400 = vmatpush1.msra.mxu0 0.0
        %1401 = vmatprep.subr.mxu0 0.0
        %1402 = vmatpush1.msra.mxu0 0.0
        %1403 = vmatprep.subr.mxu0 0.0
        %1404 = vmatpush1.msra.mxu0 0.0
        %1405 = vmatprep.subr.mxu0 0.0
        %1406 = vmatpush1.msra.mxu0 0.0
        %1407 = vmatprep.subr.mxu0 0.0
        %1408 = vmatpush1.msra.mxu0 0.0
        %1409 = vmatprep.subr.mxu0 0.0
        %1410 = vmatpush1.msra.mxu0 0.0
        %1411 = vmatprep.subr.mxu0 0.0
        %1412 = vmatpush1.msra.mxu0 0.0
        %1413 = vmatprep.subr.mxu0 0.0
        %1414 = vmatpush1.msra.mxu0 0.0
        %1415 = vmatprep.subr.mxu0 0.0
        %1416 = vmatpush1.msra.mxu0 0.0
        %1417 = vmatprep.subr.mxu0 0.0
        %1418 = vmatpush1.msra.mxu0 0.0
        %1419 = vmatprep.subr.mxu0 0.0
        %1420 = vmatpush1.msra.mxu0 0.0
        %1421 = vmatprep.subr.mxu0 0.0
        %1422 = vmatpush1.msra.mxu0 0.0
        %1423 = vmatprep.subr.mxu0 0.0
        %1424 = vmatpush1.msra.mxu0 0.0
        %1425 = vmatprep.subr.mxu0 0.0
        %1426 = vmatpush1.msra.mxu0 0.0
        %1427 = vmatprep.mubr.f32.mxu0 0.0
        %1428 = vmatmul.mubr.f32.gmra.mrb[0].mxu0 %v1194
        %v1429 = vpop.f32.mrb[0].mxu0
        %v1430 = vadd.f32 %v1361, %v1429
        %v1431 = vpop.f32.mrb[0].mxu0
        %1432 = vmatprep.mubr.f32.mxu0 0.0
        %1433 = vmatmul.mubr.f32.gmra.mrb[0].mxu0 %v1197
        %v1434 = vpop.f32.mrb[0].mxu0
        %v1435 = vadd.f32 %v1361, %v1434
        %v1436 = vpop.f32.mrb[0].mxu0
        %1437 = vdwg.mxu0
        %v1438 = vlaneseq
        %v1439 = vshrl.u32 %v1438, 7
        %v1440 = vlaneseq
        %v1441 = vand.u32 %v1440, 127
        %vm1442 = vcmp.gt.s32.totalorder %v1441, %v1439
        %v1443 = vsel %vm1442, -1e+30, 0.0
        %vm1444 = vcmask 64512
        %v1446 = vsel %vm1444, %v1274, 0
        %v1449 = vsel %vm1444, %v1349, 0
        %1451 = vmatprep.subr.mxu0 0.0
        %1452 = vmatpush1.xpose.msra.mxu0 %v1449
        %1453 = vmatprep.subr.mxu0 0.0
        %1454 = vmatpush1.xpose.msra.mxu0 0.0
        %1455 = vmatprep.subr.mxu0 0.0
        %1456 = vmatpush1.xpose.msra.mxu0 0.0
        %1457 = vmatprep.subr.mxu0 0.0
        %1458 = vmatpush1.xpose.msra.mxu0 0.0
        %1459 = vmatprep.subr.mxu0 0.0
        %1460 = vmatpush1.xpose.msra.mxu0 0.0
        %1461 = vmatprep.subr.mxu0 0.0
        %1462 = vmatpush1.xpose.msra.mxu0 0.0
        %1463 = vmatprep.subr.mxu0 0.0
        %1464 = vmatpush1.xpose.msra.mxu0 0.0
        %1465 = vmatprep.subr.mxu0 0.0
        %1466 = vmatpush1.xpose.msra.mxu0 0.0
        %1467 = vmatprep.subr.mxu0 0.0
        %1468 = vmatpush1.xpose.msra.mxu0 0.0
        %1469 = vmatprep.subr.mxu0 0.0
        %1470 = vmatpush1.xpose.msra.mxu0 0.0
        %1471 = vmatprep.subr.mxu0 0.0
        %1472 = vmatpush1.xpose.msra.mxu0 0.0
        %1473 = vmatprep.subr.mxu0 0.0
        %1474 = vmatpush1.xpose.msra.mxu0 0.0
        %1475 = vmatprep.subr.mxu0 0.0
        %1476 = vmatpush1.xpose.msra.mxu0 0.0
        %1477 = vmatprep.subr.mxu0 0.0
        %1478 = vmatpush1.xpose.msra.mxu0 0.0
        %1479 = vmatprep.subr.mxu0 0.0
        %1480 = vmatpush1.xpose.msra.mxu0 0.0
        %1481 = vmatprep.subr.mxu0 0.0
        %1482 = vmatpush1.xpose.msra.mxu0 0.0
        %1483 = vmatprep.subr.mxu0 0.0
        %1484 = vmatpush1.xpose.msra.mxu0 0.0
        %1485 = vmatprep.subr.mxu0 0.0
        %1486 = vmatpush1.xpose.msra.mxu0 0.0
        %1487 = vmatprep.subr.mxu0 0.0
        %1488 = vmatpush1.xpose.msra.mxu0 0.0
        %1489 = vmatprep.subr.mxu0 0.0
        %1490 = vmatpush1.xpose.msra.mxu0 0.0
        %1491 = vmatprep.subr.mxu0 0.0
        %1492 = vmatpush1.xpose.msra.mxu0 0.0
        %1493 = vmatprep.subr.mxu0 0.0
        %1494 = vmatpush1.xpose.msra.mxu0 0.0
        %1495 = vmatprep.subr.mxu0 0.0
        %1496 = vmatpush1.xpose.msra.mxu0 0.0
        %1497 = vmatprep.subr.mxu0 0.0
        %1498 = vmatpush1.xpose.msra.mxu0 0.0
        %1499 = vmatprep.subr.mxu0 0.0
        %1500 = vmatpush1.xpose.msra.mxu0 0.0
        %1501 = vmatprep.subr.mxu0 0.0
        %1502 = vmatpush1.xpose.msra.mxu0 0.0
        %1503 = vmatprep.subr.mxu0 0.0
        %1504 = vmatpush1.xpose.msra.mxu0 0.0
        %1505 = vmatprep.subr.mxu0 0.0
        %1506 = vmatpush1.xpose.msra.mxu0 0.0
        %1507 = vmatprep.subr.mxu0 0.0
        %1508 = vmatpush1.xpose.msra.mxu0 0.0
        %1509 = vmatprep.subr.mxu0 0.0
        %1510 = vmatpush1.xpose.msra.mxu0 0.0
        %1511 = vmatprep.subr.mxu0 0.0
        %1512 = vmatpush1.xpose.msra.mxu0 0.0
        %1513 = vmatprep.subr.mxu0 0.0
        %1514 = vmatpush1.xpose.msra.mxu0 0.0
        %1515 = vmatprep.mubr.f32.mxu0 0.0
        %1516 = vmatmul.mubr.f32.gmra.mrb[0].mxu0 %v1446
        %v1517 = vpop.f32.mrb[0].mxu0
        %v1518 = vadd.f32 %v1443, %v1517
        %v1519 = vpop.f32.mrb[0].mxu0
        %1520 = vdwg.mxu0
        %v1522 = vsel %vm1444, %v1275, 0
        %v1525 = vsel %vm1444, %v1354, 0
        %1527 = vmatprep.subr.mxu0 0.0
        %1528 = vmatpush1.xpose.msra.mxu0 %v1525
        %1529 = vmatprep.subr.mxu0 0.0
        %1530 = vmatpush1.xpose.msra.mxu0 0.0
        %1531 = vmatprep.subr.mxu0 0.0
        %1532 = vmatpush1.xpose.msra.mxu0 0.0
        %1533 = vmatprep.subr.mxu0 0.0
        %1534 = vmatpush1.xpose.msra.mxu0 0.0
        %1535 = vmatprep.subr.mxu0 0.0
        %1536 = vmatpush1.xpose.msra.mxu0 0.0
        %1537 = vmatprep.subr.mxu0 0.0
        %1538 = vmatpush1.xpose.msra.mxu0 0.0
        %1539 = vmatprep.subr.mxu0 0.0
        %1540 = vmatpush1.xpose.msra.mxu0 0.0
        %1541 = vmatprep.subr.mxu0 0.0
        %1542 = vmatpush1.xpose.msra.mxu0 0.0
        %1543 = vmatprep.subr.mxu0 0.0
        %1544 = vmatpush1.xpose.msra.mxu0 0.0
        %1545 = vmatprep.subr.mxu0 0.0
        %1546 = vmatpush1.xpose.msra.mxu0 0.0
        %1547 = vmatprep.subr.mxu0 0.0
        %1548 = vmatpush1.xpose.msra.mxu0 0.0
        %1549 = vmatprep.subr.mxu0 0.0
        %1550 = vmatpush1.xpose.msra.mxu0 0.0
        %1551 = vmatprep.subr.mxu0 0.0
        %1552 = vmatpush1.xpose.msra.mxu0 0.0
        %1553 = vmatprep.subr.mxu0 0.0
        %1554 = vmatpush1.xpose.msra.mxu0 0.0
        %1555 = vmatprep.subr.mxu0 0.0
        %1556 = vmatpush1.xpose.msra.mxu0 0.0
        %1557 = vmatprep.subr.mxu0 0.0
        %1558 = vmatpush1.xpose.msra.mxu0 0.0
        %1559 = vmatprep.subr.mxu0 0.0
        %1560 = vmatpush1.xpose.msra.mxu0 0.0
        %1561 = vmatprep.subr.mxu0 0.0
        %1562 = vmatpush1.xpose.msra.mxu0 0.0
        %1563 = vmatprep.subr.mxu0 0.0
        %1564 = vmatpush1.xpose.msra.mxu0 0.0
        %1565 = vmatprep.subr.mxu0 0.0
        %1566 = vmatpush1.xpose.msra.mxu0 0.0
        %1567 = vmatprep.subr.mxu0 0.0
        %1568 = vmatpush1.xpose.msra.mxu0 0.0
        %1569 = vmatprep.subr.mxu0 0.0
        %1570 = vmatpush1.xpose.msra.mxu0 0.0
        %1571 = vmatprep.subr.mxu0 0.0
        %1572 = vmatpush1.xpose.msra.mxu0 0.0
        %1573 = vmatprep.subr.mxu0 0.0
        %1574 = vmatpush1.xpose.msra.mxu0 0.0
        %1575 = vmatprep.subr.mxu0 0.0
        %1576 = vmatpush1.xpose.msra.mxu0 0.0
        %1577 = vmatprep.subr.mxu0 0.0
        %1578 = vmatpush1.xpose.msra.mxu0 0.0
        %1579 = vmatprep.subr.mxu0 0.0
        %1580 = vmatpush1.xpose.msra.mxu0 0.0
        %1581 = vmatprep.subr.mxu0 0.0
        %1582 = vmatpush1.xpose.msra.mxu0 0.0
        %1583 = vmatprep.subr.mxu0 0.0
        %1584 = vmatpush1.xpose.msra.mxu0 0.0
        %1585 = vmatprep.subr.mxu0 0.0
        %1586 = vmatpush1.xpose.msra.mxu0 0.0
        %1587 = vmatprep.subr.mxu0 0.0
        %1588 = vmatpush1.xpose.msra.mxu0 0.0
        %1589 = vmatprep.subr.mxu0 0.0
        %1590 = vmatpush1.xpose.msra.mxu0 0.0
        %1591 = vmatprep.mubr.f32.mxu0 0.0
        %1592 = vmatmul.mubr.f32.gmra.mrb[0].mxu0 %v1522
        %v1593 = vpop.f32.mrb[0].mxu0
        %v1594 = vadd.f32 %v1443, %v1593
        %v1595 = vpop.f32.mrb[0].mxu0
        %1596 = vdwg.mxu0
        %v1597 = vsel %vm1444, %v1518, -inf
        %1598 = vmax.xlane.f32.xlu0 %v1597
        %v1599 = vpop.xlane.xlu0 %1598
        %v1600 = vsel %vm1444, %v1594, -inf
        %1601 = vmax.xlane.f32.xlu0 %v1600
        %v1602 = vpop.xlane.xlu0 %1601
        %v1603 = vsub.f32 %v1518, %v1599
        %v1604 = vsub.f32 %v1594, %v1602
        %v1605 = vmul.f32 %v1603, 1.442695
        %v1606 = vpow.pop %v1605
        %v1607 = vmul.f32 %v1604, 1.442695
        %v1608 = vpow.pop %v1607
        %v1609 = vsel %vm1444, %v1606, 0.0
        %1610 = vadd.xlane.f32.xlu0 %v1609
        %v1611 = vpop.xlane.xlu0 %1610
        %v1612 = vsel %vm1444, %v1608, 0.0
        %1613 = vadd.xlane.f32.xlu0 %v1612
        %v1614 = vpop.xlane.xlu0 %1613
        %v1615 = vrcp.pop %v1611
        %v1616 = vrcp.pop %v1614
        %v1617 = vmul.f32 %v1606, %v1615
        %v1618 = vmul.f32 %v1608, %v1616
        %v1620 = vsel %vm1444, %v1617, 0
        %1622 = vmatprep.subr.mxu0 0.0
        %1623 = vmatpush1.msra.mxu0 %v1430
        %1624 = vmatprep.subr.mxu0 0.0
        %1625 = vmatpush1.msra.mxu0 0.0
        %1626 = vmatprep.subr.mxu0 0.0
        %1627 = vmatpush1.msra.mxu0 0.0
        %1628 = vmatprep.subr.mxu0 0.0
        %1629 = vmatpush1.msra.mxu0 0.0
        %1630 = vmatprep.subr.mxu0 0.0
        %1631 = vmatpush1.msra.mxu0 0.0
        %1632 = vmatprep.subr.mxu0 0.0
        %1633 = vmatpush1.msra.mxu0 0.0
        %1634 = vmatprep.subr.mxu0 0.0
        %1635 = vmatpush1.msra.mxu0 0.0
        %1636 = vmatprep.subr.mxu0 0.0
        %1637 = vmatpush1.msra.mxu0 0.0
        %1638 = vmatprep.subr.mxu0 0.0
        %1639 = vmatpush1.msra.mxu0 0.0
        %1640 = vmatprep.subr.mxu0 0.0
        %1641 = vmatpush1.msra.mxu0 0.0
        %1642 = vmatprep.subr.mxu0 0.0
        %1643 = vmatpush1.msra.mxu0 0.0
        %1644 = vmatprep.subr.mxu0 0.0
        %1645 = vmatpush1.msra.mxu0 0.0
        %1646 = vmatprep.subr.mxu0 0.0
        %1647 = vmatpush1.msra.mxu0 0.0
        %1648 = vmatprep.subr.mxu0 0.0
        %1649 = vmatpush1.msra.mxu0 0.0
        %1650 = vmatprep.subr.mxu0 0.0
        %1651 = vmatpush1.msra.mxu0 0.0
        %1652 = vmatprep.subr.mxu0 0.0
        %1653 = vmatpush1.msra.mxu0 0.0
        %1654 = vmatprep.subr.mxu0 0.0
        %1655 = vmatpush1.msra.mxu0 0.0
        %1656 = vmatprep.subr.mxu0 0.0
        %1657 = vmatpush1.msra.mxu0 0.0
        %1658 = vmatprep.subr.mxu0 0.0
        %1659 = vmatpush1.msra.mxu0 0.0
        %1660 = vmatprep.subr.mxu0 0.0
        %1661 = vmatpush1.msra.mxu0 0.0
        %1662 = vmatprep.subr.mxu0 0.0
        %1663 = vmatpush1.msra.mxu0 0.0
        %1664 = vmatprep.subr.mxu0 0.0
        %1665 = vmatpush1.msra.mxu0 0.0
        %1666 = vmatprep.subr.mxu0 0.0
        %1667 = vmatpush1.msra.mxu0 0.0
        %1668 = vmatprep.subr.mxu0 0.0
        %1669 = vmatpush1.msra.mxu0 0.0
        %1670 = vmatprep.subr.mxu0 0.0
        %1671 = vmatpush1.msra.mxu0 0.0
        %1672 = vmatprep.subr.mxu0 0.0
        %1673 = vmatpush1.msra.mxu0 0.0
        %1674 = vmatprep.subr.mxu0 0.0
        %1675 = vmatpush1.msra.mxu0 0.0
        %1676 = vmatprep.subr.mxu0 0.0
        %1677 = vmatpush1.msra.mxu0 0.0
        %1678 = vmatprep.subr.mxu0 0.0
        %1679 = vmatpush1.msra.mxu0 0.0
        %1680 = vmatprep.subr.mxu0 0.0
        %1681 = vmatpush1.msra.mxu0 0.0
        %1682 = vmatprep.subr.mxu0 0.0
        %1683 = vmatpush1.msra.mxu0 0.0
        %1684 = vmatprep.subr.mxu0 0.0
        %1685 = vmatpush1.msra.mxu0 0.0
        %1686 = vmatprep.mubr.f32.mxu0 0.0
        %1687 = vmatmul.mubr.f32.gmra.mrb[0].mxu0 %v1620
        %v1688 = vpop.f32.mrb[0].mxu0
        %v1689 = vadd.f32 0.0, %v1688
        %v1690 = vpop.f32.mrb[0].mxu0
        %1691 = vdwg.mxu0
        %v1693 = vsel %vm1444, %v1618, 0
        %1695 = vmatprep.subr.mxu0 0.0
        %1696 = vmatpush1.msra.mxu0 %v1435
        %1697 = vmatprep.subr.mxu0 0.0
        %1698 = vmatpush1.msra.mxu0 0.0
        %1699 = vmatprep.subr.mxu0 0.0
        %1700 = vmatpush1.msra.mxu0 0.0
        %1701 = vmatprep.subr.mxu0 0.0
        %1702 = vmatpush1.msra.mxu0 0.0
        %1703 = vmatprep.subr.mxu0 0.0
        %1704 = vmatpush1.msra.mxu0 0.0
        %1705 = vmatprep.subr.mxu0 0.0
        %1706 = vmatpush1.msra.mxu0 0.0
        %1707 = vmatprep.subr.mxu0 0.0
        %1708 = vmatpush1.msra.mxu0 0.0
        %1709 = vmatprep.subr.mxu0 0.0
        %1710 = vmatpush1.msra.mxu0 0.0
        %1711 = vmatprep.subr.mxu0 0.0
        %1712 = vmatpush1.msra.mxu0 0.0
        %1713 = vmatprep.subr.mxu0 0.0
        %1714 = vmatpush1.msra.mxu0 0.0
        %1715 = vmatprep.subr.mxu0 0.0
        %1716 = vmatpush1.msra.mxu0 0.0
        %1717 = vmatprep.subr.mxu0 0.0
        %1718 = vmatpush1.msra.mxu0 0.0
        %1719 = vmatprep.subr.mxu0 0.0
        %1720 = vmatpush1.msra.mxu0 0.0
        %1721 = vmatprep.subr.mxu0 0.0
        %1722 = vmatpush1.msra.mxu0 0.0
        %1723 = vmatprep.subr.mxu0 0.0
        %1724 = vmatpush1.msra.mxu0 0.0
        %1725 = vmatprep.subr.mxu0 0.0
        %1726 = vmatpush1.msra.mxu0 0.0
        %1727 = vmatprep.subr.mxu0 0.0
        %1728 = vmatpush1.msra.mxu0 0.0
        %1729 = vmatprep.subr.mxu0 0.0
        %1730 = vmatpush1.msra.mxu0 0.0
        %1731 = vmatprep.subr.mxu0 0.0
        %1732 = vmatpush1.msra.mxu0 0.0
        %1733 = vmatprep.subr.mxu0 0.0
        %1734 = vmatpush1.msra.mxu0 0.0
        %1735 = vmatprep.subr.mxu0 0.0
        %1736 = vmatpush1.msra.mxu0 0.0
        %1737 = vmatprep.subr.mxu0 0.0
        %1738 = vmatpush1.msra.mxu0 0.0
        %1739 = vmatprep.subr.mxu0 0.0
        %1740 = vmatpush1.msra.mxu0 0.0
        %1741 = vmatprep.subr.mxu0 0.0
        %1742 = vmatpush1.msra.mxu0 0.0
        %1743 = vmatprep.subr.mxu0 0.0
        %1744 = vmatpush1.msra.mxu0 0.0
        %1745 = vmatprep.subr.mxu0 0.0
        %1746 = vmatpush1.msra.mxu0 0.0
        %1747 = vmatprep.subr.mxu0 0.0
        %1748 = vmatpush1.msra.mxu0 0.0
        %1749 = vmatprep.subr.mxu0 0.0
        %1750 = vmatpush1.msra.mxu0 0.0
        %1751 = vmatprep.subr.mxu0 0.0
        %1752 = vmatpush1.msra.mxu0 0.0
        %1753 = vmatprep.subr.mxu0 0.0
        %1754 = vmatpush1.msra.mxu0 0.0
        %1755 = vmatprep.subr.mxu0 0.0
        %1756 = vmatpush1.msra.mxu0 0.0
        %1757 = vmatprep.subr.mxu0 0.0
        %1758 = vmatpush1.msra.mxu0 0.0
        %1759 = vmatprep.mubr.f32.mxu0 0.0
        %1760 = vmatmul.mubr.f32.gmra.mrb[0].mxu0 %v1693
        %v1761 = vpop.f32.mrb[0].mxu0
        %v1762 = vadd.f32 0.0, %v1761
        %v1763 = vpop.f32.mrb[0].mxu0
        %1764 = vdwg.mxu0
        %1765 = vrot.lane.b32.xlu0 %v1274, 120
        %v1766 = vpop.permute.xlu0 %1765
        %1767 = vrot.lane.b32.xlu0 %v1349, 120
        %v1768 = vpop.permute.xlu0 %1767
        %v1769 = vsel %vm1444, %v1766, 0
        %v1771 = vsel %vm1444, %v1768, 0
        %1773 = vmatprep.subr.mxu0 0.0
        %1774 = vmatpush1.xpose.msra.mxu0 %v1771
        %1775 = vmatprep.subr.mxu0 0.0
        %1776 = vmatpush1.xpose.msra.mxu0 0.0
        %1777 = vmatprep.subr.mxu0 0.0
        %1778 = vmatpush1.xpose.msra.mxu0 0.0
        %1779 = vmatprep.subr.mxu0 0.0
        %1780 = vmatpush1.xpose.msra.mxu0 0.0
        %1781 = vmatprep.subr.mxu0 0.0
        %1782 = vmatpush1.xpose.msra.mxu0 0.0
        %1783 = vmatprep.subr.mxu0 0.0
        %1784 = vmatpush1.xpose.msra.mxu0 0.0
        %1785 = vmatprep.subr.mxu0 0.0
        %1786 = vmatpush1.xpose.msra.mxu0 0.0
        %1787 = vmatprep.subr.mxu0 0.0
        %1788 = vmatpush1.xpose.msra.mxu0 0.0
        %1789 = vmatprep.subr.mxu0 0.0
        %1790 = vmatpush1.xpose.msra.mxu0 0.0
        %1791 = vmatprep.subr.mxu0 0.0
        %1792 = vmatpush1.xpose.msra.mxu0 0.0
        %1793 = vmatprep.subr.mxu0 0.0
        %1794 = vmatpush1.xpose.msra.mxu0 0.0
        %1795 = vmatprep.subr.mxu0 0.0
        %1796 = vmatpush1.xpose.msra.mxu0 0.0
        %1797 = vmatprep.subr.mxu0 0.0
        %1798 = vmatpush1.xpose.msra.mxu0 0.0
        %1799 = vmatprep.subr.mxu0 0.0
        %1800 = vmatpush1.xpose.msra.mxu0 0.0
        %1801 = vmatprep.subr.mxu0 0.0
        %1802 = vmatpush1.xpose.msra.mxu0 0.0
        %1803 = vmatprep.subr.mxu0 0.0
        %1804 = vmatpush1.xpose.msra.mxu0 0.0
        %1805 = vmatprep.subr.mxu0 0.0
        %1806 = vmatpush1.xpose.msra.mxu0 0.0
        %1807 = vmatprep.subr.mxu0 0.0
        %1808 = vmatpush1.xpose.msra.mxu0 0.0
        %1809 = vmatprep.subr.mxu0 0.0
        %1810 = vmatpush1.xpose.msra.mxu0 0.0
        %1811 = vmatprep.subr.mxu0 0.0
        %1812 = vmatpush1.xpose.msra.mxu0 0.0
        %1813 = vmatprep.subr.mxu0 0.0
        %1814 = vmatpush1.xpose.msra.mxu0 0.0
        %1815 = vmatprep.subr.mxu0 0.0
        %1816 = vmatpush1.xpose.msra.mxu0 0.0
        %1817 = vmatprep.subr.mxu0 0.0
        %1818 = vmatpush1.xpose.msra.mxu0 0.0
        %1819 = vmatprep.subr.mxu0 0.0
        %1820 = vmatpush1.xpose.msra.mxu0 0.0
        %1821 = vmatprep.subr.mxu0 0.0
        %1822 = vmatpush1.xpose.msra.mxu0 0.0
        %1823 = vmatprep.subr.mxu0 0.0
        %1824 = vmatpush1.xpose.msra.mxu0 0.0
        %1825 = vmatprep.subr.mxu0 0.0
        %1826 = vmatpush1.xpose.msra.mxu0 0.0
        %1827 = vmatprep.subr.mxu0 0.0
        %1828 = vmatpush1.xpose.msra.mxu0 0.0
        %1829 = vmatprep.subr.mxu0 0.0
        %1830 = vmatpush1.xpose.msra.mxu0 0.0
        %1831 = vmatprep.subr.mxu0 0.0
        %1832 = vmatpush1.xpose.msra.mxu0 0.0
        %1833 = vmatprep.subr.mxu0 0.0
        %1834 = vmatpush1.xpose.msra.mxu0 0.0
        %1835 = vmatprep.subr.mxu0 0.0
        %1836 = vmatpush1.xpose.msra.mxu0 0.0
        %1837 = vmatprep.mubr.f32.mxu0 0.0
        %1838 = vmatmul.mubr.f32.gmra.mrb[0].mxu0 %v1769
        %v1839 = vpop.f32.mrb[0].mxu0
        %v1840 = vadd.f32 %v1443, %v1839
        %v1841 = vpop.f32.mrb[0].mxu0
        %1842 = vdwg.mxu0
        %1843 = vrot.lane.b32.xlu0 %v1275, 120
        %v1844 = vpop.permute.xlu0 %1843
        %1845 = vrot.lane.b32.xlu0 %v1354, 120
        %v1846 = vpop.permute.xlu0 %1845
        %v1847 = vsel %vm1444, %v1844, 0
        %v1849 = vsel %vm1444, %v1846, 0
        %1851 = vmatprep.subr.mxu0 0.0
        %1852 = vmatpush1.xpose.msra.mxu0 %v1849
        %1853 = vmatprep.subr.mxu0 0.0
        %1854 = vmatpush1.xpose.msra.mxu0 0.0
        %1855 = vmatprep.subr.mxu0 0.0
        %1856 = vmatpush1.xpose.msra.mxu0 0.0
        %1857 = vmatprep.subr.mxu0 0.0
        %1858 = vmatpush1.xpose.msra.mxu0 0.0
        %1859 = vmatprep.subr.mxu0 0.0
        %1860 = vmatpush1.xpose.msra.mxu0 0.0
        %1861 = vmatprep.subr.mxu0 0.0
        %1862 = vmatpush1.xpose.msra.mxu0 0.0
        %1863 = vmatprep.subr.mxu0 0.0
        %1864 = vmatpush1.xpose.msra.mxu0 0.0
        %1865 = vmatprep.subr.mxu0 0.0
        %1866 = vmatpush1.xpose.msra.mxu0 0.0
        %1867 = vmatprep.subr.mxu0 0.0
        %1868 = vmatpush1.xpose.msra.mxu0 0.0
        %1869 = vmatprep.subr.mxu0 0.0
        %1870 = vmatpush1.xpose.msra.mxu0 0.0
        %1871 = vmatprep.subr.mxu0 0.0
        %1872 = vmatpush1.xpose.msra.mxu0 0.0
        %1873 = vmatprep.subr.mxu0 0.0
        %1874 = vmatpush1.xpose.msra.mxu0 0.0
        %1875 = vmatprep.subr.mxu0 0.0
        %1876 = vmatpush1.xpose.msra.mxu0 0.0
        %1877 = vmatprep.subr.mxu0 0.0
        %1878 = vmatpush1.xpose.msra.mxu0 0.0
        %1879 = vmatprep.subr.mxu0 0.0
        %1880 = vmatpush1.xpose.msra.mxu0 0.0
        %1881 = vmatprep.subr.mxu0 0.0
        %1882 = vmatpush1.xpose.msra.mxu0 0.0
        %1883 = vmatprep.subr.mxu0 0.0
        %1884 = vmatpush1.xpose.msra.mxu0 0.0
        %1885 = vmatprep.subr.mxu0 0.0
        %1886 = vmatpush1.xpose.msra.mxu0 0.0
        %1887 = vmatprep.subr.mxu0 0.0
        %1888 = vmatpush1.xpose.msra.mxu0 0.0
        %1889 = vmatprep.subr.mxu0 0.0
        %1890 = vmatpush1.xpose.msra.mxu0 0.0
        %1891 = vmatprep.subr.mxu0 0.0
        %1892 = vmatpush1.xpose.msra.mxu0 0.0
        %1893 = vmatprep.subr.mxu0 0.0
        %1894 = vmatpush1.xpose.msra.mxu0 0.0
        %1895 = vmatprep.subr.mxu0 0.0
        %1896 = vmatpush1.xpose.msra.mxu0 0.0
        %1897 = vmatprep.subr.mxu0 0.0
        %1898 = vmatpush1.xpose.msra.mxu0 0.0
        %1899 = vmatprep.subr.mxu0 0.0
        %1900 = vmatpush1.xpose.msra.mxu0 0.0
        %1901 = vmatprep.subr.mxu0 0.0
        %1902 = vmatpush1.xpose.msra.mxu0 0.0
        %1903 = vmatprep.subr.mxu0 0.0
        %1904 = vmatpush1.xpose.msra.mxu0 0.0
        %1905 = vmatprep.subr.mxu0 0.0
        %1906 = vmatpush1.xpose.msra.mxu0 0.0
        %1907 = vmatprep.subr.mxu0 0.0
        %1908 = vmatpush1.xpose.msra.mxu0 0.0
        %1909 = vmatprep.subr.mxu0 0.0
        %1910 = vmatpush1.xpose.msra.mxu0 0.0
        %1911 = vmatprep.subr.mxu0 0.0
        %1912 = vmatpush1.xpose.msra.mxu0 0.0
        %1913 = vmatprep.subr.mxu0 0.0
        %1914 = vmatpush1.xpose.msra.mxu0 0.0
        %1915 = vmatprep.mubr.f32.mxu0 0.0
        %1916 = vmatmul.mubr.f32.gmra.mrb[0].mxu0 %v1847
        %v1917 = vpop.f32.mrb[0].mxu0
        %v1918 = vadd.f32 %v1443, %v1917
        %v1919 = vpop.f32.mrb[0].mxu0
        %1920 = vdwg.mxu0
        %v1921 = vsel %vm1444, %v1840, -inf
        %1922 = vmax.xlane.f32.xlu0 %v1921
        %v1923 = vpop.xlane.xlu0 %1922
        %v1924 = vsel %vm1444, %v1918, -inf
        %1925 = vmax.xlane.f32.xlu0 %v1924
        %v1926 = vpop.xlane.xlu0 %1925
        %v1927 = vsub.f32 %v1840, %v1923
        %v1928 = vsub.f32 %v1918, %v1926
        %v1929 = vmul.f32 %v1927, 1.442695
        %v1930 = vpow.pop %v1929
        %v1931 = vmul.f32 %v1928, 1.442695
        %v1932 = vpow.pop %v1931
        %v1933 = vsel %vm1444, %v1930, 0.0
        %1934 = vadd.xlane.f32.xlu0 %v1933
        %v1935 = vpop.xlane.xlu0 %1934
        %v1936 = vsel %vm1444, %v1932, 0.0
        %1937 = vadd.xlane.f32.xlu0 %v1936
        %v1938 = vpop.xlane.xlu0 %1937
        %v1939 = vrcp.pop %v1935
        %v1940 = vrcp.pop %v1938
        %v1941 = vmul.f32 %v1930, %v1939
        %v1942 = vmul.f32 %v1932, %v1940
        %1944 = vrot.lane.b32.xlu0 %v1430, 120
        %v1945 = vpop.permute.xlu0 %1944
        %v1948 = vsel %vm1444, %v1941, 0
        %1950 = vmatprep.subr.mxu0 0.0
        %1951 = vmatpush1.msra.mxu0 %v1945
        %1952 = vmatprep.subr.mxu0 0.0
        %1953 = vmatpush1.msra.mxu0 0.0
        %1954 = vmatprep.subr.mxu0 0.0
        %1955 = vmatpush1.msra.mxu0 0.0
        %1956 = vmatprep.subr.mxu0 0.0
        %1957 = vmatpush1.msra.mxu0 0.0
        %1958 = vmatprep.subr.mxu0 0.0
        %1959 = vmatpush1.msra.mxu0 0.0
        %1960 = vmatprep.subr.mxu0 0.0
        %1961 = vmatpush1.msra.mxu0 0.0
        %1962 = vmatprep.subr.mxu0 0.0
        %1963 = vmatpush1.msra.mxu0 0.0
        %1964 = vmatprep.subr.mxu0 0.0
        %1965 = vmatpush1.msra.mxu0 0.0
        %1966 = vmatprep.subr.mxu0 0.0
        %1967 = vmatpush1.msra.mxu0 0.0
        %1968 = vmatprep.subr.mxu0 0.0
        %1969 = vmatpush1.msra.mxu0 0.0
        %1970 = vmatprep.subr.mxu0 0.0
        %1971 = vmatpush1.msra.mxu0 0.0
        %1972 = vmatprep.subr.mxu0 0.0
        %1973 = vmatpush1.msra.mxu0 0.0
        %1974 = vmatprep.subr.mxu0 0.0
        %1975 = vmatpush1.msra.mxu0 0.0
        %1976 = vmatprep.subr.mxu0 0.0
        %1977 = vmatpush1.msra.mxu0 0.0
        %1978 = vmatprep.subr.mxu0 0.0
        %1979 = vmatpush1.msra.mxu0 0.0
        %1980 = vmatprep.subr.mxu0 0.0
        %1981 = vmatpush1.msra.mxu0 0.0
        %1982 = vmatprep.subr.mxu0 0.0
        %1983 = vmatpush1.msra.mxu0 0.0
        %1984 = vmatprep.subr.mxu0 0.0
        %1985 = vmatpush1.msra.mxu0 0.0
        %1986 = vmatprep.subr.mxu0 0.0
        %1987 = vmatpush1.msra.mxu0 0.0
        %1988 = vmatprep.subr.mxu0 0.0
        %1989 = vmatpush1.msra.mxu0 0.0
        %1990 = vmatprep.subr.mxu0 0.0
        %1991 = vmatpush1.msra.mxu0 0.0
        %1992 = vmatprep.subr.mxu0 0.0
        %1993 = vmatpush1.msra.mxu0 0.0
        %1994 = vmatprep.subr.mxu0 0.0
        %1995 = vmatpush1.msra.mxu0 0.0
        %1996 = vmatprep.subr.mxu0 0.0
        %1997 = vmatpush1.msra.mxu0 0.0
        %1998 = vmatprep.subr.mxu0 0.0
        %1999 = vmatpush1.msra.mxu0 0.0
        %2000 = vmatprep.subr.mxu0 0.0
        %2001 = vmatpush1.msra.mxu0 0.0
        %2002 = vmatprep.subr.mxu0 0.0
        %2003 = vmatpush1.msra.mxu0 0.0
        %2004 = vmatprep.subr.mxu0 0.0
        %2005 = vmatpush1.msra.mxu0 0.0
        %2006 = vmatprep.subr.mxu0 0.0
        %2007 = vmatpush1.msra.mxu0 0.0
        %2008 = vmatprep.subr.mxu0 0.0
        %2009 = vmatpush1.msra.mxu0 0.0
        %2010 = vmatprep.subr.mxu0 0.0
        %2011 = vmatpush1.msra.mxu0 0.0
        %2012 = vmatprep.subr.mxu0 0.0
        %2013 = vmatpush1.msra.mxu0 0.0
        %2014 = vmatprep.mubr.f32.mxu0 0.0
        %2015 = vmatmul.mubr.f32.gmra.mrb[0].mxu0 %v1948
        %v2016 = vpop.f32.mrb[0].mxu0
        %v2017 = vadd.f32 0.0, %v2016
        %v2018 = vpop.f32.mrb[0].mxu0
        %2019 = vdwg.mxu0
        %2021 = vrot.lane.b32.xlu0 %v1435, 120
        %v2022 = vpop.permute.xlu0 %2021
        %v2025 = vsel %vm1444, %v1942, 0
        %2027 = vmatprep.subr.mxu0 0.0
        %2028 = vmatpush1.msra.mxu0 %v2022
        %2029 = vmatprep.subr.mxu0 0.0
        %2030 = vmatpush1.msra.mxu0 0.0
        %2031 = vmatprep.subr.mxu0 0.0
        %2032 = vmatpush1.msra.mxu0 0.0
        %2033 = vmatprep.subr.mxu0 0.0
        %2034 = vmatpush1.msra.mxu0 0.0
        %2035 = vmatprep.subr.mxu0 0.0
        %2036 = vmatpush1.msra.mxu0 0.0
        %2037 = vmatprep.subr.mxu0 0.0
        %2038 = vmatpush1.msra.mxu0 0.0
        %2039 = vmatprep.subr.mxu0 0.0
        %2040 = vmatpush1.msra.mxu0 0.0
        %2041 = vmatprep.subr.mxu0 0.0
        %2042 = vmatpush1.msra.mxu0 0.0
        %2043 = vmatprep.subr.mxu0 0.0
        %2044 = vmatpush1.msra.mxu0 0.0
        %2045 = vmatprep.subr.mxu0 0.0
        %2046 = vmatpush1.msra.mxu0 0.0
        %2047 = vmatprep.subr.mxu0 0.0
        %2048 = vmatpush1.msra.mxu0 0.0
        %2049 = vmatprep.subr.mxu0 0.0
        %2050 = vmatpush1.msra.mxu0 0.0
        %2051 = vmatprep.subr.mxu0 0.0
        %2052 = vmatpush1.msra.mxu0 0.0
        %2053 = vmatprep.subr.mxu0 0.0
        %2054 = vmatpush1.msra.mxu0 0.0
        %2055 = vmatprep.subr.mxu0 0.0
        %2056 = vmatpush1.msra.mxu0 0.0
        %2057 = vmatprep.subr.mxu0 0.0
        %2058 = vmatpush1.msra.mxu0 0.0
        %2059 = vmatprep.subr.mxu0 0.0
        %2060 = vmatpush1.msra.mxu0 0.0
        %2061 = vmatprep.subr.mxu0 0.0
        %2062 = vmatpush1.msra.mxu0 0.0
        %2063 = vmatprep.subr.mxu0 0.0
        %2064 = vmatpush1.msra.mxu0 0.0
        %2065 = vmatprep.subr.mxu0 0.0
        %2066 = vmatpush1.msra.mxu0 0.0
        %2067 = vmatprep.subr.mxu0 0.0
        %2068 = vmatpush1.msra.mxu0 0.0
        %2069 = vmatprep.subr.mxu0 0.0
        %2070 = vmatpush1.msra.mxu0 0.0
        %2071 = vmatprep.subr.mxu0 0.0
        %2072 = vmatpush1.msra.mxu0 0.0
        %2073 = vmatprep.subr.mxu0 0.0
        %2074 = vmatpush1.msra.mxu0 0.0
        %2075 = vmatprep.subr.mxu0 0.0
        %2076 = vmatpush1.msra.mxu0 0.0
        %2077 = vmatprep.subr.mxu0 0.0
        %2078 = vmatpush1.msra.mxu0 0.0
        %2079 = vmatprep.subr.mxu0 0.0
        %2080 = vmatpush1.msra.mxu0 0.0
        %2081 = vmatprep.subr.mxu0 0.0
        %2082 = vmatpush1.msra.mxu0 0.0
        %2083 = vmatprep.subr.mxu0 0.0
        %2084 = vmatpush1.msra.mxu0 0.0
        %2085 = vmatprep.subr.mxu0 0.0
        %2086 = vmatpush1.msra.mxu0 0.0
        %2087 = vmatprep.subr.mxu0 0.0
        %2088 = vmatpush1.msra.mxu0 0.0
        %2089 = vmatprep.subr.mxu0 0.0
        %2090 = vmatpush1.msra.mxu0 0.0
        %2091 = vmatprep.mubr.f32.mxu0 0.0
        %2092 = vmatmul.mubr.f32.gmra.mrb[0].mxu0 %v2025
        %v2093 = vpop.f32.mrb[0].mxu0
        %v2094 = vadd.f32 0.0, %v2093
        %v2095 = vpop.f32.mrb[0].mxu0
        %2096 = vdwg.mxu0
        %v2098 = vsel %vm1444, %v2017, 0
        %v2101 = vsel %vm1444, %v2094, 0
        %2103 = vmatprep.subr.mxu0 0.0
        %2104 = vmatpush1.msra.mxu0 %v1113
        %2105 = vmatprep.subr.mxu0 0.0
        %2106 = vmatpush1.msra.mxu0 0.0
        %2107 = vmatprep.subr.mxu0 0.0
        %2108 = vmatpush1.msra.mxu0 0.0
        %2109 = vmatprep.subr.mxu0 0.0
        %2110 = vmatpush1.msra.mxu0 0.0
        %2111 = vmatprep.subr.mxu0 0.0
        %2112 = vmatpush1.msra.mxu0 0.0
        %2113 = vmatprep.subr.mxu0 0.0
        %2114 = vmatpush1.msra.mxu0 0.0
        %2115 = vmatprep.subr.mxu0 0.0
        %2116 = vmatpush1.msra.mxu0 0.0
        %2117 = vmatprep.subr.mxu0 0.0
        %2118 = vmatpush1.msra.mxu0 0.0
        %2119 = vmatprep.subr.mxu0 0.0
        %2120 = vmatpush1.msra.mxu0 0.0
        %2121 = vmatprep.subr.mxu0 0.0
        %2122 = vmatpush1.msra.mxu0 0.0
        %2123 = vmatprep.subr.mxu0 0.0
        %2124 = vmatpush1.msra.mxu0 0.0
        %2125 = vmatprep.subr.mxu0 0.0
        %2126 = vmatpush1.msra.mxu0 0.0
        %2127 = vmatprep.subr.mxu0 0.0
        %2128 = vmatpush1.msra.mxu0 0.0
        %2129 = vmatprep.subr.mxu0 0.0
        %2130 = vmatpush1.msra.mxu0 0.0
        %2131 = vmatprep.subr.mxu0 0.0
        %2132 = vmatpush1.msra.mxu0 0.0
        %2133 = vmatprep.subr.mxu0 0.0
        %2134 = vmatpush1.msra.mxu0 0.0
        %2135 = vmatprep.subr.mxu0 0.0
        %2136 = vmatpush1.msra.mxu0 0.0
        %2137 = vmatprep.subr.mxu0 0.0
        %2138 = vmatpush1.msra.mxu0 0.0
        %2139 = vmatprep.subr.mxu0 0.0
        %2140 = vmatpush1.msra.mxu0 0.0
        %2141 = vmatprep.subr.mxu0 0.0
        %2142 = vmatpush1.msra.mxu0 0.0
        %2143 = vmatprep.subr.mxu0 0.0
        %2144 = vmatpush1.msra.mxu0 0.0
        %2145 = vmatprep.subr.mxu0 0.0
        %2146 = vmatpush1.msra.mxu0 0.0
        %2147 = vmatprep.subr.mxu0 0.0
        %2148 = vmatpush1.msra.mxu0 0.0
        %2149 = vmatprep.subr.mxu0 0.0
        %2150 = vmatpush1.msra.mxu0 0.0
        %2151 = vmatprep.subr.mxu0 0.0
        %2152 = vmatpush1.msra.mxu0 0.0
        %2153 = vmatprep.subr.mxu0 0.0
        %2154 = vmatpush1.msra.mxu0 0.0
        %2155 = vmatprep.subr.mxu0 0.0
        %2156 = vmatpush1.msra.mxu0 0.0
        %2157 = vmatprep.subr.mxu0 0.0
        %2158 = vmatpush1.msra.mxu0 0.0
        %2159 = vmatprep.subr.mxu0 0.0
        %2160 = vmatpush1.msra.mxu0 0.0
        %2161 = vmatprep.subr.mxu0 0.0
        %2162 = vmatpush1.msra.mxu0 0.0
        %2163 = vmatprep.subr.mxu0 0.0
        %2164 = vmatpush1.msra.mxu0 0.0
        %2165 = vmatprep.subr.mxu0 0.0
        %2166 = vmatpush1.msra.mxu0 0.0
        %2167 = vmatprep.mubr.f32.mxu0 0.0
        %2168 = vmatmul.mubr.f32.gmra.mrb[0].mxu0 %v2098
        %v2169 = vpop.f32.mrb[0].mxu0
        %v2170 = vadd.f32 0.0, %v2169
        %v2171 = vpop.f32.mrb[0].mxu0
        %2172 = vmatprep.mubr.f32.mxu0 0.0
        %2173 = vmatmul.mubr.f32.gmra.mrb[0].mxu0 %v2101
        %v2174 = vpop.f32.mrb[0].mxu0
        %v2175 = vadd.f32 0.0, %v2174
        %v2176 = vpop.f32.mrb[0].mxu0
        %2177 = vdwg.mxu0
        %v2179 = vsel %vm1444, %v1689, 0
        %v2182 = vsel %vm1444, %v1762, 0
        %2184 = vmatprep.subr.mxu0 0.0
        %2185 = vmatpush1.msra.mxu0 %v1112
        %2186 = vmatprep.subr.mxu0 0.0
        %2187 = vmatpush1.msra.mxu0 0.0
        %2188 = vmatprep.subr.mxu0 0.0
        %2189 = vmatpush1.msra.mxu0 0.0
        %2190 = vmatprep.subr.mxu0 0.0
        %2191 = vmatpush1.msra.mxu0 0.0
        %2192 = vmatprep.subr.mxu0 0.0
        %2193 = vmatpush1.msra.mxu0 0.0
        %2194 = vmatprep.subr.mxu0 0.0
        %2195 = vmatpush1.msra.mxu0 0.0
        %2196 = vmatprep.subr.mxu0 0.0
        %2197 = vmatpush1.msra.mxu0 0.0
        %2198 = vmatprep.subr.mxu0 0.0
        %2199 = vmatpush1.msra.mxu0 0.0
        %2200 = vmatprep.subr.mxu0 0.0
        %2201 = vmatpush1.msra.mxu0 0.0
        %2202 = vmatprep.subr.mxu0 0.0
        %2203 = vmatpush1.msra.mxu0 0.0
        %2204 = vmatprep.subr.mxu0 0.0
        %2205 = vmatpush1.msra.mxu0 0.0
        %2206 = vmatprep.subr.mxu0 0.0
        %2207 = vmatpush1.msra.mxu0 0.0
        %2208 = vmatprep.subr.mxu0 0.0
        %2209 = vmatpush1.msra.mxu0 0.0
        %2210 = vmatprep.subr.mxu0 0.0
        %2211 = vmatpush1.msra.mxu0 0.0
        %2212 = vmatprep.subr.mxu0 0.0
        %2213 = vmatpush1.msra.mxu0 0.0
        %2214 = vmatprep.subr.mxu0 0.0
        %2215 = vmatpush1.msra.mxu0 0.0
        %2216 = vmatprep.subr.mxu0 0.0
        %2217 = vmatpush1.msra.mxu0 0.0
        %2218 = vmatprep.subr.mxu0 0.0
        %2219 = vmatpush1.msra.mxu0 0.0
        %2220 = vmatprep.subr.mxu0 0.0
        %2221 = vmatpush1.msra.mxu0 0.0
        %2222 = vmatprep.subr.mxu0 0.0
        %2223 = vmatpush1.msra.mxu0 0.0
        %2224 = vmatprep.subr.mxu0 0.0
        %2225 = vmatpush1.msra.mxu0 0.0
        %2226 = vmatprep.subr.mxu0 0.0
        %2227 = vmatpush1.msra.mxu0 0.0
        %2228 = vmatprep.subr.mxu0 0.0
        %2229 = vmatpush1.msra.mxu0 0.0
        %2230 = vmatprep.subr.mxu0 0.0
        %2231 = vmatpush1.msra.mxu0 0.0
        %2232 = vmatprep.subr.mxu0 0.0
        %2233 = vmatpush1.msra.mxu0 0.0
        %2234 = vmatprep.subr.mxu0 0.0
        %2235 = vmatpush1.msra.mxu0 0.0
        %2236 = vmatprep.subr.mxu0 0.0
        %2237 = vmatpush1.msra.mxu0 0.0
        %2238 = vmatprep.subr.mxu0 0.0
        %2239 = vmatpush1.msra.mxu0 0.0
        %2240 = vmatprep.subr.mxu0 0.0
        %2241 = vmatpush1.msra.mxu0 0.0
        %2242 = vmatprep.subr.mxu0 0.0
        %2243 = vmatpush1.msra.mxu0 0.0
        %2244 = vmatprep.subr.mxu0 0.0
        %2245 = vmatpush1.msra.mxu0 0.0
        %2246 = vmatprep.subr.mxu0 0.0
        %2247 = vmatpush1.msra.mxu0 0.0
        %2248 = vmatprep.mubr.f32.mxu0 0.0
        %2249 = vmatmul.mubr.f32.gmra.mrb[0].mxu0 %v2179
        %v2250 = vpop.f32.mrb[0].mxu0
        %v2251 = vadd.f32 %v2170, %v2250
        %v2252 = vpop.f32.mrb[0].mxu0
        %2253 = vmatprep.mubr.f32.mxu0 0.0
        %2254 = vmatmul.mubr.f32.gmra.mrb[0].mxu0 %v2182
        %v2255 = vpop.f32.mrb[0].mxu0
        %v2256 = vadd.f32 %v2175, %v2255
        %v2257 = vpop.f32.mrb[0].mxu0
        %2258 = vdwg.mxu0
        %2259 = vrot.lane.b32.xlu0 %v1274, 112
        %v2260 = vpop.permute.xlu0 %2259
        %2261 = vrot.lane.b32.xlu0 %v1349, 112
        %v2262 = vpop.permute.xlu0 %2261
        %v2263 = vsel %vm1444, %v2260, 0
        %v2265 = vsel %vm1444, %v2262, 0
        %2267 = vmatprep.subr.mxu0 0.0
        %2268 = vmatpush1.xpose.msra.mxu0 %v2265
        %2269 = vmatprep.subr.mxu0 0.0
        %2270 = vmatpush1.xpose.msra.mxu0 0.0
        %2271 = vmatprep.subr.mxu0 0.0
        %2272 = vmatpush1.xpose.msra.mxu0 0.0
        %2273 = vmatprep.subr.mxu0 0.0
        %2274 = vmatpush1.xpose.msra.mxu0 0.0
        %2275 = vmatprep.subr.mxu0 0.0
        %2276 = vmatpush1.xpose.msra.mxu0 0.0
        %2277 = vmatprep.subr.mxu0 0.0
        %2278 = vmatpush1.xpose.msra.mxu0 0.0
        %2279 = vmatprep.subr.mxu0 0.0
        %2280 = vmatpush1.xpose.msra.mxu0 0.0
        %2281 = vmatprep.subr.mxu0 0.0
        %2282 = vmatpush1.xpose.msra.mxu0 0.0
        %2283 = vmatprep.subr.mxu0 0.0
        %2284 = vmatpush1.xpose.msra.mxu0 0.0
        %2285 = vmatprep.subr.mxu0 0.0
        %2286 = vmatpush1.xpose.msra.mxu0 0.0
        %2287 = vmatprep.subr.mxu0 0.0
        %2288 = vmatpush1.xpose.msra.mxu0 0.0
        %2289 = vmatprep.subr.mxu0 0.0
        %2290 = vmatpush1.xpose.msra.mxu0 0.0
        %2291 = vmatprep.subr.mxu0 0.0
        %2292 = vmatpush1.xpose.msra.mxu0 0.0
        %2293 = vmatprep.subr.mxu0 0.0
        %2294 = vmatpush1.xpose.msra.mxu0 0.0
        %2295 = vmatprep.subr.mxu0 0.0
        %2296 = vmatpush1.xpose.msra.mxu0 0.0
        %2297 = vmatprep.subr.mxu0 0.0
        %2298 = vmatpush1.xpose.msra.mxu0 0.0
        %2299 = vmatprep.subr.mxu0 0.0
        %2300 = vmatpush1.xpose.msra.mxu0 0.0
        %2301 = vmatprep.subr.mxu0 0.0
        %2302 = vmatpush1.xpose.msra.mxu0 0.0
        %2303 = vmatprep.subr.mxu0 0.0
        %2304 = vmatpush1.xpose.msra.mxu0 0.0
        %2305 = vmatprep.subr.mxu0 0.0
        %2306 = vmatpush1.xpose.msra.mxu0 0.0
        %2307 = vmatprep.subr.mxu0 0.0
        %2308 = vmatpush1.xpose.msra.mxu0 0.0
        %2309 = vmatprep.subr.mxu0 0.0
        %2310 = vmatpush1.xpose.msra.mxu0 0.0
        %2311 = vmatprep.subr.mxu0 0.0
        %2312 = vmatpush1.xpose.msra.mxu0 0.0
        %2313 = vmatprep.subr.mxu0 0.0
        %2314 = vmatpush1.xpose.msra.mxu0 0.0
        %2315 = vmatprep.subr.mxu0 0.0
        %2316 = vmatpush1.xpose.msra.mxu0 0.0
        %2317 = vmatprep.subr.mxu0 0.0
        %2318 = vmatpush1.xpose.msra.mxu0 0.0
        %2319 = vmatprep.subr.mxu0 0.0
        %2320 = vmatpush1.xpose.msra.mxu0 0.0
        %2321 = vmatprep.subr.mxu0 0.0
        %2322 = vmatpush1.xpose.msra.mxu0 0.0
        %2323 = vmatprep.subr.mxu0 0.0
        %2324 = vmatpush1.xpose.msra.mxu0 0.0
        %2325 = vmatprep.subr.mxu0 0.0
        %2326 = vmatpush1.xpose.msra.mxu0 0.0
        %2327 = vmatprep.subr.mxu0 0.0
        %2328 = vmatpush1.xpose.msra.mxu0 0.0
        %2329 = vmatprep.subr.mxu0 0.0
        %2330 = vmatpush1.xpose.msra.mxu0 0.0
        %2331 = vmatprep.mubr.f32.mxu0 0.0
        %2332 = vmatmul.mubr.f32.gmra.mrb[0].mxu0 %v2263
        %v2333 = vpop.f32.mrb[0].mxu0
        %v2334 = vadd.f32 %v1443, %v2333
        %v2335 = vpop.f32.mrb[0].mxu0
        %2336 = vdwg.mxu0
        %2337 = vrot.lane.b32.xlu0 %v1275, 112
        %v2338 = vpop.permute.xlu0 %2337
        %2339 = vrot.lane.b32.xlu0 %v1354, 112
        %v2340 = vpop.permute.xlu0 %2339
        %v2341 = vsel %vm1444, %v2338, 0
        %v2343 = vsel %vm1444, %v2340, 0
        %2345 = vmatprep.subr.mxu0 0.0
        %2346 = vmatpush1.xpose.msra.mxu0 %v2343
        %2347 = vmatprep.subr.mxu0 0.0
        %2348 = vmatpush1.xpose.msra.mxu0 0.0
        %2349 = vmatprep.subr.mxu0 0.0
        %2350 = vmatpush1.xpose.msra.mxu0 0.0
        %2351 = vmatprep.subr.mxu0 0.0
        %2352 = vmatpush1.xpose.msra.mxu0 0.0
        %2353 = vmatprep.subr.mxu0 0.0
        %2354 = vmatpush1.xpose.msra.mxu0 0.0
        %2355 = vmatprep.subr.mxu0 0.0
        %2356 = vmatpush1.xpose.msra.mxu0 0.0
        %2357 = vmatprep.subr.mxu0 0.0
        %2358 = vmatpush1.xpose.msra.mxu0 0.0
        %2359 = vmatprep.subr.mxu0 0.0
        %2360 = vmatpush1.xpose.msra.mxu0 0.0
        %2361 = vmatprep.subr.mxu0 0.0
        %2362 = vmatpush1.xpose.msra.mxu0 0.0
        %2363 = vmatprep.subr.mxu0 0.0
        %2364 = vmatpush1.xpose.msra.mxu0 0.0
        %2365 = vmatprep.subr.mxu0 0.0
        %2366 = vmatpush1.xpose.msra.mxu0 0.0
        %2367 = vmatprep.subr.mxu0 0.0
        %2368 = vmatpush1.xpose.msra.mxu0 0.0
        %2369 = vmatprep.subr.mxu0 0.0
        %2370 = vmatpush1.xpose.msra.mxu0 0.0
        %2371 = vmatprep.subr.mxu0 0.0
        %2372 = vmatpush1.xpose.msra.mxu0 0.0
        %2373 = vmatprep.subr.mxu0 0.0
        %2374 = vmatpush1.xpose.msra.mxu0 0.0
        %2375 = vmatprep.subr.mxu0 0.0
        %2376 = vmatpush1.xpose.msra.mxu0 0.0
        %2377 = vmatprep.subr.mxu0 0.0
        %2378 = vmatpush1.xpose.msra.mxu0 0.0
        %2379 = vmatprep.subr.mxu0 0.0
        %2380 = vmatpush1.xpose.msra.mxu0 0.0
        %2381 = vmatprep.subr.mxu0 0.0
        %2382 = vmatpush1.xpose.msra.mxu0 0.0
        %2383 = vmatprep.subr.mxu0 0.0
        %2384 = vmatpush1.xpose.msra.mxu0 0.0
        %2385 = vmatprep.subr.mxu0 0.0
        %2386 = vmatpush1.xpose.msra.mxu0 0.0
        %2387 = vmatprep.subr.mxu0 0.0
        %2388 = vmatpush1.xpose.msra.mxu0 0.0
        %2389 = vmatprep.subr.mxu0 0.0
        %2390 = vmatpush1.xpose.msra.mxu0 0.0
        %2391 = vmatprep.subr.mxu0 0.0
        %2392 = vmatpush1.xpose.msra.mxu0 0.0
        %2393 = vmatprep.subr.mxu0 0.0
        %2394 = vmatpush1.xpose.msra.mxu0 0.0
        %2395 = vmatprep.subr.mxu0 0.0
        %2396 = vmatpush1.xpose.msra.mxu0 0.0
        %2397 = vmatprep.subr.mxu0 0.0
        %2398 = vmatpush1.xpose.msra.mxu0 0.0
        %2399 = vmatprep.subr.mxu0 0.0
        %2400 = vmatpush1.xpose.msra.mxu0 0.0
        %2401 = vmatprep.subr.mxu0 0.0
        %2402 = vmatpush1.xpose.msra.mxu0 0.0
        %2403 = vmatprep.subr.mxu0 0.0
        %2404 = vmatpush1.xpose.msra.mxu0 0.0
        %2405 = vmatprep.subr.mxu0 0.0
        %2406 = vmatpush1.xpose.msra.mxu0 0.0
        %2407 = vmatprep.subr.mxu0 0.0
        %2408 = vmatpush1.xpose.msra.mxu0 0.0
        %2409 = vmatprep.mubr.f32.mxu0 0.0
        %2410 = vmatmul.mubr.f32.gmra.mrb[0].mxu0 %v2341
        %v2411 = vpop.f32.mrb[0].mxu0
        %v2412 = vadd.f32 %v1443, %v2411
        %v2413 = vpop.f32.mrb[0].mxu0
        %2414 = vdwg.mxu0
        %v2415 = vsel %vm1444, %v2334, -inf
        %2416 = vmax.xlane.f32.xlu0 %v2415
        %v2417 = vpop.xlane.xlu0 %2416
        %v2418 = vsel %vm1444, %v2412, -inf
        %2419 = vmax.xlane.f32.xlu0 %v2418
        %v2420 = vpop.xlane.xlu0 %2419
        %v2421 = vsub.f32 %v2334, %v2417
        %v2422 = vsub.f32 %v2412, %v2420
        %v2423 = vmul.f32 %v2421, 1.442695
        %v2424 = vpow.pop %v2423
        %v2425 = vmul.f32 %v2422, 1.442695
        %v2426 = vpow.pop %v2425
        %v2427 = vsel %vm1444, %v2424, 0.0
        %2428 = vadd.xlane.f32.xlu0 %v2427
        %v2429 = vpop.xlane.xlu0 %2428
        %v2430 = vsel %vm1444, %v2426, 0.0
        %2431 = vadd.xlane.f32.xlu0 %v2430
        %v2432 = vpop.xlane.xlu0 %2431
        %v2433 = vrcp.pop %v2429
        %v2434 = vrcp.pop %v2432
        %v2435 = vmul.f32 %v2424, %v2433
        %v2436 = vmul.f32 %v2426, %v2434
        %2437 = vrot.lane.b32.xlu0 %v1430, 112
        %v2438 = vpop.permute.xlu0 %2437
        %v2441 = vsel %vm1444, %v2435, 0
        %2443 = vmatprep.subr.mxu0 0.0
        %2444 = vmatpush1.msra.mxu0 %v2438
        %2445 = vmatprep.subr.mxu0 0.0
        %2446 = vmatpush1.msra.mxu0 0.0
        %2447 = vmatprep.subr.mxu0 0.0
        %2448 = vmatpush1.msra.mxu0 0.0
        %2449 = vmatprep.subr.mxu0 0.0
        %2450 = vmatpush1.msra.mxu0 0.0
        %2451 = vmatprep.subr.mxu0 0.0
        %2452 = vmatpush1.msra.mxu0 0.0
        %2453 = vmatprep.subr.mxu0 0.0
        %2454 = vmatpush1.msra.mxu0 0.0
        %2455 = vmatprep.subr.mxu0 0.0
        %2456 = vmatpush1.msra.mxu0 0.0
        %2457 = vmatprep.subr.mxu0 0.0
        %2458 = vmatpush1.msra.mxu0 0.0
        %2459 = vmatprep.subr.mxu0 0.0
        %2460 = vmatpush1.msra.mxu0 0.0
        %2461 = vmatprep.subr.mxu0 0.0
        %2462 = vmatpush1.msra.mxu0 0.0
        %2463 = vmatprep.subr.mxu0 0.0
        %2464 = vmatpush1.msra.mxu0 0.0
        %2465 = vmatprep.subr.mxu0 0.0
        %2466 = vmatpush1.msra.mxu0 0.0
        %2467 = vmatprep.subr.mxu0 0.0
        %2468 = vmatpush1.msra.mxu0 0.0
        %2469 = vmatprep.subr.mxu0 0.0
        %2470 = vmatpush1.msra.mxu0 0.0
        %2471 = vmatprep.subr.mxu0 0.0
        %2472 = vmatpush1.msra.mxu0 0.0
        %2473 = vmatprep.subr.mxu0 0.0
        %2474 = vmatpush1.msra.mxu0 0.0
        %2475 = vmatprep.subr.mxu0 0.0
        %2476 = vmatpush1.msra.mxu0 0.0
        %2477 = vmatprep.subr.mxu0 0.0
        %2478 = vmatpush1.msra.mxu0 0.0
        %2479 = vmatprep.subr.mxu0 0.0
        %2480 = vmatpush1.msra.mxu0 0.0
        %2481 = vmatprep.subr.mxu0 0.0
        %2482 = vmatpush1.msra.mxu0 0.0
        %2483 = vmatprep.subr.mxu0 0.0
        %2484 = vmatpush1.msra.mxu0 0.0
        %2485 = vmatprep.subr.mxu0 0.0
        %2486 = vmatpush1.msra.mxu0 0.0
        %2487 = vmatprep.subr.mxu0 0.0
        %2488 = vmatpush1.msra.mxu0 0.0
        %2489 = vmatprep.subr.mxu0 0.0
        %2490 = vmatpush1.msra.mxu0 0.0
        %2491 = vmatprep.subr.mxu0 0.0
        %2492 = vmatpush1.msra.mxu0 0.0
        %2493 = vmatprep.subr.mxu0 0.0
        %2494 = vmatpush1.msra.mxu0 0.0
        %2495 = vmatprep.subr.mxu0 0.0
        %2496 = vmatpush1.msra.mxu0 0.0
        %2497 = vmatprep.subr.mxu0 0.0
        %2498 = vmatpush1.msra.mxu0 0.0
        %2499 = vmatprep.subr.mxu0 0.0
        %2500 = vmatpush1.msra.mxu0 0.0
        %2501 = vmatprep.subr.mxu0 0.0
        %2502 = vmatpush1.msra.mxu0 0.0
        %2503 = vmatprep.subr.mxu0 0.0
        %2504 = vmatpush1.msra.mxu0 0.0
        %2505 = vmatprep.subr.mxu0 0.0
        %2506 = vmatpush1.msra.mxu0 0.0
        %2507 = vmatprep.mubr.f32.mxu0 0.0
        %2508 = vmatmul.mubr.f32.gmra.mrb[0].mxu0 %v2441
        %v2509 = vpop.f32.mrb[0].mxu0
        %v2510 = vadd.f32 0.0, %v2509
        %v2511 = vpop.f32.mrb[0].mxu0
        %2512 = vdwg.mxu0
        %2513 = vrot.lane.b32.xlu0 %v1435, 112
        %v2514 = vpop.permute.xlu0 %2513
        %v2517 = vsel %vm1444, %v2436, 0
        %2519 = vmatprep.subr.mxu0 0.0
        %2520 = vmatpush1.msra.mxu0 %v2514
        %2521 = vmatprep.subr.mxu0 0.0
        %2522 = vmatpush1.msra.mxu0 0.0
        %2523 = vmatprep.subr.mxu0 0.0
        %2524 = vmatpush1.msra.mxu0 0.0
        %2525 = vmatprep.subr.mxu0 0.0
        %2526 = vmatpush1.msra.mxu0 0.0
        %2527 = vmatprep.subr.mxu0 0.0
        %2528 = vmatpush1.msra.mxu0 0.0
        %2529 = vmatprep.subr.mxu0 0.0
        %2530 = vmatpush1.msra.mxu0 0.0
        %2531 = vmatprep.subr.mxu0 0.0
        %2532 = vmatpush1.msra.mxu0 0.0
        %2533 = vmatprep.subr.mxu0 0.0
        %2534 = vmatpush1.msra.mxu0 0.0
        %2535 = vmatprep.subr.mxu0 0.0
        %2536 = vmatpush1.msra.mxu0 0.0
        %2537 = vmatprep.subr.mxu0 0.0
        %2538 = vmatpush1.msra.mxu0 0.0
        %2539 = vmatprep.subr.mxu0 0.0
        %2540 = vmatpush1.msra.mxu0 0.0
        %2541 = vmatprep.subr.mxu0 0.0
        %2542 = vmatpush1.msra.mxu0 0.0
        %2543 = vmatprep.subr.mxu0 0.0
        %2544 = vmatpush1.msra.mxu0 0.0
        %2545 = vmatprep.subr.mxu0 0.0
        %2546 = vmatpush1.msra.mxu0 0.0
        %2547 = vmatprep.subr.mxu0 0.0
        %2548 = vmatpush1.msra.mxu0 0.0
        %2549 = vmatprep.subr.mxu0 0.0
        %2550 = vmatpush1.msra.mxu0 0.0
        %2551 = vmatprep.subr.mxu0 0.0
        %2552 = vmatpush1.msra.mxu0 0.0
        %2553 = vmatprep.subr.mxu0 0.0
        %2554 = vmatpush1.msra.mxu0 0.0
        %2555 = vmatprep.subr.mxu0 0.0
        %2556 = vmatpush1.msra.mxu0 0.0
        %2557 = vmatprep.subr.mxu0 0.0
        %2558 = vmatpush1.msra.mxu0 0.0
        %2559 = vmatprep.subr.mxu0 0.0
        %2560 = vmatpush1.msra.mxu0 0.0
        %2561 = vmatprep.subr.mxu0 0.0
        %2562 = vmatpush1.msra.mxu0 0.0
        %2563 = vmatprep.subr.mxu0 0.0
        %2564 = vmatpush1.msra.mxu0 0.0
        %2565 = vmatprep.subr.mxu0 0.0
        %2566 = vmatpush1.msra.mxu0 0.0
        %2567 = vmatprep.subr.mxu0 0.0
        %2568 = vmatpush1.msra.mxu0 0.0
        %2569 = vmatprep.subr.mxu0 0.0
        %2570 = vmatpush1.msra.mxu0 0.0
        %2571 = vmatprep.subr.mxu0 0.0
        %2572 = vmatpush1.msra.mxu0 0.0
        %2573 = vmatprep.subr.mxu0 0.0
        %2574 = vmatpush1.msra.mxu0 0.0
        %2575 = vmatprep.subr.mxu0 0.0
        %2576 = vmatpush1.msra.mxu0 0.0
        %2577 = vmatprep.subr.mxu0 0.0
        %2578 = vmatpush1.msra.mxu0 0.0
        %2579 = vmatprep.subr.mxu0 0.0
        %2580 = vmatpush1.msra.mxu0 0.0
        %2581 = vmatprep.subr.mxu0 0.0
        %2582 = vmatpush1.msra.mxu0 0.0
        %2583 = vmatprep.mubr.f32.mxu0 0.0
        %2584 = vmatmul.mubr.f32.gmra.mrb[0].mxu0 %v2517
        %v2585 = vpop.f32.mrb[0].mxu0
        %v2586 = vadd.f32 0.0, %v2585
        %v2587 = vpop.f32.mrb[0].mxu0
        %2588 = vdwg.mxu0
        %v2590 = vsel %vm1444, %v2510, 0
        %v2593 = vsel %vm1444, %v2586, 0
        %2595 = vmatprep.subr.mxu0 0.0
        %2596 = vmatpush1.msra.mxu0 %v1114
        %2597 = vmatprep.subr.mxu0 0.0
        %2598 = vmatpush1.msra.mxu0 0.0
        %2599 = vmatprep.subr.mxu0 0.0
        %2600 = vmatpush1.msra.mxu0 0.0
        %2601 = vmatprep.subr.mxu0 0.0
        %2602 = vmatpush1.msra.mxu0 0.0
        %2603 = vmatprep.subr.mxu0 0.0
        %2604 = vmatpush1.msra.mxu0 0.0
        %2605 = vmatprep.subr.mxu0 0.0
        %2606 = vmatpush1.msra.mxu0 0.0
        %2607 = vmatprep.subr.mxu0 0.0
        %2608 = vmatpush1.msra.mxu0 0.0
        %2609 = vmatprep.subr.mxu0 0.0
        %2610 = vmatpush1.msra.mxu0 0.0
        %2611 = vmatprep.subr.mxu0 0.0
        %2612 = vmatpush1.msra.mxu0 0.0
        %2613 = vmatprep.subr.mxu0 0.0
        %2614 = vmatpush1.msra.mxu0 0.0
        %2615 = vmatprep.subr.mxu0 0.0
        %2616 = vmatpush1.msra.mxu0 0.0
        %2617 = vmatprep.subr.mxu0 0.0
        %2618 = vmatpush1.msra.mxu0 0.0
        %2619 = vmatprep.subr.mxu0 0.0
        %2620 = vmatpush1.msra.mxu0 0.0
        %2621 = vmatprep.subr.mxu0 0.0
        %2622 = vmatpush1.msra.mxu0 0.0
        %2623 = vmatprep.subr.mxu0 0.0
        %2624 = vmatpush1.msra.mxu0 0.0
        %2625 = vmatprep.subr.mxu0 0.0
        %2626 = vmatpush1.msra.mxu0 0.0
        %2627 = vmatprep.subr.mxu0 0.0
        %2628 = vmatpush1.msra.mxu0 0.0
        %2629 = vmatprep.subr.mxu0 0.0
        %2630 = vmatpush1.msra.mxu0 0.0
        %2631 = vmatprep.subr.mxu0 0.0
        %2632 = vmatpush1.msra.mxu0 0.0
        %2633 = vmatprep.subr.mxu0 0.0
        %2634 = vmatpush1.msra.mxu0 0.0
        %2635 = vmatprep.subr.mxu0 0.0
        %2636 = vmatpush1.msra.mxu0 0.0
        %2637 = vmatprep.subr.mxu0 0.0
        %2638 = vmatpush1.msra.mxu0 0.0
        %2639 = vmatprep.subr.mxu0 0.0
        %2640 = vmatpush1.msra.mxu0 0.0
        %2641 = vmatprep.subr.mxu0 0.0
        %2642 = vmatpush1.msra.mxu0 0.0
        %2643 = vmatprep.subr.mxu0 0.0
        %2644 = vmatpush1.msra.mxu0 0.0
        %2645 = vmatprep.subr.mxu0 0.0
        %2646 = vmatpush1.msra.mxu0 0.0
        %2647 = vmatprep.subr.mxu0 0.0
        %2648 = vmatpush1.msra.mxu0 0.0
        %2649 = vmatprep.subr.mxu0 0.0
        %2650 = vmatpush1.msra.mxu0 0.0
        %2651 = vmatprep.subr.mxu0 0.0
        %2652 = vmatpush1.msra.mxu0 0.0
        %2653 = vmatprep.subr.mxu0 0.0
        %2654 = vmatpush1.msra.mxu0 0.0
        %2655 = vmatprep.subr.mxu0 0.0
        %2656 = vmatpush1.msra.mxu0 0.0
        %2657 = vmatprep.subr.mxu0 0.0
        %2658 = vmatpush1.msra.mxu0 0.0
        %2659 = vmatprep.mubr.f32.mxu0 0.0
        %2660 = vmatmul.mubr.f32.gmra.mrb[0].mxu0 %v2590
        %v2661 = vpop.f32.mrb[0].mxu0
        %v2662 = vadd.f32 0.0, %v2661
        %v2663 = vpop.f32.mrb[0].mxu0
        %2664 = vmatprep.mubr.f32.mxu0 0.0
        %2665 = vmatmul.mubr.f32.gmra.mrb[0].mxu0 %v2593
        %v2666 = vpop.f32.mrb[0].mxu0
        %v2667 = vadd.f32 0.0, %v2666
        %v2668 = vpop.f32.mrb[0].mxu0
        %2669 = vdwg.mxu0
        %v2670 = vadd.f32 %v2251, %v2662
        %v2671 = vadd.f32 %v2256, %v2667
        %2672 = vrot.lane.b32.xlu0 %v1274, 104
        %v2673 = vpop.permute.xlu0 %2672
        %2674 = vrot.lane.b32.xlu0 %v1349, 104
        %v2675 = vpop.permute.xlu0 %2674
        %v2676 = vsel %vm1444, %v2673, 0
        %v2678 = vsel %vm1444, %v2675, 0
        %2680 = vmatprep.subr.mxu0 0.0
        %2681 = vmatpush1.xpose.msra.mxu0 %v2678
        %2682 = vmatprep.subr.mxu0 0.0
        %2683 = vmatpush1.xpose.msra.mxu0 0.0
        %2684 = vmatprep.subr.mxu0 0.0
        %2685 = vmatpush1.xpose.msra.mxu0 0.0
        %2686 = vmatprep.subr.mxu0 0.0
        %2687 = vmatpush1.xpose.msra.mxu0 0.0
        %2688 = vmatprep.subr.mxu0 0.0
        %2689 = vmatpush1.xpose.msra.mxu0 0.0
        %2690 = vmatprep.subr.mxu0 0.0
        %2691 = vmatpush1.xpose.msra.mxu0 0.0
        %2692 = vmatprep.subr.mxu0 0.0
        %2693 = vmatpush1.xpose.msra.mxu0 0.0
        %2694 = vmatprep.subr.mxu0 0.0
        %2695 = vmatpush1.xpose.msra.mxu0 0.0
        %2696 = vmatprep.subr.mxu0 0.0
        %2697 = vmatpush1.xpose.msra.mxu0 0.0
        %2698 = vmatprep.subr.mxu0 0.0
        %2699 = vmatpush1.xpose.msra.mxu0 0.0
        %2700 = vmatprep.subr.mxu0 0.0
        %2701 = vmatpush1.xpose.msra.mxu0 0.0
        %2702 = vmatprep.subr.mxu0 0.0
        %2703 = vmatpush1.xpose.msra.mxu0 0.0
        %2704 = vmatprep.subr.mxu0 0.0
        %2705 = vmatpush1.xpose.msra.mxu0 0.0
        %2706 = vmatprep.subr.mxu0 0.0
        %2707 = vmatpush1.xpose.msra.mxu0 0.0
        %2708 = vmatprep.subr.mxu0 0.0
        %2709 = vmatpush1.xpose.msra.mxu0 0.0
        %2710 = vmatprep.subr.mxu0 0.0
        %2711 = vmatpush1.xpose.msra.mxu0 0.0
        %2712 = vmatprep.subr.mxu0 0.0
        %2713 = vmatpush1.xpose.msra.mxu0 0.0
        %2714 = vmatprep.subr.mxu0 0.0
        %2715 = vmatpush1.xpose.msra.mxu0 0.0
        %2716 = vmatprep.subr.mxu0 0.0
        %2717 = vmatpush1.xpose.msra.mxu0 0.0
        %2718 = vmatprep.subr.mxu0 0.0
        %2719 = vmatpush1.xpose.msra.mxu0 0.0
        %2720 = vmatprep.subr.mxu0 0.0
        %2721 = vmatpush1.xpose.msra.mxu0 0.0
        %2722 = vmatprep.subr.mxu0 0.0
        %2723 = vmatpush1.xpose.msra.mxu0 0.0
        %2724 = vmatprep.subr.mxu0 0.0
        %2725 = vmatpush1.xpose.msra.mxu0 0.0
        %2726 = vmatprep.subr.mxu0 0.0
        %2727 = vmatpush1.xpose.msra.mxu0 0.0
        %2728 = vmatprep.subr.mxu0 0.0
        %2729 = vmatpush1.xpose.msra.mxu0 0.0
        %2730 = vmatprep.subr.mxu0 0.0
        %2731 = vmatpush1.xpose.msra.mxu0 0.0
        %2732 = vmatprep.subr.mxu0 0.0
        %2733 = vmatpush1.xpose.msra.mxu0 0.0
        %2734 = vmatprep.subr.mxu0 0.0
        %2735 = vmatpush1.xpose.msra.mxu0 0.0
        %2736 = vmatprep.subr.mxu0 0.0
        %2737 = vmatpush1.xpose.msra.mxu0 0.0
        %2738 = vmatprep.subr.mxu0 0.0
        %2739 = vmatpush1.xpose.msra.mxu0 0.0
        %2740 = vmatprep.subr.mxu0 0.0
        %2741 = vmatpush1.xpose.msra.mxu0 0.0
        %2742 = vmatprep.subr.mxu0 0.0
        %2743 = vmatpush1.xpose.msra.mxu0 0.0
        %2744 = vmatprep.mubr.f32.mxu0 0.0
        %2745 = vmatmul.mubr.f32.gmra.mrb[0].mxu0 %v2676
        %v2746 = vpop.f32.mrb[0].mxu0
        %v2747 = vadd.f32 %v1443, %v2746
        %v2748 = vpop.f32.mrb[0].mxu0
        %2749 = vdwg.mxu0
        %2750 = vrot.lane.b32.xlu0 %v1275, 104
        %v2751 = vpop.permute.xlu0 %2750
        %2752 = vrot.lane.b32.xlu0 %v1354, 104
        %v2753 = vpop.permute.xlu0 %2752
        %v2754 = vsel %vm1444, %v2751, 0
        %v2756 = vsel %vm1444, %v2753, 0
        %2758 = vmatprep.subr.mxu0 0.0
        %2759 = vmatpush1.xpose.msra.mxu0 %v2756
        %2760 = vmatprep.subr.mxu0 0.0
        %2761 = vmatpush1.xpose.msra.mxu0 0.0
        %2762 = vmatprep.subr.mxu0 0.0
        %2763 = vmatpush1.xpose.msra.mxu0 0.0
        %2764 = vmatprep.subr.mxu0 0.0
        %2765 = vmatpush1.xpose.msra.mxu0 0.0
        %2766 = vmatprep.subr.mxu0 0.0
        %2767 = vmatpush1.xpose.msra.mxu0 0.0
        %2768 = vmatprep.subr.mxu0 0.0
        %2769 = vmatpush1.xpose.msra.mxu0 0.0
        %2770 = vmatprep.subr.mxu0 0.0
        %2771 = vmatpush1.xpose.msra.mxu0 0.0
        %2772 = vmatprep.subr.mxu0 0.0
        %2773 = vmatpush1.xpose.msra.mxu0 0.0
        %2774 = vmatprep.subr.mxu0 0.0
        %2775 = vmatpush1.xpose.msra.mxu0 0.0
        %2776 = vmatprep.subr.mxu0 0.0
        %2777 = vmatpush1.xpose.msra.mxu0 0.0
        %2778 = vmatprep.subr.mxu0 0.0
        %2779 = vmatpush1.xpose.msra.mxu0 0.0
        %2780 = vmatprep.subr.mxu0 0.0
        %2781 = vmatpush1.xpose.msra.mxu0 0.0
        %2782 = vmatprep.subr.mxu0 0.0
        %2783 = vmatpush1.xpose.msra.mxu0 0.0
        %2784 = vmatprep.subr.mxu0 0.0
        %2785 = vmatpush1.xpose.msra.mxu0 0.0
        %2786 = vmatprep.subr.mxu0 0.0
        %2787 = vmatpush1.xpose.msra.mxu0 0.0
        %2788 = vmatprep.subr.mxu0 0.0
        %2789 = vmatpush1.xpose.msra.mxu0 0.0
        %2790 = vmatprep.subr.mxu0 0.0
        %2791 = vmatpush1.xpose.msra.mxu0 0.0
        %2792 = vmatprep.subr.mxu0 0.0
        %2793 = vmatpush1.xpose.msra.mxu0 0.0
        %2794 = vmatprep.subr.mxu0 0.0
        %2795 = vmatpush1.xpose.msra.mxu0 0.0
        %2796 = vmatprep.subr.mxu0 0.0
        %2797 = vmatpush1.xpose.msra.mxu0 0.0
        %2798 = vmatprep.subr.mxu0 0.0
        %2799 = vmatpush1.xpose.msra.mxu0 0.0
        %2800 = vmatprep.subr.mxu0 0.0
        %2801 = vmatpush1.xpose.msra.mxu0 0.0
        %2802 = vmatprep.subr.mxu0 0.0
        %2803 = vmatpush1.xpose.msra.mxu0 0.0
        %2804 = vmatprep.subr.mxu0 0.0
        %2805 = vmatpush1.xpose.msra.mxu0 0.0
        %2806 = vmatprep.subr.mxu0 0.0
        %2807 = vmatpush1.xpose.msra.mxu0 0.0
        %2808 = vmatprep.subr.mxu0 0.0
        %2809 = vmatpush1.xpose.msra.mxu0 0.0
        %2810 = vmatprep.subr.mxu0 0.0
        %2811 = vmatpush1.xpose.msra.mxu0 0.0
        %2812 = vmatprep.subr.mxu0 0.0
        %2813 = vmatpush1.xpose.msra.mxu0 0.0
        %2814 = vmatprep.subr.mxu0 0.0
        %2815 = vmatpush1.xpose.msra.mxu0 0.0
        %2816 = vmatprep.subr.mxu0 0.0
        %2817 = vmatpush1.xpose.msra.mxu0 0.0
        %2818 = vmatprep.subr.mxu0 0.0
        %2819 = vmatpush1.xpose.msra.mxu0 0.0
        %2820 = vmatprep.subr.mxu0 0.0
        %2821 = vmatpush1.xpose.msra.mxu0 0.0
        %2822 = vmatprep.mubr.f32.mxu0 0.0
        %2823 = vmatmul.mubr.f32.gmra.mrb[0].mxu0 %v2754
        %v2824 = vpop.f32.mrb[0].mxu0
        %v2825 = vadd.f32 %v1443, %v2824
        %v2826 = vpop.f32.mrb[0].mxu0
        %2827 = vdwg.mxu0
        %v2828 = vsel %vm1444, %v2747, -inf
        %2829 = vmax.xlane.f32.xlu0 %v2828
        %v2830 = vpop.xlane.xlu0 %2829
        %v2831 = vsel %vm1444, %v2825, -inf
        %2832 = vmax.xlane.f32.xlu0 %v2831
        %v2833 = vpop.xlane.xlu0 %2832
        %v2834 = vsub.f32 %v2747, %v2830
        %v2835 = vsub.f32 %v2825, %v2833
        %v2836 = vmul.f32 %v2834, 1.442695
        %v2837 = vpow.pop %v2836
        %v2838 = vmul.f32 %v2835, 1.442695
        %v2839 = vpow.pop %v2838
        %v2840 = vsel %vm1444, %v2837, 0.0
        %2841 = vadd.xlane.f32.xlu0 %v2840
        %v2842 = vpop.xlane.xlu0 %2841
        %v2843 = vsel %vm1444, %v2839, 0.0
        %2844 = vadd.xlane.f32.xlu0 %v2843
        %v2845 = vpop.xlane.xlu0 %2844
        %v2846 = vrcp.pop %v2842
        %v2847 = vrcp.pop %v2845
        %v2848 = vmul.f32 %v2837, %v2846
        %v2849 = vmul.f32 %v2839, %v2847
        %2850 = vrot.lane.b32.xlu0 %v1430, 104
        %v2851 = vpop.permute.xlu0 %2850
        %v2854 = vsel %vm1444, %v2848, 0
        %2856 = vmatprep.subr.mxu0 0.0
        %2857 = vmatpush1.msra.mxu0 %v2851
        %2858 = vmatprep.subr.mxu0 0.0
        %2859 = vmatpush1.msra.mxu0 0.0
        %2860 = vmatprep.subr.mxu0 0.0
        %2861 = vmatpush1.msra.mxu0 0.0
        %2862 = vmatprep.subr.mxu0 0.0
        %2863 = vmatpush1.msra.mxu0 0.0
        %2864 = vmatprep.subr.mxu0 0.0
        %2865 = vmatpush1.msra.mxu0 0.0
        %2866 = vmatprep.subr.mxu0 0.0
        %2867 = vmatpush1.msra.mxu0 0.0
        %2868 = vmatprep.subr.mxu0 0.0
        %2869 = vmatpush1.msra.mxu0 0.0
        %2870 = vmatprep.subr.mxu0 0.0
        %2871 = vmatpush1.msra.mxu0 0.0
        %2872 = vmatprep.subr.mxu0 0.0
        %2873 = vmatpush1.msra.mxu0 0.0
        %2874 = vmatprep.subr.mxu0 0.0
        %2875 = vmatpush1.msra.mxu0 0.0
        %2876 = vmatprep.subr.mxu0 0.0
        %2877 = vmatpush1.msra.mxu0 0.0
        %2878 = vmatprep.subr.mxu0 0.0
        %2879 = vmatpush1.msra.mxu0 0.0
        %2880 = vmatprep.subr.mxu0 0.0
        %2881 = vmatpush1.msra.mxu0 0.0
        %2882 = vmatprep.subr.mxu0 0.0
        %2883 = vmatpush1.msra.mxu0 0.0
        %2884 = vmatprep.subr.mxu0 0.0
        %2885 = vmatpush1.msra.mxu0 0.0
        %2886 = vmatprep.subr.mxu0 0.0
        %2887 = vmatpush1.msra.mxu0 0.0
        %2888 = vmatprep.subr.mxu0 0.0
        %2889 = vmatpush1.msra.mxu0 0.0
        %2890 = vmatprep.subr.mxu0 0.0
        %2891 = vmatpush1.msra.mxu0 0.0
        %2892 = vmatprep.subr.mxu0 0.0
        %2893 = vmatpush1.msra.mxu0 0.0
        %2894 = vmatprep.subr.mxu0 0.0
        %2895 = vmatpush1.msra.mxu0 0.0
        %2896 = vmatprep.subr.mxu0 0.0
        %2897 = vmatpush1.msra.mxu0 0.0
        %2898 = vmatprep.subr.mxu0 0.0
        %2899 = vmatpush1.msra.mxu0 0.0
        %2900 = vmatprep.subr.mxu0 0.0
        %2901 = vmatpush1.msra.mxu0 0.0
        %2902 = vmatprep.subr.mxu0 0.0
        %2903 = vmatpush1.msra.mxu0 0.0
        %2904 = vmatprep.subr.mxu0 0.0
        %2905 = vmatpush1.msra.mxu0 0.0
        %2906 = vmatprep.subr.mxu0 0.0
        %2907 = vmatpush1.msra.mxu0 0.0
        %2908 = vmatprep.subr.mxu0 0.0
        %2909 = vmatpush1.msra.mxu0 0.0
        %2910 = vmatprep.subr.mxu0 0.0
        %2911 = vmatpush1.msra.mxu0 0.0
        %2912 = vmatprep.subr.mxu0 0.0
        %2913 = vmatpush1.msra.mxu0 0.0
        %2914 = vmatprep.subr.mxu0 0.0
        %2915 = vmatpush1.msra.mxu0 0.0
        %2916 = vmatprep.subr.mxu0 0.0
        %2917 = vmatpush1.msra.mxu0 0.0
        %2918 = vmatprep.subr.mxu0 0.0
        %2919 = vmatpush1.msra.mxu0 0.0
        %2920 = vmatprep.mubr.f32.mxu0 0.0
        %2921 = vmatmul.mubr.f32.gmra.mrb[0].mxu0 %v2854
        %v2922 = vpop.f32.mrb[0].mxu0
        %v2923 = vadd.f32 0.0, %v2922
        %v2924 = vpop.f32.mrb[0].mxu0
        %2925 = vdwg.mxu0
        %2926 = vrot.lane.b32.xlu0 %v1435, 104
        %v2927 = vpop.permute.xlu0 %2926
        %v2930 = vsel %vm1444, %v2849, 0
        %2932 = vmatprep.subr.mxu0 0.0
        %2933 = vmatpush1.msra.mxu0 %v2927
        %2934 = vmatprep.subr.mxu0 0.0
        %2935 = vmatpush1.msra.mxu0 0.0
        %2936 = vmatprep.subr.mxu0 0.0
        %2937 = vmatpush1.msra.mxu0 0.0
        %2938 = vmatprep.subr.mxu0 0.0
        %2939 = vmatpush1.msra.mxu0 0.0
        %2940 = vmatprep.subr.mxu0 0.0
        %2941 = vmatpush1.msra.mxu0 0.0
        %2942 = vmatprep.subr.mxu0 0.0
        %2943 = vmatpush1.msra.mxu0 0.0
        %2944 = vmatprep.subr.mxu0 0.0
        %2945 = vmatpush1.msra.mxu0 0.0
        %2946 = vmatprep.subr.mxu0 0.0
        %2947 = vmatpush1.msra.mxu0 0.0
        %2948 = vmatprep.subr.mxu0 0.0
        %2949 = vmatpush1.msra.mxu0 0.0
        %2950 = vmatprep.subr.mxu0 0.0
        %2951 = vmatpush1.msra.mxu0 0.0
        %2952 = vmatprep.subr.mxu0 0.0
        %2953 = vmatpush1.msra.mxu0 0.0
        %2954 = vmatprep.subr.mxu0 0.0
        %2955 = vmatpush1.msra.mxu0 0.0
        %2956 = vmatprep.subr.mxu0 0.0
        %2957 = vmatpush1.msra.mxu0 0.0
        %2958 = vmatprep.subr.mxu0 0.0
        %2959 = vmatpush1.msra.mxu0 0.0
        %2960 = vmatprep.subr.mxu0 0.0
        %2961 = vmatpush1.msra.mxu0 0.0
        %2962 = vmatprep.subr.mxu0 0.0
        %2963 = vmatpush1.msra.mxu0 0.0
        %2964 = vmatprep.subr.mxu0 0.0
        %2965 = vmatpush1.msra.mxu0 0.0
        %2966 = vmatprep.subr.mxu0 0.0
        %2967 = vmatpush1.msra.mxu0 0.0
        %2968 = vmatprep.subr.mxu0 0.0
        %2969 = vmatpush1.msra.mxu0 0.0
        %2970 = vmatprep.subr.mxu0 0.0
        %2971 = vmatpush1.msra.mxu0 0.0
        %2972 = vmatprep.subr.mxu0 0.0
        %2973 = vmatpush1.msra.mxu0 0.0
        %2974 = vmatprep.subr.mxu0 0.0
        %2975 = vmatpush1.msra.mxu0 0.0
        %2976 = vmatprep.subr.mxu0 0.0
        %2977 = vmatpush1.msra.mxu0 0.0
        %2978 = vmatprep.subr.mxu0 0.0
        %2979 = vmatpush1.msra.mxu0 0.0
        %2980 = vmatprep.subr.mxu0 0.0
        %2981 = vmatpush1.msra.mxu0 0.0
        %2982 = vmatprep.subr.mxu0 0.0
        %2983 = vmatpush1.msra.mxu0 0.0
        %2984 = vmatprep.subr.mxu0 0.0
        %2985 = vmatpush1.msra.mxu0 0.0
        %2986 = vmatprep.subr.mxu0 0.0
        %2987 = vmatpush1.msra.mxu0 0.0
        %2988 = vmatprep.subr.mxu0 0.0
        %2989 = vmatpush1.msra.mxu0 0.0
        %2990 = vmatprep.subr.mxu0 0.0
        %2991 = vmatpush1.msra.mxu0 0.0
        %2992 = vmatprep.subr.mxu0 0.0
        %2993 = vmatpush1.msra.mxu0 0.0
        %2994 = vmatprep.subr.mxu0 0.0
        %2995 = vmatpush1.msra.mxu0 0.0
        %2996 = vmatprep.mubr.f32.mxu0 0.0
        %2997 = vmatmul.mubr.f32.gmra.mrb[0].mxu0 %v2930
        %v2998 = vpop.f32.mrb[0].mxu0
        %v2999 = vadd.f32 0.0, %v2998
        %v3000 = vpop.f32.mrb[0].mxu0
        %3001 = vdwg.mxu0
        %v3003 = vsel %vm1444, %v2923, 0
        %v3006 = vsel %vm1444, %v2999, 0
        %3008 = vmatprep.subr.mxu0 0.0
        %3009 = vmatpush1.msra.mxu0 %v1115
        %3010 = vmatprep.subr.mxu0 0.0
        %3011 = vmatpush1.msra.mxu0 0.0
        %3012 = vmatprep.subr.mxu0 0.0
        %3013 = vmatpush1.msra.mxu0 0.0
        %3014 = vmatprep.subr.mxu0 0.0
        %3015 = vmatpush1.msra.mxu0 0.0
        %3016 = vmatprep.subr.mxu0 0.0
        %3017 = vmatpush1.msra.mxu0 0.0
        %3018 = vmatprep.subr.mxu0 0.0
        %3019 = vmatpush1.msra.mxu0 0.0
        %3020 = vmatprep.subr.mxu0 0.0
        %3021 = vmatpush1.msra.mxu0 0.0
        %3022 = vmatprep.subr.mxu0 0.0
        %3023 = vmatpush1.msra.mxu0 0.0
        %3024 = vmatprep.subr.mxu0 0.0
        %3025 = vmatpush1.msra.mxu0 0.0
        %3026 = vmatprep.subr.mxu0 0.0
        %3027 = vmatpush1.msra.mxu0 0.0
        %3028 = vmatprep.subr.mxu0 0.0
        %3029 = vmatpush1.msra.mxu0 0.0
        %3030 = vmatprep.subr.mxu0 0.0
        %3031 = vmatpush1.msra.mxu0 0.0
        %3032 = vmatprep.subr.mxu0 0.0
        %3033 = vmatpush1.msra.mxu0 0.0
        %3034 = vmatprep.subr.mxu0 0.0
        %3035 = vmatpush1.msra.mxu0 0.0
        %3036 = vmatprep.subr.mxu0 0.0
        %3037 = vmatpush1.msra.mxu0 0.0
        %3038 = vmatprep.subr.mxu0 0.0
        %3039 = vmatpush1.msra.mxu0 0.0
        %3040 = vmatprep.subr.mxu0 0.0
        %3041 = vmatpush1.msra.mxu0 0.0
        %3042 = vmatprep.subr.mxu0 0.0
        %3043 = vmatpush1.msra.mxu0 0.0
        %3044 = vmatprep.subr.mxu0 0.0
        %3045 = vmatpush1.msra.mxu0 0.0
        %3046 = vmatprep.subr.mxu0 0.0
        %3047 = vmatpush1.msra.mxu0 0.0
        %3048 = vmatprep.subr.mxu0 0.0
        %3049 = vmatpush1.msra.mxu0 0.0
        %3050 = vmatprep.subr.mxu0 0.0
        %3051 = vmatpush1.msra.mxu0 0.0
        %3052 = vmatprep.subr.mxu0 0.0
        %3053 = vmatpush1.msra.mxu0 0.0
        %3054 = vmatprep.subr.mxu0 0.0
        %3055 = vmatpush1.msra.mxu0 0.0
        %3056 = vmatprep.subr.mxu0 0.0
        %3057 = vmatpush1.msra.mxu0 0.0
        %3058 = vmatprep.subr.mxu0 0.0
        %3059 = vmatpush1.msra.mxu0 0.0
        %3060 = vmatprep.subr.mxu0 0.0
        %3061 = vmatpush1.msra.mxu0 0.0
        %3062 = vmatprep.subr.mxu0 0.0
        %3063 = vmatpush1.msra.mxu0 0.0
        %3064 = vmatprep.subr.mxu0 0.0
        %3065 = vmatpush1.msra.mxu0 0.0
        %3066 = vmatprep.subr.mxu0 0.0
        %3067 = vmatpush1.msra.mxu0 0.0
        %3068 = vmatprep.subr.mxu0 0.0
        %3069 = vmatpush1.msra.mxu0 0.0
        %3070 = vmatprep.subr.mxu0 0.0
        %3071 = vmatpush1.msra.mxu0 0.0
        %3072 = vmatprep.mubr.f32.mxu0 0.0
        %3073 = vmatmul.mubr.f32.gmra.mrb[0].mxu0 %v3003
        %v3074 = vpop.f32.mrb[0].mxu0
        %v3075 = vadd.f32 0.0, %v3074
        %v3076 = vpop.f32.mrb[0].mxu0
        %3077 = vmatprep.mubr.f32.mxu0 0.0
        %3078 = vmatmul.mubr.f32.gmra.mrb[0].mxu0 %v3006
        %v3079 = vpop.f32.mrb[0].mxu0
        %v3080 = vadd.f32 0.0, %v3079
        %v3081 = vpop.f32.mrb[0].mxu0
        %3082 = vdwg.mxu0
        %v3083 = vadd.f32 %v2670, %v3075
        %v3084 = vadd.f32 %v2671, %v3080
        %v3085 = vadd.f32 %v1141, %v3083
        %v3086 = vadd.f32 %v1142, %v3084
        %v3088 = vlaneseq
        %v3089 = vshrl.u32 %v3088, 7
        %v3090 = vsub.s32 0, %v3089
        %v3091 = vrot.slane %v1116, %v3090
        %v3093 = vadd.f32 %v3085, %v3091
        %v3094 = vadd.f32 %v3086, %v3091
        %v3095 = vsel %vm1143, %v3093, 0.0
        %3096 = vadd.xlane.f32.xlu0 %v3095
        %v3097 = vpop.xlane.xlu0 %3096
        %v3098 = vsel %vm1143, %v3094, 0.0
        %3099 = vadd.xlane.f32.xlu0 %v3098
        %v3100 = vpop.xlane.xlu0 %3099
        %v3101 = vmul.f32 %v3097, %v1150
        %v3102 = vmul.f32 %v3100, %v1150
        %v3103 = vsub.f32 %v3093, %v3101
        %v3104 = vsub.f32 %v3094, %v3102
        %v3105 = vmul.f32 %v3103, %v3103
        %v3106 = vmul.f32 %v3104, %v3104
        %v3107 = vsel %vm1143, %v3105, 0.0
        %3108 = vadd.xlane.f32.xlu0 %v3107
        %v3109 = vpop.xlane.xlu0 %3108
        %v3110 = vsel %vm1143, %v3106, 0.0
        %3111 = vadd.xlane.f32.xlu0 %v3110
        %v3112 = vpop.xlane.xlu0 %3111
        %v3113 = vmul.f32 %v3109, %v1150
        %v3114 = vmul.f32 %v3112, %v1150
        %v3115 = vadd.f32 %v3113, 1e-05
        %v3116 = vadd.f32 %v3114, 1e-05
        %v3117 = vrsqrt.pop %v3115
        %v3118 = vrsqrt.pop %v3116
        %v3119 = vmul.f32 %v3103, %v3117
        %v3120 = vmul.f32 %v3104, %v3118
        %v3122 = vlaneseq
        %v3123 = vshrl.u32 %v3122, 7
        %v3124 = vsub.s32 0, %v3123
        %v3125 = vrot.slane %v1117, %v3124
        %v3127 = vmul.f32 %v3119, %v3125
        %v3128 = vmul.f32 %v3120, %v3125
        %v3130 = vlaneseq
        %v3131 = vshrl.u32 %v3130, 7
        %v3132 = vsub.s32 0, %v3131
        %v3133 = vrot.slane %v1118, %v3132
        %v3135 = vadd.f32 %v3127, %v3133
        %v3136 = vadd.f32 %v3128, %v3133
        %v3138 = vlaneseq
        %v3139 = vshrl.u32 %v3138, 7
        %v3140 = vsub.s32 0, %v3139
        %v3141 = vrot.slane %v1123, %v3140
        %v3144 = vsel %vm1143, %v3135, 0
        %v3147 = vsel %vm1143, %v3136, 0
        %3149 = vmatprep.subr.mxu0 0.0
        %3150 = vmatpush1.msra.mxu0 %v1119
        %3151 = vmatprep.subr.mxu0 0.0
        %3152 = vmatpush1.msra.mxu0 %v1120
        %3153 = vmatprep.subr.mxu0 0.0
        %3154 = vmatpush1.msra.mxu0 %v1121
        %3155 = vmatprep.subr.mxu0 0.0
        %3156 = vmatpush1.msra.mxu0 %v1122
        %3157 = vmatprep.subr.mxu0 0.0
        %3158 = vmatpush1.msra.mxu0 0.0
        %3159 = vmatprep.subr.mxu0 0.0
        %3160 = vmatpush1.msra.mxu0 0.0
        %3161 = vmatprep.subr.mxu0 0.0
        %3162 = vmatpush1.msra.mxu0 0.0
        %3163 = vmatprep.subr.mxu0 0.0
        %3164 = vmatpush1.msra.mxu0 0.0
        %3165 = vmatprep.subr.mxu0 0.0
        %3166 = vmatpush1.msra.mxu0 0.0
        %3167 = vmatprep.subr.mxu0 0.0
        %3168 = vmatpush1.msra.mxu0 0.0
        %3169 = vmatprep.subr.mxu0 0.0
        %3170 = vmatpush1.msra.mxu0 0.0
        %3171 = vmatprep.subr.mxu0 0.0
        %3172 = vmatpush1.msra.mxu0 0.0
        %3173 = vmatprep.subr.mxu0 0.0
        %3174 = vmatpush1.msra.mxu0 0.0
        %3175 = vmatprep.subr.mxu0 0.0
        %3176 = vmatpush1.msra.mxu0 0.0
        %3177 = vmatprep.subr.mxu0 0.0
        %3178 = vmatpush1.msra.mxu0 0.0
        %3179 = vmatprep.subr.mxu0 0.0
        %3180 = vmatpush1.msra.mxu0 0.0
        %3181 = vmatprep.subr.mxu0 0.0
        %3182 = vmatpush1.msra.mxu0 0.0
        %3183 = vmatprep.subr.mxu0 0.0
        %3184 = vmatpush1.msra.mxu0 0.0
        %3185 = vmatprep.subr.mxu0 0.0
        %3186 = vmatpush1.msra.mxu0 0.0
        %3187 = vmatprep.subr.mxu0 0.0
        %3188 = vmatpush1.msra.mxu0 0.0
        %3189 = vmatprep.subr.mxu0 0.0
        %3190 = vmatpush1.msra.mxu0 0.0
        %3191 = vmatprep.subr.mxu0 0.0
        %3192 = vmatpush1.msra.mxu0 0.0
        %3193 = vmatprep.subr.mxu0 0.0
        %3194 = vmatpush1.msra.mxu0 0.0
        %3195 = vmatprep.subr.mxu0 0.0
        %3196 = vmatpush1.msra.mxu0 0.0
        %3197 = vmatprep.subr.mxu0 0.0
        %3198 = vmatpush1.msra.mxu0 0.0
        %3199 = vmatprep.subr.mxu0 0.0
        %3200 = vmatpush1.msra.mxu0 0.0
        %3201 = vmatprep.subr.mxu0 0.0
        %3202 = vmatpush1.msra.mxu0 0.0
        %3203 = vmatprep.subr.mxu0 0.0
        %3204 = vmatpush1.msra.mxu0 0.0
        %3205 = vmatprep.subr.mxu0 0.0
        %3206 = vmatpush1.msra.mxu0 0.0
        %3207 = vmatprep.subr.mxu0 0.0
        %3208 = vmatpush1.msra.mxu0 0.0
        %3209 = vmatprep.subr.mxu0 0.0
        %3210 = vmatpush1.msra.mxu0 0.0
        %3211 = vmatprep.subr.mxu0 0.0
        %3212 = vmatpush1.msra.mxu0 0.0
        %3213 = vmatprep.mubr.f32.mxu0 0.0
        %3214 = vmatmul.mubr.f32.gmra.mrb[0].mxu0 %v3144
        %v3215 = vpop.f32.mrb[0].mxu0
        %v3216 = vadd.f32 %v3141, %v3215
        %v3217 = vpop.f32.mrb[0].mxu0
        %3218 = vmatprep.mubr.f32.mxu0 0.0
        %3219 = vmatmul.mubr.f32.gmra.mrb[0].mxu0 %v3147
        %v3220 = vpop.f32.mrb[0].mxu0
        %v3221 = vadd.f32 %v3141, %v3220
        %v3222 = vpop.f32.mrb[0].mxu0
        %3223 = vdwg.mxu0
        %v3224 = vmul.f32 %v3216, 0.5
        %v3225 = vmul.f32 %v3221, 0.5
        %v3226 = vmul.f32 %v3216, 0.70710677
        %v3227 = vmul.f32 %v3221, 0.70710677
        %v3228 = verf.f32.pop %v3226
        %v3229 = verf.f32.pop %v3227
        %v3230 = vadd.f32 %v3228, 1.0
        %v3231 = vadd.f32 %v3229, 1.0
        %v3232 = vmul.f32 %v3224, %v3230
        %v3233 = vmul.f32 %v3225, %v3231
        %v3235 = vlaneseq
        %v3236 = vshrl.u32 %v3235, 7
        %v3237 = vsub.s32 0, %v3236
        %v3238 = vrot.slane %v1140, %v3237
        %3240 = vmatprep.subr.mxu0 0.0
        %3241 = vmatpush1.msra.mxu0 %v1124
        %3242 = vmatprep.subr.mxu0 0.0
        %3243 = vmatpush1.msra.mxu0 %v1125
        %3244 = vmatprep.subr.mxu0 0.0
        %3245 = vmatpush1.msra.mxu0 %v1126
        %3246 = vmatprep.subr.mxu0 0.0
        %3247 = vmatpush1.msra.mxu0 %v1127
        %3248 = vmatprep.subr.mxu0 0.0
        %3249 = vmatpush1.msra.mxu0 %v1128
        %3250 = vmatprep.subr.mxu0 0.0
        %3251 = vmatpush1.msra.mxu0 %v1129
        %3252 = vmatprep.subr.mxu0 0.0
        %3253 = vmatpush1.msra.mxu0 %v1130
        %3254 = vmatprep.subr.mxu0 0.0
        %3255 = vmatpush1.msra.mxu0 %v1131
        %3256 = vmatprep.subr.mxu0 0.0
        %3257 = vmatpush1.msra.mxu0 %v1132
        %3258 = vmatprep.subr.mxu0 0.0
        %3259 = vmatpush1.msra.mxu0 %v1133
        %3260 = vmatprep.subr.mxu0 0.0
        %3261 = vmatpush1.msra.mxu0 %v1134
        %3262 = vmatprep.subr.mxu0 0.0
        %3263 = vmatpush1.msra.mxu0 %v1135
        %3264 = vmatprep.subr.mxu0 0.0
        %3265 = vmatpush1.msra.mxu0 %v1136
        %3266 = vmatprep.subr.mxu0 0.0
        %3267 = vmatpush1.msra.mxu0 %v1137
        %3268 = vmatprep.subr.mxu0 0.0
        %3269 = vmatpush1.msra.mxu0 %v1138
        %3270 = vmatprep.subr.mxu0 0.0
        %3271 = vmatpush1.msra.mxu0 %v1139
        %3272 = vmatprep.subr.mxu0 0.0
        %3273 = vmatpush1.msra.mxu0 0.0
        %3274 = vmatprep.subr.mxu0 0.0
        %3275 = vmatpush1.msra.mxu0 0.0
        %3276 = vmatprep.subr.mxu0 0.0
        %3277 = vmatpush1.msra.mxu0 0.0
        %3278 = vmatprep.subr.mxu0 0.0
        %3279 = vmatpush1.msra.mxu0 0.0
        %3280 = vmatprep.subr.mxu0 0.0
        %3281 = vmatpush1.msra.mxu0 0.0
        %3282 = vmatprep.subr.mxu0 0.0
        %3283 = vmatpush1.msra.mxu0 0.0
        %3284 = vmatprep.subr.mxu0 0.0
        %3285 = vmatpush1.msra.mxu0 0.0
        %3286 = vmatprep.subr.mxu0 0.0
        %3287 = vmatpush1.msra.mxu0 0.0
        %3288 = vmatprep.subr.mxu0 0.0
        %3289 = vmatpush1.msra.mxu0 0.0
        %3290 = vmatprep.subr.mxu0 0.0
        %3291 = vmatpush1.msra.mxu0 0.0
        %3292 = vmatprep.subr.mxu0 0.0
        %3293 = vmatpush1.msra.mxu0 0.0
        %3294 = vmatprep.subr.mxu0 0.0
        %3295 = vmatpush1.msra.mxu0 0.0
        %3296 = vmatprep.subr.mxu0 0.0
        %3297 = vmatpush1.msra.mxu0 0.0
        %3298 = vmatprep.subr.mxu0 0.0
        %3299 = vmatpush1.msra.mxu0 0.0
        %3300 = vmatprep.subr.mxu0 0.0
        %3301 = vmatpush1.msra.mxu0 0.0
        %3302 = vmatprep.subr.mxu0 0.0
        %3303 = vmatpush1.msra.mxu0 0.0
        %3304 = vmatprep.mubr.f32.mxu0 0.0
        %3305 = vmatmul.mubr.f32.gmra.mrb[0].mxu0 %v3232
        %v3306 = vpop.f32.mrb[0].mxu0
        %v3307 = vadd.f32 %v3238, %v3306
        %v3308 = vpop.f32.mrb[0].mxu0
        %3309 = vmatprep.mubr.f32.mxu0 0.0
        %3310 = vmatmul.mubr.f32.gmra.mrb[0].mxu0 %v3233
        %v3311 = vpop.f32.mrb[0].mxu0
        %v3312 = vadd.f32 %v3238, %v3311
        %v3313 = vpop.f32.mrb[0].mxu0
        %3314 = vdwg.mxu0
        %v3315 = vadd.f32 %v3093, %v3307
        %v3316 = vadd.f32 %v3094, %v3312
        %3317 = vst.msk [vmem:[#allocation2] sm:$0xff] %vm1143, %v3315
        %3318 = vst.msk [vmem:[#allocation2 + $0x8] sm:$0xff] %vm1143, %v3316
        %3319 = vst.msk [vmem:[#allocation30] sm:$0xff] %vm1143, %v3315
        %3320 = vst.msk [vmem:[#allocation30 + $0x8] sm:$0xff] %vm1143, %v3316
        // Predicated region
        $region161: #{tpu_custom_call.1} parent=87 // pred_check
          %p3321 = pneg %p504
        $region162: #{tpu_custom_call.1} parent=87 // pred_check_branch
          %3323 = sbr.rel (%p3321) target = $region164
        $region163: #{tpu_custom_call.1} parent=87 // pred_region
          %s3325 = ssub.s32 256, 256
          %3326 = vsyncadd [#allocation5], %s3325
          %s3327 = sshll.u32 [#allocation30], 4
          %s3328 = int_to_ptr.vmem [resolvable:$true] %s3327
          %3333 = dma.vmem_to_hbm [thread:$0]  %s3328, 256, %s17, [#allocation5], 128, 128, 8
        $region164: #{tpu_custom_call.1} parent=87 // pred_fallthru
          _
        // Predicated region
        $region165: #{tpu_custom_call.1} parent=87 // pred_check
          %p3334 = pneg %p504
        $region166: #{tpu_custom_call.1} parent=87 // pred_check_branch
          %3336 = sbr.rel (%p3334) target = $region168
        $region167: #{tpu_custom_call.1} parent=87 // pred_region
          %3337 = dma.done [#allocation5], 256
        $region168: #{tpu_custom_call.1} parent=87 // pred_fallthru
          _
      $region88: #{tpu_custom_call.1} parent=5 // pred_fallthru
        _
      %p3338 = scmp.le.s32.totalorder 2, %s49
      // Predicated region
      $region169: #{tpu_custom_call.1} parent=5 // pred_check
        %p3339 = pneg %p3338
      $region170: #{tpu_custom_call.1} parent=5 // pred_check_branch
        %3341 = sbr.rel (%p3339) target = $region172
      $region171: #{tpu_custom_call.1} parent=5 // pred_region
        %s3342 = ssub.s32 %s49, 2
      $region172: #{tpu_custom_call.1} parent=5 // pred_fallthru
        _
    $region6: #{tpu_custom_call.1} parent=1 // loop_footer
      %s53 = sadd.s32 1, %s49
    $region7: #{tpu_custom_call.1} parent=1 // loop_footer_branch
      %48 = sbr.rel target = $region3
    $region8: #{tpu_custom_call.1} parent=1 // loop_exit
      _
    %3343 = vsyncpa [#allocation4], 1
    %s3344 = scalar_lea.sflag [#allocation4], 1
    %3345 = vsyncpa %s3344, 1
    %3346 = vsyncpa [#allocation7], 1
    %s3347 = scalar_lea.sflag [#allocation7], 1
    %3348 = vsyncpa %s3347, 1
    %3349 = vsyncpa [#allocation10], 1
    %s3350 = scalar_lea.sflag [#allocation10], 1
    %3351 = vsyncpa %s3350, 1
    %3352 = vsyncpa [#allocation13], 1
    %s3353 = scalar_lea.sflag [#allocation13], 1
    %3354 = vsyncpa %s3353, 1
    %3355 = vsyncpa [#allocation16], 1
    %s3356 = scalar_lea.sflag [#allocation16], 1
    %3357 = vsyncpa %s3356, 1
    %3358 = vsyncpa [#allocation19], 1
    %s3359 = scalar_lea.sflag [#allocation19], 1
    %3360 = vsyncpa %s3359, 1
    %3361 = vsyncpa [#allocation22], 1
    %s3362 = scalar_lea.sflag [#allocation22], 1
    %3363 = vsyncpa %s3362, 1
    %3364 = vsyncpa [#allocation25], 1
    %s3365 = scalar_lea.sflag [#allocation25], 1
    %3366 = vsyncpa %s3365, 1
    %3367 = vsyncpa [#allocation28], 1
    %s3368 = scalar_lea.sflag [#allocation28], 1
    %3369 = vsyncpa %s3368, 1
    %3370 = vsyncpa [#allocation5], 1
    %s3371 = scalar_lea.sflag [#allocation5], 1
    %3372 = vsyncpa %s3371, 1

</llo_original>
